<compile_context>
chip_gen: v7x
topology: tpu7x:2x2x1
jax: 0.10.0
libtpu: 0.0.40
codegen_flags: <defaults>
</compile_context>

<pallas_src>
import functools
import math

import jax
import jax.numpy as jnp
from jax.experimental import pallas as pl
from jax.experimental.pallas import tpu as pltpu


# ----------------------------------------------------------------------------
# Per-generation sizing (v5e/v6e: 128 MiB VMEM, v7x: 64 MiB per TensorCore).
# ----------------------------------------------------------------------------
def _tpu_vmem_bytes():
    try:
        info = pltpu.get_tpu_info()
        v = getattr(info, "vmem_capacity_bytes", None)
        if v:
            return int(v)
    except Exception:
        pass
    return 64 * 1024 * 1024  # conservative default (v7x per-TC)


_VMEM_BYTES = _tpu_vmem_bytes()
_BIG_VMEM = _VMEM_BYTES >= 96 * 1024 * 1024
_TILE_TARGET_BYTES = (8 if _BIG_VMEM else 4) * 1024 * 1024
_TILED_VMEM_LIMIT = (64 if _BIG_VMEM else 48) * 1024 * 1024
_SMALL_VMEM_LIMIT = (64 if _BIG_VMEM else 40) * 1024 * 1024
_SMALL_PATH_BYTES = 24 * 1024 * 1024


# ----------------------------------------------------------------------------
# Shared excitation MLP (traced inline inside kernels). bf16 weights, f32 acc.
# ----------------------------------------------------------------------------
def _excitation_gates(sq_v_bf16, sq_s_bf16, wsq_v, wsq_s, bsq, wv, bv, ws, bs):
    exc = (jnp.dot(sq_v_bf16, wsq_v, preferred_element_type=jnp.float32)
           + jnp.dot(sq_s_bf16, wsq_s, preferred_element_type=jnp.float32)
           + bsq)
    exc = jnp.maximum(exc, 0.0).astype(jnp.bfloat16)
    vg = jax.nn.sigmoid(jnp.dot(exc, wv, preferred_element_type=jnp.float32) + bv)
    sg = jax.nn.sigmoid(jnp.dot(exc, ws, preferred_element_type=jnp.float32) + bs)
    return vg, sg


# ----------------------------------------------------------------------------
# Kernel: tiled squeeze (per-channel spatial mean).  x: (B, C, S) channel-major,
# grid over spatial tiles; output (B, C) f32 is the resident accumulator.
# ----------------------------------------------------------------------------
def _squeeze_kernel(x_ref, out_ref, *, s_total, ts, mask_tail):
    i = pl.program_id(0)

    @pl.when(i == 0)
    def _():
        out_ref[...] = jnp.zeros_like(out_ref)

    x = x_ref[...].astype(jnp.float32)                      # (B, C, ts)
    if mask_tail:
        pos = i * ts + jax.lax.broadcasted_iota(jnp.int32, (1, 1, ts), 2)
        x = jnp.where(pos < s_total, x, 0.0)
    out_ref[...] += jnp.sum(x, axis=-1)

    @pl.when(i == pl.num_programs(0) - 1)
    def _():
        out_ref[...] = out_ref[...] * (1.0 / float(s_total))


# ----------------------------------------------------------------------------
# Kernel: visual squeeze fused with the excitation MLP.  The (bf16) weights and
# the pre-computed skeleton squeeze ride along as whole resident blocks, so
# their DMA is pipelined with the visual feature streaming; the gates are
# produced under pl.when(last step).
# ----------------------------------------------------------------------------
def _squeeze_gate_kernel(vis_ref, sqs_ref, wsqv_ref, wsqs_ref, bsq_ref,
                         wv_ref, bv_ref, ws_ref, bs_ref,
                         vgate_ref, sgate_ref, acc_ref, *, s_total, ts, mask_tail):
    i = pl.program_id(0)

    @pl.when(i == 0)
    def _():
        acc_ref[...] = jnp.zeros_like(acc_ref)

    x = vis_ref[...].astype(jnp.float32)                    # (B, Cv, ts)
    if mask_tail:
        pos = i * ts + jax.lax.broadcasted_iota(jnp.int32, (1, 1, ts), 2)
        x = jnp.where(pos < s_total, x, 0.0)
    acc_ref[...] += jnp.sum(x, axis=-1)

    @pl.when(i == pl.num_programs(0) - 1)
    def _():
        sq_v = (acc_ref[...] * (1.0 / float(s_total))).astype(jnp.bfloat16)
        sq_s = sqs_ref[...].astype(jnp.bfloat16)
        vg, sg = _excitation_gates(sq_v, sq_s, wsqv_ref[...], wsqs_ref[...],
                                   bsq_ref[...], wv_ref[...], bv_ref[...],
                                   ws_ref[...], bs_ref[...])
        vgate_ref[...] = vg
        sgate_ref[...] = sg


# ----------------------------------------------------------------------------
# Kernel: tiled channel re-weighting, out[b,c,s] = x[b,c,s] * gate[b,c].
# Overhanging tail writes are dropped by Pallas OOB semantics.
# ----------------------------------------------------------------------------
def _rescale_kernel(x_ref, gate_ref, o_ref):
    x = x_ref[...]
    if o_ref.dtype == jnp.float32:
        o_ref[...] = x.astype(jnp.float32) * gate_ref[...][:, :, None]
    else:
        g = gate_ref[...].astype(o_ref.dtype)
        o_ref[...] = (x * g[:, :, None]).astype(o_ref.dtype)


# ----------------------------------------------------------------------------
# Kernel: fully fused small-tensor path (squeeze + gate + rescale, both
# modalities, whole arrays resident in VMEM, single launch).
# ----------------------------------------------------------------------------
def _mmtm_small_kernel(vis_ref, sk_ref, wsqv_ref, wsqs_ref, bsq_ref,
                       wv_ref, bv_ref, ws_ref, bs_ref, vo_ref, so_ref):
    vis = vis_ref[...].astype(jnp.float32)                  # (B, Cv, Sv)
    sk = sk_ref[...].astype(jnp.float32)                    # (B, Cs, Ss)
    sq_v = jnp.mean(vis, axis=-1).astype(jnp.bfloat16)
    sq_s = jnp.mean(sk, axis=-1).astype(jnp.bfloat16)
    vg, sg = _excitation_gates(sq_v, sq_s, wsqv_ref[...], wsqs_ref[...],
                               bsq_ref[...], wv_ref[...], bv_ref[...],
                               ws_ref[...], bs_ref[...])
    vo_ref[...] = (vis * vg[:, :, None]).astype(vo_ref.dtype)
    so_ref[...] = (sk * sg[:, :, None]).astype(so_ref.dtype)


# ----------------------------------------------------------------------------
# Wrappers
# ----------------------------------------------------------------------------
def _choose_spatial_tile(b, c, s, itemsize):
    """Spatial (lane) tile: multiple of 128 or the full extent."""
    if s <= 128:
        return s
    per_lane_bytes = max(1, b * c * itemsize)
    ts = (_TILE_TARGET_BYTES // per_lane_bytes) // 128 * 128
    ts = max(128, ts)
    return s if ts >= s else ts


def _squeeze_mean_tiled(x, ts):
    b, c, s = x.shape
    kernel = functools.partial(_squeeze_kernel, s_total=s, ts=ts,
                               mask_tail=(s % ts != 0))
    return pl.pallas_call(
        kernel,
        out_shape=jax.ShapeDtypeStruct((b, c), jnp.float32),
        grid=(pl.cdiv(s, ts),),
        in_specs=[pl.BlockSpec((b, c, ts), lambda i: (0, 0, i))],
        out_specs=pl.BlockSpec((b, c), lambda i: (0, 0)),
        compiler_params=pltpu.CompilerParams(
            dimension_semantics=("arbitrary",),
            vmem_limit_bytes=_TILED_VMEM_LIMIT),
    )(x)


def _squeeze_gate_tiled(vis, sq_s, params, ts):
    b, cv, s = vis.shape
    cs = sq_s.shape[1]
    kernel = functools.partial(_squeeze_gate_kernel, s_total=s, ts=ts,
                               mask_tail=(s % ts != 0))

    def full2d(a):
        return pl.BlockSpec(a.shape, lambda i: (0, 0))

    return pl.pallas_call(
        kernel,
        out_shape=(jax.ShapeDtypeStruct((b, cv), jnp.float32),
                   jax.ShapeDtypeStruct((b, cs), jnp.float32)),
        grid=(pl.cdiv(s, ts),),
        in_specs=[pl.BlockSpec((b, cv, ts), lambda i: (0, 0, i)),
                  full2d(sq_s)] + [full2d(p) for p in params],
        out_specs=(pl.BlockSpec((b, cv), lambda i: (0, 0)),
                   pl.BlockSpec((b, cs), lambda i: (0, 0))),
        scratch_shapes=[pltpu.VMEM((b, cv), jnp.float32)],
        compiler_params=pltpu.CompilerParams(
            dimension_semantics=("arbitrary",),
            vmem_limit_bytes=_TILED_VMEM_LIMIT),
    )(vis, sq_s, *params)


def _rescale_tiled(x, gate, ts):
    b, c, s = x.shape
    return pl.pallas_call(
        _rescale_kernel,
        out_shape=jax.ShapeDtypeStruct((b, c, s), x.dtype),
        grid=(pl.cdiv(s, ts),),
        in_specs=[pl.BlockSpec((b, c, ts), lambda i: (0, 0, i)),
                  pl.BlockSpec((b, c), lambda i: (0, 0))],
        out_specs=pl.BlockSpec((b, c, ts), lambda i: (0, 0, i)),
        compiler_params=pltpu.CompilerParams(
            dimension_semantics=("parallel",),
            vmem_limit_bytes=_TILED_VMEM_LIMIT),
    )(x, gate)


def _mmtm_small(vis, sk, params):
    b, cv, sv = vis.shape
    _, cs, ss = sk.shape
    vmem = pl.BlockSpec(memory_space=pltpu.MemorySpace.VMEM)
    return pl.pallas_call(
        _mmtm_small_kernel,
        out_shape=(jax.ShapeDtypeStruct((b, cv, sv), vis.dtype),
                   jax.ShapeDtypeStruct((b, cs, ss), sk.dtype)),
        in_specs=[vmem] * 9,
        out_specs=(vmem, vmem),
        compiler_params=pltpu.CompilerParams(
            vmem_limit_bytes=_SMALL_VMEM_LIMIT),
    )(vis, sk, *params)


def mmtm_pallas(visual, skeleton, params, *, force_tiled=False, spatial_tile=None):
    """Apply one MMTM block.  visual: (B, Cv, *sv), skeleton: (B, Cs, *ss)."""
    b, cv = visual.shape[:2]
    cs = skeleton.shape[1]
    sv = int(math.prod(visual.shape[2:]))
    ss = int(math.prod(skeleton.shape[2:]))

    # Channel-major layout; collapsing trailing spatial dims is a free reshape.
    vis = visual.reshape(b, cv, sv)
    sk = skeleton.reshape(b, cs, ss)

    weight_bytes = sum(int(p.size) * p.dtype.itemsize for p in params)
    feat_bytes = 4 * (vis.size + sk.size)  # f32 working copies
    use_small = (not force_tiled) and (3 * feat_bytes + weight_bytes <= _SMALL_PATH_BYTES)

    if use_small:
        v_out, s_out = _mmtm_small(vis, sk, params)
    else:
        ts_v = _choose_spatial_tile(b, cv, sv, vis.dtype.itemsize)
        ts_s = _choose_spatial_tile(b, cs, ss, sk.dtype.itemsize)
        if spatial_tile is not None:
            ts_v = min(spatial_tile, sv)
            ts_s = min(spatial_tile, ss)
        sq_s = _squeeze_mean_tiled(sk, ts_s)
        v_gate, s_gate = _squeeze_gate_tiled(vis, sq_s, params, ts_v)
        v_out = _rescale_tiled(vis, v_gate, ts_v)
        s_out = _rescale_tiled(sk, s_gate, ts_s)

    return v_out.reshape(visual.shape), s_out.reshape(skeleton.shape)


# ----------------------------------------------------------------------------
# Parameter construction (PyTorch nn.Linear default-style init, bf16 weights).
# ----------------------------------------------------------------------------
def _init_linear(key, in_dim, out_dim):
    k1, k2 = jax.random.split(key)
    bound = 1.0 / math.sqrt(in_dim)
    w = jax.random.uniform(k1, (out_dim, in_dim), jnp.float32, -bound, bound)
    b = jax.random.uniform(k2, (out_dim,), jnp.float32, -bound, bound)
    return w, b


def init_mmtm_params(key, dim_visual, dim_skeleton, ratio=4):
    dim = dim_visual + dim_skeleton
    dim_out = int(2 * dim / ratio)
    k1, k2, k3 = jax.random.split(key, 3)
    w_sq, b_sq = _init_linear(k1, dim, dim_out)          # (dim_out, dim)
    w_v, b_v = _init_linear(k2, dim_out, dim_visual)     # (dim_visual, dim_out)
    w_s, b_s = _init_linear(k3, dim_out, dim_skeleton)   # (dim_skeleton, dim_out)

    # Pre-transpose / split so kernels do plain x @ W; bf16 weights halve the
    # weight DMA bytes (f32 biases).
    wsq_t = w_sq.T                                       # (dim, dim_out)
    return (wsq_t[:dim_visual].astype(jnp.bfloat16),     # (dim_visual, dim_out)
            wsq_t[dim_visual:].astype(jnp.bfloat16),     # (dim_skeleton, dim_out)
            b_sq.reshape(1, dim_out),
            w_v.T.astype(jnp.bfloat16),                  # (dim_out, dim_visual)
            b_v.reshape(1, dim_visual),
            w_s.T.astype(jnp.bfloat16),                  # (dim_out, dim_skeleton)
            b_s.reshape(1, dim_skeleton))


class MMTNetPallas:
    """Pallas implementation of MMTNet's own computation: the 3 MMTM stages."""

    def __init__(self, key):
        k0, k1, k2 = jax.random.split(key, 3)
        self.mmtm0 = init_mmtm_params(k0, 512, 128, 4)
        self.mmtm1 = init_mmtm_params(k1, 1024, 256, 4)
        self.mmtm2 = init_mmtm_params(k2, 2048, 512, 4)

    def forward(self, fm2, out5, fm3, out7, final_fm, out8):
        # TODO(synk): visual/skeleton backbone stages between fusions are external.
        fm2_f, out5_f = mmtm_pallas(fm2, out5, self.mmtm0)
        fm3_f, out7_f = mmtm_pallas(fm3, out7, self.mmtm1)
        final_f, out8_f = mmtm_pallas(final_fm, out8, self.mmtm2)
        return (fm2_f, out5_f), (fm3_f, out7_f), (final_f, out8_f)


# ----------------------------------------------------------------------------
# Pure-JAX reference (same bf16-weight math) for a correctness sanity check.
# ----------------------------------------------------------------------------
def mmtm_ref(visual, skeleton, params):
    (wsq_v, wsq_s, bsq, wv, bv, ws, bs) = params
    b, cv = visual.shape[:2]
    _, cs = skeleton.shape[:2]
    sq_v = visual.reshape(b, cv, -1).astype(jnp.float32).mean(-1)
    sq_s = skeleton.reshape(b, cs, -1).astype(jnp.float32).mean(-1)
    exc = (jnp.dot(sq_v.astype(jnp.bfloat16), wsq_v, preferred_element_type=jnp.float32)
           + jnp.dot(sq_s.astype(jnp.bfloat16), wsq_s, preferred_element_type=jnp.float32)
           + bsq)
    exc = jnp.maximum(exc, 0.0).astype(jnp.bfloat16)
    vg = jax.nn.sigmoid(jnp.dot(exc, wv, preferred_element_type=jnp.float32) + bv)
    sg = jax.nn.sigmoid(jnp.dot(exc, ws, preferred_element_type=jnp.float32) + bs)
    vg = vg.reshape(vg.shape + (1,) * (visual.ndim - 2))
    sg = sg.reshape(sg.shape + (1,) * (skeleton.ndim - 2))
    vis_out = (visual.astype(jnp.float32) * vg).astype(visual.dtype)
    sk_out = (skeleton.astype(jnp.float32) * sg).astype(skeleton.dtype)
    return vis_out, sk_out


if __name__ == "__main__":
    key = jax.random.PRNGKey(0)
    net = MMTNetPallas(key)

    ks = jax.random.split(jax.random.PRNGKey(0), 8)
    # Small shapes consistent with the forward:
    #  mmtm0: visual layer2 fm (B, 512, T, H, W), skeleton conv5 out (B, 128, H, W)
    #  mmtm1: visual layer3 fm (B, 1024, T, H, W), skeleton conv6 out (B, 256, H, W)
    #  mmtm2: visual layer4 fm (B, 2048, T, H, W), skeleton fc7 out (B, 512)
    fm2 = jax.random.normal(ks[0], (2, 512, 2, 4, 4), jnp.float32)
    out5 = jax.random.normal(ks[1], (2, 128, 4, 4), jnp.float32)
    fm3 = jax.random.normal(ks[2], (2, 1024, 2, 2, 2), jnp.float32)
    out7 = jax.random.normal(ks[3], (2, 256, 2, 2), jnp.float32)
    final_fm = jax.random.normal(ks[4], (2, 2048, 1, 2, 2), jnp.float32)
    out8 = jax.random.normal(ks[5], (2, 512), jnp.float32)

    (fm2_f, out5_f), (fm3_f, out7_f), (final_f, out8_f) = net.forward(
        fm2, out5, fm3, out7, final_fm, out8)
    jax.block_until_ready((fm2_f, out5_f, fm3_f, out7_f, final_f, out8_f))

    # Sanity check (fused small-tensor path) against pure-JAX reference.
    for (v, s, p, vo, so) in [
        (fm2, out5, net.mmtm0, fm2_f, out5_f),
        (fm3, out7, net.mmtm1, fm3_f, out7_f),
        (final_fm, out8, net.mmtm2, final_f, out8_f),
    ]:
        rv, rs = mmtm_ref(v, s, p)
        assert jnp.allclose(vo, rv, atol=5e-3, rtol=5e-3)
        assert jnp.allclose(so, rs, atol=5e-3, rtol=5e-3)

    # Also exercise the tiled path: grid > 1, masked spatial tail in the squeeze,
    # overhanging (dropped) writes in the rescale.
    vt = jax.random.normal(ks[6], (2, 512, 200), jnp.float32)   # 200 = 128 + 72 tail
    st = jax.random.normal(ks[7], (2, 128, 75), jnp.float32)    # < 128 -> full tile
    vt_o, st_o = mmtm_pallas(vt, st, net.mmtm0, force_tiled=True, spatial_tile=128)
    jax.block_until_ready((vt_o, st_o))
    rv, rs = mmtm_ref(vt, st, net.mmtm0)
    assert jnp.allclose(vt_o, rv, atol=5e-3, rtol=5e-3)
    assert jnp.allclose(st_o, rs, atol=5e-3, rtol=5e-3)

    print("KERNEL_OK")
</pallas_src>

<mosaic_0001>
module attributes {stable_mosaic.version = 11 : i64} {
  func.func @_mmtm_small_kernel(%arg0: memref<2x512x32xf32, #tpu.memory_space<vmem>>, %arg1: memref<2x128x16xf32, #tpu.memory_space<vmem>>, %arg2: memref<512x320xbf16, #tpu.memory_space<vmem>>, %arg3: memref<128x320xbf16, #tpu.memory_space<vmem>>, %arg4: memref<1x320xf32, #tpu.memory_space<vmem>>, %arg5: memref<320x512xbf16, #tpu.memory_space<vmem>>, %arg6: memref<1x512xf32, #tpu.memory_space<vmem>>, %arg7: memref<320x128xbf16, #tpu.memory_space<vmem>>, %arg8: memref<1x128xf32, #tpu.memory_space<vmem>>, %arg9: memref<2x512x32xf32, #tpu.memory_space<vmem>>, %arg10: memref<2x128x16xf32, #tpu.memory_space<vmem>>) attributes {dimension_semantics = [], scalar_prefetch = 0 : i64, scratch_operands = 0 : i64, tpu.core_type = #tpu.core_type<tc>} {
    %c0 = arith.constant 0 : index
    %c0_0 = arith.constant 0 : index
    %c0_1 = arith.constant 0 : index
    %0 = vector.load %arg0[%c0, %c0_0, %c0_1] : memref<2x512x32xf32, #tpu.memory_space<vmem>>, vector<2x512x32xf32>
    %c0_2 = arith.constant 0 : index
    %c0_3 = arith.constant 0 : index
    %c0_4 = arith.constant 0 : index
    %1 = vector.load %arg1[%c0_2, %c0_3, %c0_4] : memref<2x128x16xf32, #tpu.memory_space<vmem>>, vector<2x128x16xf32>
    %cst = arith.constant dense<0.000000e+00> : vector<2x512xf32>
    %2 = vector.multi_reduction <add>, %0, %cst [2] : vector<2x512x32xf32> to vector<2x512xf32>
    %cst_5 = arith.constant 3.200000e+01 : f32
    %3 = vector.broadcast %cst_5 : f32 to vector<2x512xf32>
    %4 = arith.divf %2, %3 : vector<2x512xf32>
    %5 = arith.truncf %4 : vector<2x512xf32> to vector<2x512xbf16>
    %cst_6 = arith.constant dense<0.000000e+00> : vector<2x128xf32>
    %6 = vector.multi_reduction <add>, %1, %cst_6 [2] : vector<2x128x16xf32> to vector<2x128xf32>
    %cst_7 = arith.constant 1.600000e+01 : f32
    %7 = vector.broadcast %cst_7 : f32 to vector<2x128xf32>
    %8 = arith.divf %6, %7 : vector<2x128xf32>
    %9 = arith.truncf %8 : vector<2x128xf32> to vector<2x128xbf16>
    %c0_8 = arith.constant 0 : index
    %c0_9 = arith.constant 0 : index
    %10 = vector.load %arg2[%c0_8, %c0_9] : memref<512x320xbf16, #tpu.memory_space<vmem>>, vector<512x320xbf16>
    %c0_10 = arith.constant 0 : index
    %c0_11 = arith.constant 0 : index
    %11 = vector.load %arg3[%c0_10, %c0_11] : memref<128x320xbf16, #tpu.memory_space<vmem>>, vector<128x320xbf16>
    %c0_12 = arith.constant 0 : index
    %c0_13 = arith.constant 0 : index
    %12 = vector.load %arg4[%c0_12, %c0_13] : memref<1x320xf32, #tpu.memory_space<vmem>>, vector<1x320xf32>
    %c0_14 = arith.constant 0 : index
    %c0_15 = arith.constant 0 : index
    %13 = vector.load %arg5[%c0_14, %c0_15] : memref<320x512xbf16, #tpu.memory_space<vmem>>, vector<320x512xbf16>
    %c0_16 = arith.constant 0 : index
    %c0_17 = arith.constant 0 : index
    %14 = vector.load %arg6[%c0_16, %c0_17] : memref<1x512xf32, #tpu.memory_space<vmem>>, vector<1x512xf32>
    %c0_18 = arith.constant 0 : index
    %c0_19 = arith.constant 0 : index
    %15 = vector.load %arg7[%c0_18, %c0_19] : memref<320x128xbf16, #tpu.memory_space<vmem>>, vector<320x128xbf16>
    %c0_20 = arith.constant 0 : index
    %c0_21 = arith.constant 0 : index
    %16 = vector.load %arg8[%c0_20, %c0_21] : memref<1x128xf32, #tpu.memory_space<vmem>>, vector<1x128xf32>
    %cst_22 = arith.constant dense<0.000000e+00> : vector<2x320xf32>
    %17 = tpu.matmul %5, %10, %cst_22 {dimension_numbers = #tpu.dot_dimension_numbers<[1], [0], [0], [1], [0, 0, 1, 1], [], []>} : vector<2x512xbf16>, vector<512x320xbf16>, vector<2x320xf32> -> vector<2x320xf32>
    %cst_23 = arith.constant dense<0.000000e+00> : vector<2x320xf32>
    %18 = tpu.matmul %9, %11, %cst_23 {dimension_numbers = #tpu.dot_dimension_numbers<[1], [0], [0], [1], [0, 0, 1, 1], [], []>} : vector<2x128xbf16>, vector<128x320xbf16>, vector<2x320xf32> -> vector<2x320xf32>
    %19 = arith.addf %17, %18 : vector<2x320xf32>
    %20 = vector.broadcast %12 : vector<1x320xf32> to vector<2x320xf32>
    %21 = arith.addf %19, %20 : vector<2x320xf32>
    %cst_24 = arith.constant 0.000000e+00 : f32
    %22 = vector.broadcast %cst_24 : f32 to vector<2x320xf32>
    %23 = arith.maximumf %21, %22 : vector<2x320xf32>
    %24 = arith.truncf %23 : vector<2x320xf32> to vector<2x320xbf16>
    %cst_25 = arith.constant dense<0.000000e+00> : vector<2x512xf32>
    %25 = tpu.matmul %24, %13, %cst_25 {dimension_numbers = #tpu.dot_dimension_numbers<[1], [0], [0], [1], [0, 0, 1, 1], [], []>} : vector<2x320xbf16>, vector<320x512xbf16>, vector<2x512xf32> -> vector<2x512xf32>
    %26 = vector.broadcast %14 : vector<1x512xf32> to vector<2x512xf32>
    %27 = arith.addf %25, %26 : vector<2x512xf32>
    %28 = arith.negf %27 : vector<2x512xf32>
    %29 = math.exp %28 : vector<2x512xf32>
    %cst_26 = arith.constant 1.000000e+00 : f32
    %30 = vector.broadcast %cst_26 : f32 to vector<2x512xf32>
    %31 = arith.addf %30, %29 : vector<2x512xf32>
    %32 = arith.divf %30, %31 : vector<2x512xf32>
    %cst_27 = arith.constant dense<0.000000e+00> : vector<2x128xf32>
    %33 = tpu.matmul %24, %15, %cst_27 {dimension_numbers = #tpu.dot_dimension_numbers<[1], [0], [0], [1], [0, 0, 1, 1], [], []>} : vector<2x320xbf16>, vector<320x128xbf16>, vector<2x128xf32> -> vector<2x128xf32>
    %34 = vector.broadcast %16 : vector<1x128xf32> to vector<2x128xf32>
    %35 = arith.addf %33, %34 : vector<2x128xf32>
    %36 = arith.negf %35 : vector<2x128xf32>
    %37 = math.exp %36 : vector<2x128xf32>
    %cst_28 = arith.constant 1.000000e+00 : f32
    %38 = vector.broadcast %cst_28 : f32 to vector<2x128xf32>
    %39 = arith.addf %38, %37 : vector<2x128xf32>
    %40 = arith.divf %38, %39 : vector<2x128xf32>
    %41 = vector.shape_cast %32 : vector<2x512xf32> to vector<2x512x1xf32>
    %42 = vector.broadcast %41 : vector<2x512x1xf32> to vector<2x512x32xf32>
    %43 = arith.mulf %0, %42 : vector<2x512x32xf32>
    %c0_29 = arith.constant 0 : index
    %c0_30 = arith.constant 0 : index
    %c0_31 = arith.constant 0 : index
    %44 = vector.load %arg9[%c0_29, %c0_30, %c0_31] : memref<2x512x32xf32, #tpu.memory_space<vmem>>, vector<2x512x32xf32>
    tpu.vector_store %arg9[%c0_29, %c0_30, %c0_31], %43 {strides = array<i32>} : memref<2x512x32xf32, #tpu.memory_space<vmem>>, vector<2x512x32xf32>,
    %45 = vector.shape_cast %40 : vector<2x128xf32> to vector<2x128x1xf32>
    %46 = vector.broadcast %45 : vector<2x128x1xf32> to vector<2x128x16xf32>
    %47 = arith.mulf %1, %46 : vector<2x128x16xf32>
    %c0_32 = arith.constant 0 : index
    %c0_33 = arith.constant 0 : index
    %c0_34 = arith.constant 0 : index
    %48 = vector.load %arg10[%c0_32, %c0_33, %c0_34] : memref<2x128x16xf32, #tpu.memory_space<vmem>>, vector<2x128x16xf32>
    tpu.vector_store %arg10[%c0_32, %c0_33, %c0_34], %47 {strides = array<i32>} : memref<2x128x16xf32, #tpu.memory_space<vmem>>, vector<2x128x16xf32>,
    return
  }
}

</mosaic_0001>

<llo_original>
// kernel: tpu_custom_call.1
$region0: #{tpu_custom_call.1}
  #allocation0 [shape = 'u32[]', space=smem, size = 0x4, offset = 0x4, fixed_abs, tag = 'smem constant byte address 0x4 - core index']
  #allocation1 [shape = 'u32[144,128]{1,0:T(1,128)}', space=vmem, size = 0x12000, scoped, tag = 'internal scratch']
  %s0 = inlined_call_operand.vmem [shape: f32[2,512,32], index: 0, kind: input, shape index: {}]
  %s1 = inlined_call_operand.vmem [shape: f32[2,128,16], index: 1, kind: input, shape index: {}]
  %s2 = inlined_call_operand.vmem [shape: bf16[512,320], index: 2, kind: input, shape index: {}]
  %s3 = inlined_call_operand.vmem [shape: bf16[128,320], index: 3, kind: input, shape index: {}]
  %s4 = inlined_call_operand.vmem [shape: f32[1,320], index: 4, kind: input, shape index: {}]
  %s5 = inlined_call_operand.vmem [shape: bf16[320,512], index: 5, kind: input, shape index: {}]
  %s6 = inlined_call_operand.vmem [shape: f32[1,512], index: 6, kind: input, shape index: {}]
  %s7 = inlined_call_operand.vmem [shape: bf16[320,128], index: 7, kind: input, shape index: {}]
  %s8 = inlined_call_operand.vmem [shape: f32[1,128], index: 8, kind: input, shape index: {}]
  %s9 = inlined_call_operand.vmem [shape: f32[2,512,32], index: 9, kind: output, shape index: {0}]
  %s10 = inlined_call_operand.vmem [shape: f32[2,128,16], index: 10, kind: output, shape index: {1}]
  %11 = xla_tuple %s9, %s10
  %s12 = sld [smem:[#allocation0]]
  $region54: #{tpu_custom_call.1} parent=0
    _
  %s14 = ssub.s32 1, %s12
  %s15 = scalar_select 0, %s14, %s12
  // Predicated region
  $region2: #{tpu_custom_call.1} parent=0 // pred_check
    _
  $region3: #{tpu_custom_call.1} parent=0 // pred_check_branch
    %17 = sbr.rel (0) target = $region5
  $region4: #{tpu_custom_call.1} parent=0 // pred_region
    _
  $region5: #{tpu_custom_call.1} parent=0 // pred_fallthru
    _
  // Predicated region
  $region6: #{tpu_custom_call.1} parent=0 // pred_check
    _
  $region7: #{tpu_custom_call.1} parent=0 // pred_check_branch
    %19 = sbr.rel (0) target = $region9
  $region8: #{tpu_custom_call.1} parent=0 // pred_region
    _
  $region9: #{tpu_custom_call.1} parent=0 // pred_fallthru
    _
  // Predicated region
  $region10: #{tpu_custom_call.1} parent=0 // pred_check
    _
  $region11: #{tpu_custom_call.1} parent=0 // pred_check_branch
    %21 = sbr.rel (0) target = $region13
  $region12: #{tpu_custom_call.1} parent=0 // pred_region
    _
  $region13: #{tpu_custom_call.1} parent=0 // pred_fallthru
    _
  // Predicated region
  $region14: #{tpu_custom_call.1} parent=0 // pred_check
    _
  $region15: #{tpu_custom_call.1} parent=0 // pred_check_branch
    %23 = sbr.rel (0) target = $region17
  $region16: #{tpu_custom_call.1} parent=0 // pred_region
    _
  $region17: #{tpu_custom_call.1} parent=0 // pred_fallthru
    _
  // Predicated region
  $region18: #{tpu_custom_call.1} parent=0 // pred_check
    _
  $region19: #{tpu_custom_call.1} parent=0 // pred_check_branch
    %25 = sbr.rel (0) target = $region21
  $region20: #{tpu_custom_call.1} parent=0 // pred_region
    _
  $region21: #{tpu_custom_call.1} parent=0 // pred_fallthru
    _
  // Predicated region
  $region22: #{tpu_custom_call.1} parent=0 // pred_check
    _
  $region23: #{tpu_custom_call.1} parent=0 // pred_check_branch
    %27 = sbr.rel (0) target = $region25
  $region24: #{tpu_custom_call.1} parent=0 // pred_region
    _
  $region25: #{tpu_custom_call.1} parent=0 // pred_fallthru
    _
  // Predicated region
  $region26: #{tpu_custom_call.1} parent=0 // pred_check
    _
  $region27: #{tpu_custom_call.1} parent=0 // pred_check_branch
    %29 = sbr.rel (0) target = $region29
  $region28: #{tpu_custom_call.1} parent=0 // pred_region
    _
  $region29: #{tpu_custom_call.1} parent=0 // pred_fallthru
    _
  // Predicated region
  $region30: #{tpu_custom_call.1} parent=0 // pred_check
    _
  $region31: #{tpu_custom_call.1} parent=0 // pred_check_branch
    %31 = sbr.rel (0) target = $region33
  $region32: #{tpu_custom_call.1} parent=0 // pred_region
    _
  $region33: #{tpu_custom_call.1} parent=0 // pred_fallthru
    _
  // Predicated region
  $region34: #{tpu_custom_call.1} parent=0 // pred_check
    _
  $region35: #{tpu_custom_call.1} parent=0 // pred_check_branch
    %33 = sbr.rel (0) target = $region37
  $region36: #{tpu_custom_call.1} parent=0 // pred_region
    _
  $region37: #{tpu_custom_call.1} parent=0 // pred_fallthru
    _
  %v35 = vld [vmem:[%s0] sm:$0xff]
  %v36 = vld [vmem:[%s0 + $0x8] sm:$0xff]
  %v37 = vld [vmem:[%s0 + $0x10] sm:$0xff]
  %v38 = vld [vmem:[%s0 + $0x18] sm:$0xff]
  %v39 = vld [vmem:[%s0 + $0x20] sm:$0xff]
  %v40 = vld [vmem:[%s0 + $0x28] sm:$0xff]
  %v41 = vld [vmem:[%s0 + $0x30] sm:$0xff]
  %v42 = vld [vmem:[%s0 + $0x38] sm:$0xff]
  %v43 = vld [vmem:[%s0 + $0x40] sm:$0xff]
  %v44 = vld [vmem:[%s0 + $0x48] sm:$0xff]
  %v45 = vld [vmem:[%s0 + $0x50] sm:$0xff]
  %v46 = vld [vmem:[%s0 + $0x58] sm:$0xff]
  %v47 = vld [vmem:[%s0 + $0x60] sm:$0xff]
  %v48 = vld [vmem:[%s0 + $0x68] sm:$0xff]
  %v49 = vld [vmem:[%s0 + $0x70] sm:$0xff]
  %v50 = vld [vmem:[%s0 + $0x78] sm:$0xff]
  %v51 = vld [vmem:[%s0 + $0x80] sm:$0xff]
  %v52 = vld [vmem:[%s0 + $0x88] sm:$0xff]
  %v53 = vld [vmem:[%s0 + $0x90] sm:$0xff]
  %v54 = vld [vmem:[%s0 + $0x98] sm:$0xff]
  %v55 = vld [vmem:[%s0 + $0xa0] sm:$0xff]
  %v56 = vld [vmem:[%s0 + $0xa8] sm:$0xff]
  %v57 = vld [vmem:[%s0 + $0xb0] sm:$0xff]
  %v58 = vld [vmem:[%s0 + $0xb8] sm:$0xff]
  %v59 = vld [vmem:[%s0 + $0xc0] sm:$0xff]
  %v60 = vld [vmem:[%s0 + $0xc8] sm:$0xff]
  %v61 = vld [vmem:[%s0 + $0xd0] sm:$0xff]
  %v62 = vld [vmem:[%s0 + $0xd8] sm:$0xff]
  %v63 = vld [vmem:[%s0 + $0xe0] sm:$0xff]
  %v64 = vld [vmem:[%s0 + $0xe8] sm:$0xff]
  %v65 = vld [vmem:[%s0 + $0xf0] sm:$0xff]
  %v66 = vld [vmem:[%s0 + $0xf8] sm:$0xff]
  %v67 = vld [vmem:[%s0 + $0x100] sm:$0xff]
  %v68 = vld [vmem:[%s0 + $0x108] sm:$0xff]
  %v69 = vld [vmem:[%s0 + $0x110] sm:$0xff]
  %v70 = vld [vmem:[%s0 + $0x118] sm:$0xff]
  %v71 = vld [vmem:[%s0 + $0x120] sm:$0xff]
  %v72 = vld [vmem:[%s0 + $0x128] sm:$0xff]
  %v73 = vld [vmem:[%s0 + $0x130] sm:$0xff]
  %v74 = vld [vmem:[%s0 + $0x138] sm:$0xff]
  %v75 = vld [vmem:[%s0 + $0x140] sm:$0xff]
  %v76 = vld [vmem:[%s0 + $0x148] sm:$0xff]
  %v77 = vld [vmem:[%s0 + $0x150] sm:$0xff]
  %v78 = vld [vmem:[%s0 + $0x158] sm:$0xff]
  %v79 = vld [vmem:[%s0 + $0x160] sm:$0xff]
  %v80 = vld [vmem:[%s0 + $0x168] sm:$0xff]
  %v81 = vld [vmem:[%s0 + $0x170] sm:$0xff]
  %v82 = vld [vmem:[%s0 + $0x178] sm:$0xff]
  %v83 = vld [vmem:[%s0 + $0x180] sm:$0xff]
  %v84 = vld [vmem:[%s0 + $0x188] sm:$0xff]
  %v85 = vld [vmem:[%s0 + $0x190] sm:$0xff]
  %v86 = vld [vmem:[%s0 + $0x198] sm:$0xff]
  %v87 = vld [vmem:[%s0 + $0x1a0] sm:$0xff]
  %v88 = vld [vmem:[%s0 + $0x1a8] sm:$0xff]
  %v89 = vld [vmem:[%s0 + $0x1b0] sm:$0xff]
  %v90 = vld [vmem:[%s0 + $0x1b8] sm:$0xff]
  %v91 = vld [vmem:[%s0 + $0x1c0] sm:$0xff]
  %v92 = vld [vmem:[%s0 + $0x1c8] sm:$0xff]
  %v93 = vld [vmem:[%s0 + $0x1d0] sm:$0xff]
  %v94 = vld [vmem:[%s0 + $0x1d8] sm:$0xff]
  %v95 = vld [vmem:[%s0 + $0x1e0] sm:$0xff]
  %v96 = vld [vmem:[%s0 + $0x1e8] sm:$0xff]
  %v97 = vld [vmem:[%s0 + $0x1f0] sm:$0xff]
  %v98 = vld [vmem:[%s0 + $0x1f8] sm:$0xff]
  %v99 = vld [vmem:[%s0 + $0x200] sm:$0xff]
  %v100 = vld [vmem:[%s0 + $0x208] sm:$0xff]
  %v101 = vld [vmem:[%s0 + $0x210] sm:$0xff]
  %v102 = vld [vmem:[%s0 + $0x218] sm:$0xff]
  %v103 = vld [vmem:[%s0 + $0x220] sm:$0xff]
  %v104 = vld [vmem:[%s0 + $0x228] sm:$0xff]
  %v105 = vld [vmem:[%s0 + $0x230] sm:$0xff]
  %v106 = vld [vmem:[%s0 + $0x238] sm:$0xff]
  %v107 = vld [vmem:[%s0 + $0x240] sm:$0xff]
  %v108 = vld [vmem:[%s0 + $0x248] sm:$0xff]
  %v109 = vld [vmem:[%s0 + $0x250] sm:$0xff]
  %v110 = vld [vmem:[%s0 + $0x258] sm:$0xff]
  %v111 = vld [vmem:[%s0 + $0x260] sm:$0xff]
  %v112 = vld [vmem:[%s0 + $0x268] sm:$0xff]
  %v113 = vld [vmem:[%s0 + $0x270] sm:$0xff]
  %v114 = vld [vmem:[%s0 + $0x278] sm:$0xff]
  %v115 = vld [vmem:[%s0 + $0x280] sm:$0xff]
  %v116 = vld [vmem:[%s0 + $0x288] sm:$0xff]
  %v117 = vld [vmem:[%s0 + $0x290] sm:$0xff]
  %v118 = vld [vmem:[%s0 + $0x298] sm:$0xff]
  %v119 = vld [vmem:[%s0 + $0x2a0] sm:$0xff]
  %v120 = vld [vmem:[%s0 + $0x2a8] sm:$0xff]
  %v121 = vld [vmem:[%s0 + $0x2b0] sm:$0xff]
  %v122 = vld [vmem:[%s0 + $0x2b8] sm:$0xff]
  %v123 = vld [vmem:[%s0 + $0x2c0] sm:$0xff]
  %v124 = vld [vmem:[%s0 + $0x2c8] sm:$0xff]
  %v125 = vld [vmem:[%s0 + $0x2d0] sm:$0xff]
  %v126 = vld [vmem:[%s0 + $0x2d8] sm:$0xff]
  %v127 = vld [vmem:[%s0 + $0x2e0] sm:$0xff]
  %v128 = vld [vmem:[%s0 + $0x2e8] sm:$0xff]
  %v129 = vld [vmem:[%s0 + $0x2f0] sm:$0xff]
  %v130 = vld [vmem:[%s0 + $0x2f8] sm:$0xff]
  %v131 = vld [vmem:[%s0 + $0x300] sm:$0xff]
  %v132 = vld [vmem:[%s0 + $0x308] sm:$0xff]
  %v133 = vld [vmem:[%s0 + $0x310] sm:$0xff]
  %v134 = vld [vmem:[%s0 + $0x318] sm:$0xff]
  %v135 = vld [vmem:[%s0 + $0x320] sm:$0xff]
  %v136 = vld [vmem:[%s0 + $0x328] sm:$0xff]
  %v137 = vld [vmem:[%s0 + $0x330] sm:$0xff]
  %v138 = vld [vmem:[%s0 + $0x338] sm:$0xff]
  %v139 = vld [vmem:[%s0 + $0x340] sm:$0xff]
  %v140 = vld [vmem:[%s0 + $0x348] sm:$0xff]
  %v141 = vld [vmem:[%s0 + $0x350] sm:$0xff]
  %v142 = vld [vmem:[%s0 + $0x358] sm:$0xff]
  %v143 = vld [vmem:[%s0 + $0x360] sm:$0xff]
  %v144 = vld [vmem:[%s0 + $0x368] sm:$0xff]
  %v145 = vld [vmem:[%s0 + $0x370] sm:$0xff]
  %v146 = vld [vmem:[%s0 + $0x378] sm:$0xff]
  %v147 = vld [vmem:[%s0 + $0x380] sm:$0xff]
  %v148 = vld [vmem:[%s0 + $0x388] sm:$0xff]
  %v149 = vld [vmem:[%s0 + $0x390] sm:$0xff]
  %v150 = vld [vmem:[%s0 + $0x398] sm:$0xff]
  %v151 = vld [vmem:[%s0 + $0x3a0] sm:$0xff]
  %v152 = vld [vmem:[%s0 + $0x3a8] sm:$0xff]
  %v153 = vld [vmem:[%s0 + $0x3b0] sm:$0xff]
  %v154 = vld [vmem:[%s0 + $0x3b8] sm:$0xff]
  %v155 = vld [vmem:[%s0 + $0x3c0] sm:$0xff]
  %v156 = vld [vmem:[%s0 + $0x3c8] sm:$0xff]
  %v157 = vld [vmem:[%s0 + $0x3d0] sm:$0xff]
  %v158 = vld [vmem:[%s0 + $0x3d8] sm:$0xff]
  %v159 = vld [vmem:[%s0 + $0x3e0] sm:$0xff]
  %v160 = vld [vmem:[%s0 + $0x3e8] sm:$0xff]
  %v161 = vld [vmem:[%s0 + $0x3f0] sm:$0xff]
  %v162 = vld [vmem:[%s0 + $0x3f8] sm:$0xff]
  %v163 = vld [vmem:[%s1] sm:$0xff]
  %v164 = vld [vmem:[%s1 + $0x8] sm:$0xff]
  %v165 = vld [vmem:[%s1 + $0x10] sm:$0xff]
  %v166 = vld [vmem:[%s1 + $0x18] sm:$0xff]
  %v167 = vld [vmem:[%s1 + $0x20] sm:$0xff]
  %v168 = vld [vmem:[%s1 + $0x28] sm:$0xff]
  %v169 = vld [vmem:[%s1 + $0x30] sm:$0xff]
  %v170 = vld [vmem:[%s1 + $0x38] sm:$0xff]
  %v171 = vld [vmem:[%s1 + $0x40] sm:$0xff]
  %v172 = vld [vmem:[%s1 + $0x48] sm:$0xff]
  %v173 = vld [vmem:[%s1 + $0x50] sm:$0xff]
  %v174 = vld [vmem:[%s1 + $0x58] sm:$0xff]
  %v175 = vld [vmem:[%s1 + $0x60] sm:$0xff]
  %v176 = vld [vmem:[%s1 + $0x68] sm:$0xff]
  %v177 = vld [vmem:[%s1 + $0x70] sm:$0xff]
  %v178 = vld [vmem:[%s1 + $0x78] sm:$0xff]
  %v179 = vld [vmem:[%s1 + $0x80] sm:$0xff]
  %v180 = vld [vmem:[%s1 + $0x88] sm:$0xff]
  %v181 = vld [vmem:[%s1 + $0x90] sm:$0xff]
  %v182 = vld [vmem:[%s1 + $0x98] sm:$0xff]
  %v183 = vld [vmem:[%s1 + $0xa0] sm:$0xff]
  %v184 = vld [vmem:[%s1 + $0xa8] sm:$0xff]
  %v185 = vld [vmem:[%s1 + $0xb0] sm:$0xff]
  %v186 = vld [vmem:[%s1 + $0xb8] sm:$0xff]
  %v187 = vld [vmem:[%s1 + $0xc0] sm:$0xff]
  %v188 = vld [vmem:[%s1 + $0xc8] sm:$0xff]
  %v189 = vld [vmem:[%s1 + $0xd0] sm:$0xff]
  %v190 = vld [vmem:[%s1 + $0xd8] sm:$0xff]
  %v191 = vld [vmem:[%s1 + $0xe0] sm:$0xff]
  %v192 = vld [vmem:[%s1 + $0xe8] sm:$0xff]
  %v193 = vld [vmem:[%s1 + $0xf0] sm:$0xff]
  %v194 = vld [vmem:[%s1 + $0xf8] sm:$0xff]
  %vm195 = vcmask 261120
  %v196 = vsel %vm195, %v35, 0.0
  %197 = vadd.xlane.f32.xlu0 %v196
  %v198 = vpop.xlane.xlu0 %197
  %v199 = vsel %vm195, %v36, 0.0
  %200 = vadd.xlane.f32.xlu0 %v199
  %v201 = vpop.xlane.xlu0 %200
  %v202 = vsel %vm195, %v37, 0.0
  %203 = vadd.xlane.f32.xlu0 %v202
  %v204 = vpop.xlane.xlu0 %203
  %v205 = vsel %vm195, %v38, 0.0
  %206 = vadd.xlane.f32.xlu0 %v205
  %v207 = vpop.xlane.xlu0 %206
  %v208 = vsel %vm195, %v39, 0.0
  %209 = vadd.xlane.f32.xlu0 %v208
  %v210 = vpop.xlane.xlu0 %209
  %v211 = vsel %vm195, %v40, 0.0
  %212 = vadd.xlane.f32.xlu0 %v211
  %v213 = vpop.xlane.xlu0 %212
  %v214 = vsel %vm195, %v41, 0.0
  %215 = vadd.xlane.f32.xlu0 %v214
  %v216 = vpop.xlane.xlu0 %215
  %v217 = vsel %vm195, %v42, 0.0
  %218 = vadd.xlane.f32.xlu0 %v217
  %v219 = vpop.xlane.xlu0 %218
  %v220 = vsel %vm195, %v43, 0.0
  %221 = vadd.xlane.f32.xlu0 %v220
  %v222 = vpop.xlane.xlu0 %221
  %v223 = vsel %vm195, %v44, 0.0
  %224 = vadd.xlane.f32.xlu0 %v223
  %v225 = vpop.xlane.xlu0 %224
  %v226 = vsel %vm195, %v45, 0.0
  %227 = vadd.xlane.f32.xlu0 %v226
  %v228 = vpop.xlane.xlu0 %227
  %v229 = vsel %vm195, %v46, 0.0
  %230 = vadd.xlane.f32.xlu0 %v229
  %v231 = vpop.xlane.xlu0 %230
  %v232 = vsel %vm195, %v47, 0.0
  %233 = vadd.xlane.f32.xlu0 %v232
  %v234 = vpop.xlane.xlu0 %233
  %v235 = vsel %vm195, %v48, 0.0
  %236 = vadd.xlane.f32.xlu0 %v235
  %v237 = vpop.xlane.xlu0 %236
  %v238 = vsel %vm195, %v49, 0.0
  %239 = vadd.xlane.f32.xlu0 %v238
  %v240 = vpop.xlane.xlu0 %239
  %v241 = vsel %vm195, %v50, 0.0
  %242 = vadd.xlane.f32.xlu0 %v241
  %v243 = vpop.xlane.xlu0 %242
  %v244 = vsel %vm195, %v51, 0.0
  %245 = vadd.xlane.f32.xlu0 %v244
  %v246 = vpop.xlane.xlu0 %245
  %v247 = vsel %vm195, %v52, 0.0
  %248 = vadd.xlane.f32.xlu0 %v247
  %v249 = vpop.xlane.xlu0 %248
  %v250 = vsel %vm195, %v53, 0.0
  %251 = vadd.xlane.f32.xlu0 %v250
  %v252 = vpop.xlane.xlu0 %251
  %v253 = vsel %vm195, %v54, 0.0
  %254 = vadd.xlane.f32.xlu0 %v253
  %v255 = vpop.xlane.xlu0 %254
  %v256 = vsel %vm195, %v55, 0.0
  %257 = vadd.xlane.f32.xlu0 %v256
  %v258 = vpop.xlane.xlu0 %257
  %v259 = vsel %vm195, %v56, 0.0
  %260 = vadd.xlane.f32.xlu0 %v259
  %v261 = vpop.xlane.xlu0 %260
  %v262 = vsel %vm195, %v57, 0.0
  %263 = vadd.xlane.f32.xlu0 %v262
  %v264 = vpop.xlane.xlu0 %263
  %v265 = vsel %vm195, %v58, 0.0
  %266 = vadd.xlane.f32.xlu0 %v265
  %v267 = vpop.xlane.xlu0 %266
  %v268 = vsel %vm195, %v59, 0.0
  %269 = vadd.xlane.f32.xlu0 %v268
  %v270 = vpop.xlane.xlu0 %269
  %v271 = vsel %vm195, %v60, 0.0
  %272 = vadd.xlane.f32.xlu0 %v271
  %v273 = vpop.xlane.xlu0 %272
  %v274 = vsel %vm195, %v61, 0.0
  %275 = vadd.xlane.f32.xlu0 %v274
  %v276 = vpop.xlane.xlu0 %275
  %v277 = vsel %vm195, %v62, 0.0
  %278 = vadd.xlane.f32.xlu0 %v277
  %v279 = vpop.xlane.xlu0 %278
  %v280 = vsel %vm195, %v63, 0.0
  %281 = vadd.xlane.f32.xlu0 %v280
  %v282 = vpop.xlane.xlu0 %281
  %v283 = vsel %vm195, %v64, 0.0
  %284 = vadd.xlane.f32.xlu0 %v283
  %v285 = vpop.xlane.xlu0 %284
  %v286 = vsel %vm195, %v65, 0.0
  %287 = vadd.xlane.f32.xlu0 %v286
  %v288 = vpop.xlane.xlu0 %287
  %v289 = vsel %vm195, %v66, 0.0
  %290 = vadd.xlane.f32.xlu0 %v289
  %v291 = vpop.xlane.xlu0 %290
  %v292 = vsel %vm195, %v67, 0.0
  %293 = vadd.xlane.f32.xlu0 %v292
  %v294 = vpop.xlane.xlu0 %293
  %v295 = vsel %vm195, %v68, 0.0
  %296 = vadd.xlane.f32.xlu0 %v295
  %v297 = vpop.xlane.xlu0 %296
  %v298 = vsel %vm195, %v69, 0.0
  %299 = vadd.xlane.f32.xlu0 %v298
  %v300 = vpop.xlane.xlu0 %299
  %v301 = vsel %vm195, %v70, 0.0
  %302 = vadd.xlane.f32.xlu0 %v301
  %v303 = vpop.xlane.xlu0 %302
  %v304 = vsel %vm195, %v71, 0.0
  %305 = vadd.xlane.f32.xlu0 %v304
  %v306 = vpop.xlane.xlu0 %305
  %v307 = vsel %vm195, %v72, 0.0
  %308 = vadd.xlane.f32.xlu0 %v307
  %v309 = vpop.xlane.xlu0 %308
  %v310 = vsel %vm195, %v73, 0.0
  %311 = vadd.xlane.f32.xlu0 %v310
  %v312 = vpop.xlane.xlu0 %311
  %v313 = vsel %vm195, %v74, 0.0
  %314 = vadd.xlane.f32.xlu0 %v313
  %v315 = vpop.xlane.xlu0 %314
  %v316 = vsel %vm195, %v75, 0.0
  %317 = vadd.xlane.f32.xlu0 %v316
  %v318 = vpop.xlane.xlu0 %317
  %v319 = vsel %vm195, %v76, 0.0
  %320 = vadd.xlane.f32.xlu0 %v319
  %v321 = vpop.xlane.xlu0 %320
  %v322 = vsel %vm195, %v77, 0.0
  %323 = vadd.xlane.f32.xlu0 %v322
  %v324 = vpop.xlane.xlu0 %323
  %v325 = vsel %vm195, %v78, 0.0
  %326 = vadd.xlane.f32.xlu0 %v325
  %v327 = vpop.xlane.xlu0 %326
  %v328 = vsel %vm195, %v79, 0.0
  %329 = vadd.xlane.f32.xlu0 %v328
  %v330 = vpop.xlane.xlu0 %329
  %v331 = vsel %vm195, %v80, 0.0
  %332 = vadd.xlane.f32.xlu0 %v331
  %v333 = vpop.xlane.xlu0 %332
  %v334 = vsel %vm195, %v81, 0.0
  %335 = vadd.xlane.f32.xlu0 %v334
  %v336 = vpop.xlane.xlu0 %335
  %v337 = vsel %vm195, %v82, 0.0
  %338 = vadd.xlane.f32.xlu0 %v337
  %v339 = vpop.xlane.xlu0 %338
  %v340 = vsel %vm195, %v83, 0.0
  %341 = vadd.xlane.f32.xlu0 %v340
  %v342 = vpop.xlane.xlu0 %341
  %v343 = vsel %vm195, %v84, 0.0
  %344 = vadd.xlane.f32.xlu0 %v343
  %v345 = vpop.xlane.xlu0 %344
  %v346 = vsel %vm195, %v85, 0.0
  %347 = vadd.xlane.f32.xlu0 %v346
  %v348 = vpop.xlane.xlu0 %347
  %v349 = vsel %vm195, %v86, 0.0
  %350 = vadd.xlane.f32.xlu0 %v349
  %v351 = vpop.xlane.xlu0 %350
  %v352 = vsel %vm195, %v87, 0.0
  %353 = vadd.xlane.f32.xlu0 %v352
  %v354 = vpop.xlane.xlu0 %353
  %v355 = vsel %vm195, %v88, 0.0
  %356 = vadd.xlane.f32.xlu0 %v355
  %v357 = vpop.xlane.xlu0 %356
  %v358 = vsel %vm195, %v89, 0.0
  %359 = vadd.xlane.f32.xlu0 %v358
  %v360 = vpop.xlane.xlu0 %359
  %v361 = vsel %vm195, %v90, 0.0
  %362 = vadd.xlane.f32.xlu0 %v361
  %v363 = vpop.xlane.xlu0 %362
  %v364 = vsel %vm195, %v91, 0.0
  %365 = vadd.xlane.f32.xlu0 %v364
  %v366 = vpop.xlane.xlu0 %365
  %v367 = vsel %vm195, %v92, 0.0
  %368 = vadd.xlane.f32.xlu0 %v367
  %v369 = vpop.xlane.xlu0 %368
  %v370 = vsel %vm195, %v93, 0.0
  %371 = vadd.xlane.f32.xlu0 %v370
  %v372 = vpop.xlane.xlu0 %371
  %v373 = vsel %vm195, %v94, 0.0
  %374 = vadd.xlane.f32.xlu0 %v373
  %v375 = vpop.xlane.xlu0 %374
  %v376 = vsel %vm195, %v95, 0.0
  %377 = vadd.xlane.f32.xlu0 %v376
  %v378 = vpop.xlane.xlu0 %377
  %v379 = vsel %vm195, %v96, 0.0
  %380 = vadd.xlane.f32.xlu0 %v379
  %v381 = vpop.xlane.xlu0 %380
  %v382 = vsel %vm195, %v97, 0.0
  %383 = vadd.xlane.f32.xlu0 %v382
  %v384 = vpop.xlane.xlu0 %383
  %v385 = vsel %vm195, %v98, 0.0
  %386 = vadd.xlane.f32.xlu0 %v385
  %v387 = vpop.xlane.xlu0 %386
  %v388 = vsel %vm195, %v99, 0.0
  %389 = vadd.xlane.f32.xlu0 %v388
  %v390 = vpop.xlane.xlu0 %389
  %v391 = vsel %vm195, %v100, 0.0
  %392 = vadd.xlane.f32.xlu0 %v391
  %v393 = vpop.xlane.xlu0 %392
  %v394 = vsel %vm195, %v101, 0.0
  %395 = vadd.xlane.f32.xlu0 %v394
  %v396 = vpop.xlane.xlu0 %395
  %v397 = vsel %vm195, %v102, 0.0
  %398 = vadd.xlane.f32.xlu0 %v397
  %v399 = vpop.xlane.xlu0 %398
  %v400 = vsel %vm195, %v103, 0.0
  %401 = vadd.xlane.f32.xlu0 %v400
  %v402 = vpop.xlane.xlu0 %401
  %v403 = vsel %vm195, %v104, 0.0
  %404 = vadd.xlane.f32.xlu0 %v403
  %v405 = vpop.xlane.xlu0 %404
  %v406 = vsel %vm195, %v105, 0.0
  %407 = vadd.xlane.f32.xlu0 %v406
  %v408 = vpop.xlane.xlu0 %407
  %v409 = vsel %vm195, %v106, 0.0
  %410 = vadd.xlane.f32.xlu0 %v409
  %v411 = vpop.xlane.xlu0 %410
  %v412 = vsel %vm195, %v107, 0.0
  %413 = vadd.xlane.f32.xlu0 %v412
  %v414 = vpop.xlane.xlu0 %413
  %v415 = vsel %vm195, %v108, 0.0
  %416 = vadd.xlane.f32.xlu0 %v415
  %v417 = vpop.xlane.xlu0 %416
  %v418 = vsel %vm195, %v109, 0.0
  %419 = vadd.xlane.f32.xlu0 %v418
  %v420 = vpop.xlane.xlu0 %419
  %v421 = vsel %vm195, %v110, 0.0
  %422 = vadd.xlane.f32.xlu0 %v421
  %v423 = vpop.xlane.xlu0 %422
  %v424 = vsel %vm195, %v111, 0.0
  %425 = vadd.xlane.f32.xlu0 %v424
  %v426 = vpop.xlane.xlu0 %425
  %v427 = vsel %vm195, %v112, 0.0
  %428 = vadd.xlane.f32.xlu0 %v427
  %v429 = vpop.xlane.xlu0 %428
  %v430 = vsel %vm195, %v113, 0.0
  %431 = vadd.xlane.f32.xlu0 %v430
  %v432 = vpop.xlane.xlu0 %431
  %v433 = vsel %vm195, %v114, 0.0
  %434 = vadd.xlane.f32.xlu0 %v433
  %v435 = vpop.xlane.xlu0 %434
  %v436 = vsel %vm195, %v115, 0.0
  %437 = vadd.xlane.f32.xlu0 %v436
  %v438 = vpop.xlane.xlu0 %437
  %v439 = vsel %vm195, %v116, 0.0
  %440 = vadd.xlane.f32.xlu0 %v439
  %v441 = vpop.xlane.xlu0 %440
  %v442 = vsel %vm195, %v117, 0.0
  %443 = vadd.xlane.f32.xlu0 %v442
  %v444 = vpop.xlane.xlu0 %443
  %v445 = vsel %vm195, %v118, 0.0
  %446 = vadd.xlane.f32.xlu0 %v445
  %v447 = vpop.xlane.xlu0 %446
  %v448 = vsel %vm195, %v119, 0.0
  %449 = vadd.xlane.f32.xlu0 %v448
  %v450 = vpop.xlane.xlu0 %449
  %v451 = vsel %vm195, %v120, 0.0
  %452 = vadd.xlane.f32.xlu0 %v451
  %v453 = vpop.xlane.xlu0 %452
  %v454 = vsel %vm195, %v121, 0.0
  %455 = vadd.xlane.f32.xlu0 %v454
  %v456 = vpop.xlane.xlu0 %455
  %v457 = vsel %vm195, %v122, 0.0
  %458 = vadd.xlane.f32.xlu0 %v457
  %v459 = vpop.xlane.xlu0 %458
  %v460 = vsel %vm195, %v123, 0.0
  %461 = vadd.xlane.f32.xlu0 %v460
  %v462 = vpop.xlane.xlu0 %461
  %v463 = vsel %vm195, %v124, 0.0
  %464 = vadd.xlane.f32.xlu0 %v463
  %v465 = vpop.xlane.xlu0 %464
  %v466 = vsel %vm195, %v125, 0.0
  %467 = vadd.xlane.f32.xlu0 %v466
  %v468 = vpop.xlane.xlu0 %467
  %v469 = vsel %vm195, %v126, 0.0
  %470 = vadd.xlane.f32.xlu0 %v469
  %v471 = vpop.xlane.xlu0 %470
  %v472 = vsel %vm195, %v127, 0.0
  %473 = vadd.xlane.f32.xlu0 %v472
  %v474 = vpop.xlane.xlu0 %473
  %v475 = vsel %vm195, %v128, 0.0
  %476 = vadd.xlane.f32.xlu0 %v475
  %v477 = vpop.xlane.xlu0 %476
  %v478 = vsel %vm195, %v129, 0.0
  %479 = vadd.xlane.f32.xlu0 %v478
  %v480 = vpop.xlane.xlu0 %479
  %v481 = vsel %vm195, %v130, 0.0
  %482 = vadd.xlane.f32.xlu0 %v481
  %v483 = vpop.xlane.xlu0 %482
  %v484 = vsel %vm195, %v131, 0.0
  %485 = vadd.xlane.f32.xlu0 %v484
  %v486 = vpop.xlane.xlu0 %485
  %v487 = vsel %vm195, %v132, 0.0
  %488 = vadd.xlane.f32.xlu0 %v487
  %v489 = vpop.xlane.xlu0 %488
  %v490 = vsel %vm195, %v133, 0.0
  %491 = vadd.xlane.f32.xlu0 %v490
  %v492 = vpop.xlane.xlu0 %491
  %v493 = vsel %vm195, %v134, 0.0
  %494 = vadd.xlane.f32.xlu0 %v493
  %v495 = vpop.xlane.xlu0 %494
  %v496 = vsel %vm195, %v135, 0.0
  %497 = vadd.xlane.f32.xlu0 %v496
  %v498 = vpop.xlane.xlu0 %497
  %v499 = vsel %vm195, %v136, 0.0
  %500 = vadd.xlane.f32.xlu0 %v499
  %v501 = vpop.xlane.xlu0 %500
  %v502 = vsel %vm195, %v137, 0.0
  %503 = vadd.xlane.f32.xlu0 %v502
  %v504 = vpop.xlane.xlu0 %503
  %v505 = vsel %vm195, %v138, 0.0
  %506 = vadd.xlane.f32.xlu0 %v505
  %v507 = vpop.xlane.xlu0 %506
  %v508 = vsel %vm195, %v139, 0.0
  %509 = vadd.xlane.f32.xlu0 %v508
  %v510 = vpop.xlane.xlu0 %509
  %v511 = vsel %vm195, %v140, 0.0
  %512 = vadd.xlane.f32.xlu0 %v511
  %v513 = vpop.xlane.xlu0 %512
  %v514 = vsel %vm195, %v141, 0.0
  %515 = vadd.xlane.f32.xlu0 %v514
  %v516 = vpop.xlane.xlu0 %515
  %v517 = vsel %vm195, %v142, 0.0
  %518 = vadd.xlane.f32.xlu0 %v517
  %v519 = vpop.xlane.xlu0 %518
  %v520 = vsel %vm195, %v143, 0.0
  %521 = vadd.xlane.f32.xlu0 %v520
  %v522 = vpop.xlane.xlu0 %521
  %v523 = vsel %vm195, %v144, 0.0
  %524 = vadd.xlane.f32.xlu0 %v523
  %v525 = vpop.xlane.xlu0 %524
  %v526 = vsel %vm195, %v145, 0.0
  %527 = vadd.xlane.f32.xlu0 %v526
  %v528 = vpop.xlane.xlu0 %527
  %v529 = vsel %vm195, %v146, 0.0
  %530 = vadd.xlane.f32.xlu0 %v529
  %v531 = vpop.xlane.xlu0 %530
  %v532 = vsel %vm195, %v147, 0.0
  %533 = vadd.xlane.f32.xlu0 %v532
  %v534 = vpop.xlane.xlu0 %533
  %v535 = vsel %vm195, %v148, 0.0
  %536 = vadd.xlane.f32.xlu0 %v535
  %v537 = vpop.xlane.xlu0 %536
  %v538 = vsel %vm195, %v149, 0.0
  %539 = vadd.xlane.f32.xlu0 %v538
  %v540 = vpop.xlane.xlu0 %539
  %v541 = vsel %vm195, %v150, 0.0
  %542 = vadd.xlane.f32.xlu0 %v541
  %v543 = vpop.xlane.xlu0 %542
  %v544 = vsel %vm195, %v151, 0.0
  %545 = vadd.xlane.f32.xlu0 %v544
  %v546 = vpop.xlane.xlu0 %545
  %v547 = vsel %vm195, %v152, 0.0
  %548 = vadd.xlane.f32.xlu0 %v547
  %v549 = vpop.xlane.xlu0 %548
  %v550 = vsel %vm195, %v153, 0.0
  %551 = vadd.xlane.f32.xlu0 %v550
  %v552 = vpop.xlane.xlu0 %551
  %v553 = vsel %vm195, %v154, 0.0
  %554 = vadd.xlane.f32.xlu0 %v553
  %v555 = vpop.xlane.xlu0 %554
  %v556 = vsel %vm195, %v155, 0.0
  %557 = vadd.xlane.f32.xlu0 %v556
  %v558 = vpop.xlane.xlu0 %557
  %v559 = vsel %vm195, %v156, 0.0
  %560 = vadd.xlane.f32.xlu0 %v559
  %v561 = vpop.xlane.xlu0 %560
  %v562 = vsel %vm195, %v157, 0.0
  %563 = vadd.xlane.f32.xlu0 %v562
  %v564 = vpop.xlane.xlu0 %563
  %v565 = vsel %vm195, %v158, 0.0
  %566 = vadd.xlane.f32.xlu0 %v565
  %v567 = vpop.xlane.xlu0 %566
  %v568 = vsel %vm195, %v159, 0.0
  %569 = vadd.xlane.f32.xlu0 %v568
  %v570 = vpop.xlane.xlu0 %569
  %v571 = vsel %vm195, %v160, 0.0
  %572 = vadd.xlane.f32.xlu0 %v571
  %v573 = vpop.xlane.xlu0 %572
  %v574 = vsel %vm195, %v161, 0.0
  %575 = vadd.xlane.f32.xlu0 %v574
  %v576 = vpop.xlane.xlu0 %575
  %v577 = vsel %vm195, %v162, 0.0
  %578 = vadd.xlane.f32.xlu0 %v577
  %v579 = vpop.xlane.xlu0 %578
  %v580 = vrcp.pop 32.0
  %v581 = vmul.f32 %v198, %v580
  %v582 = vmul.f32 %v201, %v580
  %v583 = vmul.f32 %v204, %v580
  %v584 = vmul.f32 %v207, %v580
  %v585 = vmul.f32 %v210, %v580
  %v586 = vmul.f32 %v213, %v580
  %v587 = vmul.f32 %v216, %v580
  %v588 = vmul.f32 %v219, %v580
  %v589 = vmul.f32 %v222, %v580
  %v590 = vmul.f32 %v225, %v580
  %v591 = vmul.f32 %v228, %v580
  %v592 = vmul.f32 %v231, %v580
  %v593 = vmul.f32 %v234, %v580
  %v594 = vmul.f32 %v237, %v580
  %v595 = vmul.f32 %v240, %v580
  %v596 = vmul.f32 %v243, %v580
  %v597 = vmul.f32 %v246, %v580
  %v598 = vmul.f32 %v249, %v580
  %v599 = vmul.f32 %v252, %v580
  %v600 = vmul.f32 %v255, %v580
  %v601 = vmul.f32 %v258, %v580
  %v602 = vmul.f32 %v261, %v580
  %v603 = vmul.f32 %v264, %v580
  %v604 = vmul.f32 %v267, %v580
  %v605 = vmul.f32 %v270, %v580
  %v606 = vmul.f32 %v273, %v580
  %v607 = vmul.f32 %v276, %v580
  %v608 = vmul.f32 %v279, %v580
  %v609 = vmul.f32 %v282, %v580
  %v610 = vmul.f32 %v285, %v580
  %v611 = vmul.f32 %v288, %v580
  %v612 = vmul.f32 %v291, %v580
  %v613 = vmul.f32 %v294, %v580
  %v614 = vmul.f32 %v297, %v580
  %v615 = vmul.f32 %v300, %v580
  %v616 = vmul.f32 %v303, %v580
  %v617 = vmul.f32 %v306, %v580
  %v618 = vmul.f32 %v309, %v580
  %v619 = vmul.f32 %v312, %v580
  %v620 = vmul.f32 %v315, %v580
  %v621 = vmul.f32 %v318, %v580
  %v622 = vmul.f32 %v321, %v580
  %v623 = vmul.f32 %v324, %v580
  %v624 = vmul.f32 %v327, %v580
  %v625 = vmul.f32 %v330, %v580
  %v626 = vmul.f32 %v333, %v580
  %v627 = vmul.f32 %v336, %v580
  %v628 = vmul.f32 %v339, %v580
  %v629 = vmul.f32 %v342, %v580
  %v630 = vmul.f32 %v345, %v580
  %v631 = vmul.f32 %v348, %v580
  %v632 = vmul.f32 %v351, %v580
  %v633 = vmul.f32 %v354, %v580
  %v634 = vmul.f32 %v357, %v580
  %v635 = vmul.f32 %v360, %v580
  %v636 = vmul.f32 %v363, %v580
  %v637 = vmul.f32 %v366, %v580
  %v638 = vmul.f32 %v369, %v580
  %v639 = vmul.f32 %v372, %v580
  %v640 = vmul.f32 %v375, %v580
  %v641 = vmul.f32 %v378, %v580
  %v642 = vmul.f32 %v381, %v580
  %v643 = vmul.f32 %v384, %v580
  %v644 = vmul.f32 %v387, %v580
  %v645 = vmul.f32 %v390, %v580
  %v646 = vmul.f32 %v393, %v580
  %v647 = vmul.f32 %v396, %v580
  %v648 = vmul.f32 %v399, %v580
  %v649 = vmul.f32 %v402, %v580
  %v650 = vmul.f32 %v405, %v580
  %v651 = vmul.f32 %v408, %v580
  %v652 = vmul.f32 %v411, %v580
  %v653 = vmul.f32 %v414, %v580
  %v654 = vmul.f32 %v417, %v580
  %v655 = vmul.f32 %v420, %v580
  %v656 = vmul.f32 %v423, %v580
  %v657 = vmul.f32 %v426, %v580
  %v658 = vmul.f32 %v429, %v580
  %v659 = vmul.f32 %v432, %v580
  %v660 = vmul.f32 %v435, %v580
  %v661 = vmul.f32 %v438, %v580
  %v662 = vmul.f32 %v441, %v580
  %v663 = vmul.f32 %v444, %v580
  %v664 = vmul.f32 %v447, %v580
  %v665 = vmul.f32 %v450, %v580
  %v666 = vmul.f32 %v453, %v580
  %v667 = vmul.f32 %v456, %v580
  %v668 = vmul.f32 %v459, %v580
  %v669 = vmul.f32 %v462, %v580
  %v670 = vmul.f32 %v465, %v580
  %v671 = vmul.f32 %v468, %v580
  %v672 = vmul.f32 %v471, %v580
  %v673 = vmul.f32 %v474, %v580
  %v674 = vmul.f32 %v477, %v580
  %v675 = vmul.f32 %v480, %v580
  %v676 = vmul.f32 %v483, %v580
  %v677 = vmul.f32 %v486, %v580
  %v678 = vmul.f32 %v489, %v580
  %v679 = vmul.f32 %v492, %v580
  %v680 = vmul.f32 %v495, %v580
  %v681 = vmul.f32 %v498, %v580
  %v682 = vmul.f32 %v501, %v580
  %v683 = vmul.f32 %v504, %v580
  %v684 = vmul.f32 %v507, %v580
  %v685 = vmul.f32 %v510, %v580
  %v686 = vmul.f32 %v513, %v580
  %v687 = vmul.f32 %v516, %v580
  %v688 = vmul.f32 %v519, %v580
  %v689 = vmul.f32 %v522, %v580
  %v690 = vmul.f32 %v525, %v580
  %v691 = vmul.f32 %v528, %v580
  %v692 = vmul.f32 %v531, %v580
  %v693 = vmul.f32 %v534, %v580
  %v694 = vmul.f32 %v537, %v580
  %v695 = vmul.f32 %v540, %v580
  %v696 = vmul.f32 %v543, %v580
  %v697 = vmul.f32 %v546, %v580
  %v698 = vmul.f32 %v549, %v580
  %v699 = vmul.f32 %v552, %v580
  %v700 = vmul.f32 %v555, %v580
  %v701 = vmul.f32 %v558, %v580
  %v702 = vmul.f32 %v561, %v580
  %v703 = vmul.f32 %v564, %v580
  %v704 = vmul.f32 %v567, %v580
  %v705 = vmul.f32 %v570, %v580
  %v706 = vmul.f32 %v573, %v580
  %v707 = vmul.f32 %v576, %v580
  %v708 = vmul.f32 %v579, %v580
  %v709 = vpack.c.bf16 %v582, %v581
  %v710 = vpack.c.bf16 %v584, %v583
  %v711 = vpack.c.bf16 %v586, %v585
  %v712 = vpack.c.bf16 %v588, %v587
  %v713 = vpack.c.bf16 %v590, %v589
  %v714 = vpack.c.bf16 %v592, %v591
  %v715 = vpack.c.bf16 %v594, %v593
  %v716 = vpack.c.bf16 %v596, %v595
  %v717 = vpack.c.bf16 %v598, %v597
  %v718 = vpack.c.bf16 %v600, %v599
  %v719 = vpack.c.bf16 %v602, %v601
  %v720 = vpack.c.bf16 %v604, %v603
  %v721 = vpack.c.bf16 %v606, %v605
  %v722 = vpack.c.bf16 %v608, %v607
  %v723 = vpack.c.bf16 %v610, %v609
  %v724 = vpack.c.bf16 %v612, %v611
  %v725 = vpack.c.bf16 %v614, %v613
  %v726 = vpack.c.bf16 %v616, %v615
  %v727 = vpack.c.bf16 %v618, %v617
  %v728 = vpack.c.bf16 %v620, %v619
  %v729 = vpack.c.bf16 %v622, %v621
  %v730 = vpack.c.bf16 %v624, %v623
  %v731 = vpack.c.bf16 %v626, %v625
  %v732 = vpack.c.bf16 %v628, %v627
  %v733 = vpack.c.bf16 %v630, %v629
  %v734 = vpack.c.bf16 %v632, %v631
  %v735 = vpack.c.bf16 %v634, %v633
  %v736 = vpack.c.bf16 %v636, %v635
  %v737 = vpack.c.bf16 %v638, %v637
  %v738 = vpack.c.bf16 %v640, %v639
  %v739 = vpack.c.bf16 %v642, %v641
  %v740 = vpack.c.bf16 %v644, %v643
  %v741 = vpack.c.bf16 %v646, %v645
  %v742 = vpack.c.bf16 %v648, %v647
  %v743 = vpack.c.bf16 %v650, %v649
  %v744 = vpack.c.bf16 %v652, %v651
  %v745 = vpack.c.bf16 %v654, %v653
  %v746 = vpack.c.bf16 %v656, %v655
  %v747 = vpack.c.bf16 %v658, %v657
  %v748 = vpack.c.bf16 %v660, %v659
  %v749 = vpack.c.bf16 %v662, %v661
  %v750 = vpack.c.bf16 %v664, %v663
  %v751 = vpack.c.bf16 %v666, %v665
  %v752 = vpack.c.bf16 %v668, %v667
  %v753 = vpack.c.bf16 %v670, %v669
  %v754 = vpack.c.bf16 %v672, %v671
  %v755 = vpack.c.bf16 %v674, %v673
  %v756 = vpack.c.bf16 %v676, %v675
  %v757 = vpack.c.bf16 %v678, %v677
  %v758 = vpack.c.bf16 %v680, %v679
  %v759 = vpack.c.bf16 %v682, %v681
  %v760 = vpack.c.bf16 %v684, %v683
  %v761 = vpack.c.bf16 %v686, %v685
  %v762 = vpack.c.bf16 %v688, %v687
  %v763 = vpack.c.bf16 %v690, %v689
  %v764 = vpack.c.bf16 %v692, %v691
  %v765 = vpack.c.bf16 %v694, %v693
  %v766 = vpack.c.bf16 %v696, %v695
  %v767 = vpack.c.bf16 %v698, %v697
  %v768 = vpack.c.bf16 %v700, %v699
  %v769 = vpack.c.bf16 %v702, %v701
  %v770 = vpack.c.bf16 %v704, %v703
  %v771 = vpack.c.bf16 %v706, %v705
  %v772 = vpack.c.bf16 %v708, %v707
  %vm773 = vcmask 130048
  %v774 = vsel %vm773, %v163, 0.0
  %775 = vadd.xlane.f32.xlu0 %v774
  %v776 = vpop.xlane.xlu0 %775
  %v777 = vsel %vm773, %v164, 0.0
  %778 = vadd.xlane.f32.xlu0 %v777
  %v779 = vpop.xlane.xlu0 %778
  %v780 = vsel %vm773, %v165, 0.0
  %781 = vadd.xlane.f32.xlu0 %v780
  %v782 = vpop.xlane.xlu0 %781
  %v783 = vsel %vm773, %v166, 0.0
  %784 = vadd.xlane.f32.xlu0 %v783
  %v785 = vpop.xlane.xlu0 %784
  %v786 = vsel %vm773, %v167, 0.0
  %787 = vadd.xlane.f32.xlu0 %v786
  %v788 = vpop.xlane.xlu0 %787
  %v789 = vsel %vm773, %v168, 0.0
  %790 = vadd.xlane.f32.xlu0 %v789
  %v791 = vpop.xlane.xlu0 %790
  %v792 = vsel %vm773, %v169, 0.0
  %793 = vadd.xlane.f32.xlu0 %v792
  %v794 = vpop.xlane.xlu0 %793
  %v795 = vsel %vm773, %v170, 0.0
  %796 = vadd.xlane.f32.xlu0 %v795
  %v797 = vpop.xlane.xlu0 %796
  %v798 = vsel %vm773, %v171, 0.0
  %799 = vadd.xlane.f32.xlu0 %v798
  %v800 = vpop.xlane.xlu0 %799
  %v801 = vsel %vm773, %v172, 0.0
  %802 = vadd.xlane.f32.xlu0 %v801
  %v803 = vpop.xlane.xlu0 %802
  %v804 = vsel %vm773, %v173, 0.0
  %805 = vadd.xlane.f32.xlu0 %v804
  %v806 = vpop.xlane.xlu0 %805
  %v807 = vsel %vm773, %v174, 0.0
  %808 = vadd.xlane.f32.xlu0 %v807
  %v809 = vpop.xlane.xlu0 %808
  %v810 = vsel %vm773, %v175, 0.0
  %811 = vadd.xlane.f32.xlu0 %v810
  %v812 = vpop.xlane.xlu0 %811
  %v813 = vsel %vm773, %v176, 0.0
  %814 = vadd.xlane.f32.xlu0 %v813
  %v815 = vpop.xlane.xlu0 %814
  %v816 = vsel %vm773, %v177, 0.0
  %817 = vadd.xlane.f32.xlu0 %v816
  %v818 = vpop.xlane.xlu0 %817
  %v819 = vsel %vm773, %v178, 0.0
  %820 = vadd.xlane.f32.xlu0 %v819
  %v821 = vpop.xlane.xlu0 %820
  %v822 = vsel %vm773, %v179, 0.0
  %823 = vadd.xlane.f32.xlu0 %v822
  %v824 = vpop.xlane.xlu0 %823
  %v825 = vsel %vm773, %v180, 0.0
  %826 = vadd.xlane.f32.xlu0 %v825
  %v827 = vpop.xlane.xlu0 %826
  %v828 = vsel %vm773, %v181, 0.0
  %829 = vadd.xlane.f32.xlu0 %v828
  %v830 = vpop.xlane.xlu0 %829
  %v831 = vsel %vm773, %v182, 0.0
  %832 = vadd.xlane.f32.xlu0 %v831
  %v833 = vpop.xlane.xlu0 %832
  %v834 = vsel %vm773, %v183, 0.0
  %835 = vadd.xlane.f32.xlu0 %v834
  %v836 = vpop.xlane.xlu0 %835
  %v837 = vsel %vm773, %v184, 0.0
  %838 = vadd.xlane.f32.xlu0 %v837
  %v839 = vpop.xlane.xlu0 %838
  %v840 = vsel %vm773, %v185, 0.0
  %841 = vadd.xlane.f32.xlu0 %v840
  %v842 = vpop.xlane.xlu0 %841
  %v843 = vsel %vm773, %v186, 0.0
  %844 = vadd.xlane.f32.xlu0 %v843
  %v845 = vpop.xlane.xlu0 %844
  %v846 = vsel %vm773, %v187, 0.0
  %847 = vadd.xlane.f32.xlu0 %v846
  %v848 = vpop.xlane.xlu0 %847
  %v849 = vsel %vm773, %v188, 0.0
  %850 = vadd.xlane.f32.xlu0 %v849
  %v851 = vpop.xlane.xlu0 %850
  %v852 = vsel %vm773, %v189, 0.0
  %853 = vadd.xlane.f32.xlu0 %v852
  %v854 = vpop.xlane.xlu0 %853
  %v855 = vsel %vm773, %v190, 0.0
  %856 = vadd.xlane.f32.xlu0 %v855
  %v857 = vpop.xlane.xlu0 %856
  %v858 = vsel %vm773, %v191, 0.0
  %859 = vadd.xlane.f32.xlu0 %v858
  %v860 = vpop.xlane.xlu0 %859
  %v861 = vsel %vm773, %v192, 0.0
  %862 = vadd.xlane.f32.xlu0 %v861
  %v863 = vpop.xlane.xlu0 %862
  %v864 = vsel %vm773, %v193, 0.0
  %865 = vadd.xlane.f32.xlu0 %v864
  %v866 = vpop.xlane.xlu0 %865
  %v867 = vsel %vm773, %v194, 0.0
  %868 = vadd.xlane.f32.xlu0 %v867
  %v869 = vpop.xlane.xlu0 %868
  %v870 = vrcp.pop 16.0
  %v871 = vmul.f32 %v776, %v870
  %v872 = vmul.f32 %v779, %v870
  %v873 = vmul.f32 %v782, %v870
  %v874 = vmul.f32 %v785, %v870
  %v875 = vmul.f32 %v788, %v870
  %v876 = vmul.f32 %v791, %v870
  %v877 = vmul.f32 %v794, %v870
  %v878 = vmul.f32 %v797, %v870
  %v879 = vmul.f32 %v800, %v870
  %v880 = vmul.f32 %v803, %v870
  %v881 = vmul.f32 %v806, %v870
  %v882 = vmul.f32 %v809, %v870
  %v883 = vmul.f32 %v812, %v870
  %v884 = vmul.f32 %v815, %v870
  %v885 = vmul.f32 %v818, %v870
  %v886 = vmul.f32 %v821, %v870
  %v887 = vmul.f32 %v824, %v870
  %v888 = vmul.f32 %v827, %v870
  %v889 = vmul.f32 %v830, %v870
  %v890 = vmul.f32 %v833, %v870
  %v891 = vmul.f32 %v836, %v870
  %v892 = vmul.f32 %v839, %v870
  %v893 = vmul.f32 %v842, %v870
  %v894 = vmul.f32 %v845, %v870
  %v895 = vmul.f32 %v848, %v870
  %v896 = vmul.f32 %v851, %v870
  %v897 = vmul.f32 %v854, %v870
  %v898 = vmul.f32 %v857, %v870
  %v899 = vmul.f32 %v860, %v870
  %v900 = vmul.f32 %v863, %v870
  %v901 = vmul.f32 %v866, %v870
  %v902 = vmul.f32 %v869, %v870
  %v903 = vpack.c.bf16 %v872, %v871
  %v904 = vpack.c.bf16 %v874, %v873
  %v905 = vpack.c.bf16 %v876, %v875
  %v906 = vpack.c.bf16 %v878, %v877
  %v907 = vpack.c.bf16 %v880, %v879
  %v908 = vpack.c.bf16 %v882, %v881
  %v909 = vpack.c.bf16 %v884, %v883
  %v910 = vpack.c.bf16 %v886, %v885
  %v911 = vpack.c.bf16 %v888, %v887
  %v912 = vpack.c.bf16 %v890, %v889
  %v913 = vpack.c.bf16 %v892, %v891
  %v914 = vpack.c.bf16 %v894, %v893
  %v915 = vpack.c.bf16 %v896, %v895
  %v916 = vpack.c.bf16 %v898, %v897
  %v917 = vpack.c.bf16 %v900, %v899
  %v918 = vpack.c.bf16 %v902, %v901
  %v919 = vld [vmem:[%s2] sm:$0xff]
  %v920 = vld [vmem:[%s2 + $0x8] sm:$0xf]
  %v921 = vld [vmem:[%s2 + $0xc] sm:$0xff]
  %v922 = vld [vmem:[%s2 + $0x14] sm:$0xf]
  %v923 = vld [vmem:[%s2 + $0x18] sm:$0xff]
  %v924 = vld [vmem:[%s2 + $0x20] sm:$0xf]
  %v925 = vld [vmem:[%s2 + $0x24] sm:$0xff]
  %v926 = vld [vmem:[%s2 + $0x2c] sm:$0xf]
  %v927 = vld [vmem:[%s2 + $0x30] sm:$0xff]
  %v928 = vld [vmem:[%s2 + $0x38] sm:$0xf]
  %v929 = vld [vmem:[%s2 + $0x3c] sm:$0xff]
  %v930 = vld [vmem:[%s2 + $0x44] sm:$0xf]
  %v931 = vld [vmem:[%s2 + $0x48] sm:$0xff]
  %v932 = vld [vmem:[%s2 + $0x50] sm:$0xf]
  %v933 = vld [vmem:[%s2 + $0x54] sm:$0xff]
  %v934 = vld [vmem:[%s2 + $0x5c] sm:$0xf]
  %v935 = vld [vmem:[%s2 + $0x60] sm:$0xff]
  %v936 = vld [vmem:[%s2 + $0x68] sm:$0xf]
  %v937 = vld [vmem:[%s2 + $0x6c] sm:$0xff]
  %v938 = vld [vmem:[%s2 + $0x74] sm:$0xf]
  %v939 = vld [vmem:[%s2 + $0x78] sm:$0xff]
  %v940 = vld [vmem:[%s2 + $0x80] sm:$0xf]
  %v941 = vld [vmem:[%s2 + $0x84] sm:$0xff]
  %v942 = vld [vmem:[%s2 + $0x8c] sm:$0xf]
  %v943 = vld [vmem:[%s2 + $0x90] sm:$0xff]
  %v944 = vld [vmem:[%s2 + $0x98] sm:$0xf]
  %v945 = vld [vmem:[%s2 + $0x9c] sm:$0xff]
  %v946 = vld [vmem:[%s2 + $0xa4] sm:$0xf]
  %v947 = vld [vmem:[%s2 + $0xa8] sm:$0xff]
  %v948 = vld [vmem:[%s2 + $0xb0] sm:$0xf]
  %v949 = vld [vmem:[%s2 + $0xb4] sm:$0xff]
  %v950 = vld [vmem:[%s2 + $0xbc] sm:$0xf]
  %v951 = vld [vmem:[%s2 + $0xc0] sm:$0xff]
  %v952 = vld [vmem:[%s2 + $0xc8] sm:$0xf]
  %v953 = vld [vmem:[%s2 + $0xcc] sm:$0xff]
  %v954 = vld [vmem:[%s2 + $0xd4] sm:$0xf]
  %v955 = vld [vmem:[%s2 + $0xd8] sm:$0xff]
  %v956 = vld [vmem:[%s2 + $0xe0] sm:$0xf]
  %v957 = vld [vmem:[%s2 + $0xe4] sm:$0xff]
  %v958 = vld [vmem:[%s2 + $0xec] sm:$0xf]
  %v959 = vld [vmem:[%s2 + $0xf0] sm:$0xff]
  %v960 = vld [vmem:[%s2 + $0xf8] sm:$0xf]
  %v961 = vld [vmem:[%s2 + $0xfc] sm:$0xff]
  %v962 = vld [vmem:[%s2 + $0x104] sm:$0xf]
  %v963 = vld [vmem:[%s2 + $0x108] sm:$0xff]
  %v964 = vld [vmem:[%s2 + $0x110] sm:$0xf]
  %v965 = vld [vmem:[%s2 + $0x114] sm:$0xff]
  %v966 = vld [vmem:[%s2 + $0x11c] sm:$0xf]
  %v967 = vld [vmem:[%s2 + $0x120] sm:$0xff]
  %v968 = vld [vmem:[%s2 + $0x128] sm:$0xf]
  %v969 = vld [vmem:[%s2 + $0x12c] sm:$0xff]
  %v970 = vld [vmem:[%s2 + $0x134] sm:$0xf]
  %v971 = vld [vmem:[%s2 + $0x138] sm:$0xff]
  %v972 = vld [vmem:[%s2 + $0x140] sm:$0xf]
  %v973 = vld [vmem:[%s2 + $0x144] sm:$0xff]
  %v974 = vld [vmem:[%s2 + $0x14c] sm:$0xf]
  %v975 = vld [vmem:[%s2 + $0x150] sm:$0xff]
  %v976 = vld [vmem:[%s2 + $0x158] sm:$0xf]
  %v977 = vld [vmem:[%s2 + $0x15c] sm:$0xff]
  %v978 = vld [vmem:[%s2 + $0x164] sm:$0xf]
  %v979 = vld [vmem:[%s2 + $0x168] sm:$0xff]
  %v980 = vld [vmem:[%s2 + $0x170] sm:$0xf]
  %v981 = vld [vmem:[%s2 + $0x174] sm:$0xff]
  %v982 = vld [vmem:[%s2 + $0x17c] sm:$0xf]
  %v983 = vld [vmem:[%s2 + $0x180] sm:$0xff]
  %v984 = vld [vmem:[%s2 + $0x188] sm:$0xf]
  %v985 = vld [vmem:[%s2 + $0x18c] sm:$0xff]
  %v986 = vld [vmem:[%s2 + $0x194] sm:$0xf]
  %v987 = vld [vmem:[%s2 + $0x198] sm:$0xff]
  %v988 = vld [vmem:[%s2 + $0x1a0] sm:$0xf]
  %v989 = vld [vmem:[%s2 + $0x1a4] sm:$0xff]
  %v990 = vld [vmem:[%s2 + $0x1ac] sm:$0xf]
  %v991 = vld [vmem:[%s2 + $0x1b0] sm:$0xff]
  %v992 = vld [vmem:[%s2 + $0x1b8] sm:$0xf]
  %v993 = vld [vmem:[%s2 + $0x1bc] sm:$0xff]
  %v994 = vld [vmem:[%s2 + $0x1c4] sm:$0xf]
  %v995 = vld [vmem:[%s2 + $0x1c8] sm:$0xff]
  %v996 = vld [vmem:[%s2 + $0x1d0] sm:$0xf]
  %v997 = vld [vmem:[%s2 + $0x1d4] sm:$0xff]
  %v998 = vld [vmem:[%s2 + $0x1dc] sm:$0xf]
  %v999 = vld [vmem:[%s2 + $0x1e0] sm:$0xff]
  %v1000 = vld [vmem:[%s2 + $0x1e8] sm:$0xf]
  %v1001 = vld [vmem:[%s2 + $0x1ec] sm:$0xff]
  %v1002 = vld [vmem:[%s2 + $0x1f4] sm:$0xf]
  %v1003 = vld [vmem:[%s2 + $0x1f8] sm:$0xff]
  %v1004 = vld [vmem:[%s2 + $0x200] sm:$0xf]
  %v1005 = vld [vmem:[%s2 + $0x204] sm:$0xff]
  %v1006 = vld [vmem:[%s2 + $0x20c] sm:$0xf]
  %v1007 = vld [vmem:[%s2 + $0x210] sm:$0xff]
  %v1008 = vld [vmem:[%s2 + $0x218] sm:$0xf]
  %v1009 = vld [vmem:[%s2 + $0x21c] sm:$0xff]
  %v1010 = vld [vmem:[%s2 + $0x224] sm:$0xf]
  %v1011 = vld [vmem:[%s2 + $0x228] sm:$0xff]
  %v1012 = vld [vmem:[%s2 + $0x230] sm:$0xf]
  %v1013 = vld [vmem:[%s2 + $0x234] sm:$0xff]
  %v1014 = vld [vmem:[%s2 + $0x23c] sm:$0xf]
  %v1015 = vld [vmem:[%s2 + $0x240] sm:$0xff]
  %v1016 = vld [vmem:[%s2 + $0x248] sm:$0xf]
  %v1017 = vld [vmem:[%s2 + $0x24c] sm:$0xff]
  %v1018 = vld [vmem:[%s2 + $0x254] sm:$0xf]
  %v1019 = vld [vmem:[%s2 + $0x258] sm:$0xff]
  %v1020 = vld [vmem:[%s2 + $0x260] sm:$0xf]
  %v1021 = vld [vmem:[%s2 + $0x264] sm:$0xff]
  %v1022 = vld [vmem:[%s2 + $0x26c] sm:$0xf]
  %v1023 = vld [vmem:[%s2 + $0x270] sm:$0xff]
  %v1024 = vld [vmem:[%s2 + $0x278] sm:$0xf]
  %v1025 = vld [vmem:[%s2 + $0x27c] sm:$0xff]
  %v1026 = vld [vmem:[%s2 + $0x284] sm:$0xf]
  %v1027 = vld [vmem:[%s2 + $0x288] sm:$0xff]
  %v1028 = vld [vmem:[%s2 + $0x290] sm:$0xf]
  %v1029 = vld [vmem:[%s2 + $0x294] sm:$0xff]
  %v1030 = vld [vmem:[%s2 + $0x29c] sm:$0xf]
  %v1031 = vld [vmem:[%s2 + $0x2a0] sm:$0xff]
  %v1032 = vld [vmem:[%s2 + $0x2a8] sm:$0xf]
  %v1033 = vld [vmem:[%s2 + $0x2ac] sm:$0xff]
  %v1034 = vld [vmem:[%s2 + $0x2b4] sm:$0xf]
  %v1035 = vld [vmem:[%s2 + $0x2b8] sm:$0xff]
  %v1036 = vld [vmem:[%s2 + $0x2c0] sm:$0xf]
  %v1037 = vld [vmem:[%s2 + $0x2c4] sm:$0xff]
  %v1038 = vld [vmem:[%s2 + $0x2cc] sm:$0xf]
  %v1039 = vld [vmem:[%s2 + $0x2d0] sm:$0xff]
  %v1040 = vld [vmem:[%s2 + $0x2d8] sm:$0xf]
  %v1041 = vld [vmem:[%s2 + $0x2dc] sm:$0xff]
  %v1042 = vld [vmem:[%s2 + $0x2e4] sm:$0xf]
  %v1043 = vld [vmem:[%s2 + $0x2e8] sm:$0xff]
  %v1044 = vld [vmem:[%s2 + $0x2f0] sm:$0xf]
  %v1045 = vld [vmem:[%s2 + $0x2f4] sm:$0xff]
  %v1046 = vld [vmem:[%s2 + $0x2fc] sm:$0xf]
  %v1047 = vld [vmem:[%s3] sm:$0xff]
  %v1048 = vld [vmem:[%s3 + $0x8] sm:$0xf]
  %v1049 = vld [vmem:[%s3 + $0xc] sm:$0xff]
  %v1050 = vld [vmem:[%s3 + $0x14] sm:$0xf]
  %v1051 = vld [vmem:[%s3 + $0x18] sm:$0xff]
  %v1052 = vld [vmem:[%s3 + $0x20] sm:$0xf]
  %v1053 = vld [vmem:[%s3 + $0x24] sm:$0xff]
  %v1054 = vld [vmem:[%s3 + $0x2c] sm:$0xf]
  %v1055 = vld [vmem:[%s3 + $0x30] sm:$0xff]
  %v1056 = vld [vmem:[%s3 + $0x38] sm:$0xf]
  %v1057 = vld [vmem:[%s3 + $0x3c] sm:$0xff]
  %v1058 = vld [vmem:[%s3 + $0x44] sm:$0xf]
  %v1059 = vld [vmem:[%s3 + $0x48] sm:$0xff]
  %v1060 = vld [vmem:[%s3 + $0x50] sm:$0xf]
  %v1061 = vld [vmem:[%s3 + $0x54] sm:$0xff]
  %v1062 = vld [vmem:[%s3 + $0x5c] sm:$0xf]
  %v1063 = vld [vmem:[%s3 + $0x60] sm:$0xff]
  %v1064 = vld [vmem:[%s3 + $0x68] sm:$0xf]
  %v1065 = vld [vmem:[%s3 + $0x6c] sm:$0xff]
  %v1066 = vld [vmem:[%s3 + $0x74] sm:$0xf]
  %v1067 = vld [vmem:[%s3 + $0x78] sm:$0xff]
  %v1068 = vld [vmem:[%s3 + $0x80] sm:$0xf]
  %v1069 = vld [vmem:[%s3 + $0x84] sm:$0xff]
  %v1070 = vld [vmem:[%s3 + $0x8c] sm:$0xf]
  %v1071 = vld [vmem:[%s3 + $0x90] sm:$0xff]
  %v1072 = vld [vmem:[%s3 + $0x98] sm:$0xf]
  %v1073 = vld [vmem:[%s3 + $0x9c] sm:$0xff]
  %v1074 = vld [vmem:[%s3 + $0xa4] sm:$0xf]
  %v1075 = vld [vmem:[%s3 + $0xa8] sm:$0xff]
  %v1076 = vld [vmem:[%s3 + $0xb0] sm:$0xf]
  %v1077 = vld [vmem:[%s3 + $0xb4] sm:$0xff]
  %v1078 = vld [vmem:[%s3 + $0xbc] sm:$0xf]
  %v1079 = vld [vmem:[%s4] sm:$0x7]
  %v1080 = vld [vmem:[%s5] sm:$0xff]
  %v1081 = vld [vmem:[%s5 + $0x8] sm:$0xff]
  %v1082 = vld [vmem:[%s5 + $0x10] sm:$0xff]
  %v1083 = vld [vmem:[%s5 + $0x18] sm:$0xff]
  %v1084 = vld [vmem:[%s5 + $0x20] sm:$0xff]
  %v1085 = vld [vmem:[%s5 + $0x28] sm:$0xff]
  %v1086 = vld [vmem:[%s5 + $0x30] sm:$0xff]
  %v1087 = vld [vmem:[%s5 + $0x38] sm:$0xff]
  %v1088 = vld [vmem:[%s5 + $0x40] sm:$0xff]
  %v1089 = vld [vmem:[%s5 + $0x48] sm:$0xff]
  %v1090 = vld [vmem:[%s5 + $0x50] sm:$0xff]
  %v1091 = vld [vmem:[%s5 + $0x58] sm:$0xff]
  %v1092 = vld [vmem:[%s5 + $0x60] sm:$0xff]
  %v1093 = vld [vmem:[%s5 + $0x68] sm:$0xff]
  %v1094 = vld [vmem:[%s5 + $0x70] sm:$0xff]
  %v1095 = vld [vmem:[%s5 + $0x78] sm:$0xff]
  %v1096 = vld [vmem:[%s5 + $0x80] sm:$0xff]
  %v1097 = vld [vmem:[%s5 + $0x88] sm:$0xff]
  %v1098 = vld [vmem:[%s5 + $0x90] sm:$0xff]
  %v1099 = vld [vmem:[%s5 + $0x98] sm:$0xff]
  %v1100 = vld [vmem:[%s5 + $0xa0] sm:$0xff]
  %v1101 = vld [vmem:[%s5 + $0xa8] sm:$0xff]
  %v1102 = vld [vmem:[%s5 + $0xb0] sm:$0xff]
  %v1103 = vld [vmem:[%s5 + $0xb8] sm:$0xff]
  %v1104 = vld [vmem:[%s5 + $0xc0] sm:$0xff]
  %v1105 = vld [vmem:[%s5 + $0xc8] sm:$0xff]
  %v1106 = vld [vmem:[%s5 + $0xd0] sm:$0xff]
  %v1107 = vld [vmem:[%s5 + $0xd8] sm:$0xff]
  %v1108 = vld [vmem:[%s5 + $0xe0] sm:$0xff]
  %v1109 = vld [vmem:[%s5 + $0xe8] sm:$0xff]
  %v1110 = vld [vmem:[%s5 + $0xf0] sm:$0xff]
  %v1111 = vld [vmem:[%s5 + $0xf8] sm:$0xff]
  %v1112 = vld [vmem:[%s5 + $0x100] sm:$0xff]
  %v1113 = vld [vmem:[%s5 + $0x108] sm:$0xff]
  %v1114 = vld [vmem:[%s5 + $0x110] sm:$0xff]
  %v1115 = vld [vmem:[%s5 + $0x118] sm:$0xff]
  %v1116 = vld [vmem:[%s5 + $0x120] sm:$0xff]
  %v1117 = vld [vmem:[%s5 + $0x128] sm:$0xff]
  %v1118 = vld [vmem:[%s5 + $0x130] sm:$0xff]
  %v1119 = vld [vmem:[%s5 + $0x138] sm:$0xff]
  %v1120 = vld [vmem:[%s5 + $0x140] sm:$0xff]
  %v1121 = vld [vmem:[%s5 + $0x148] sm:$0xff]
  %v1122 = vld [vmem:[%s5 + $0x150] sm:$0xff]
  %v1123 = vld [vmem:[%s5 + $0x158] sm:$0xff]
  %v1124 = vld [vmem:[%s5 + $0x160] sm:$0xff]
  %v1125 = vld [vmem:[%s5 + $0x168] sm:$0xff]
  %v1126 = vld [vmem:[%s5 + $0x170] sm:$0xff]
  %v1127 = vld [vmem:[%s5 + $0x178] sm:$0xff]
  %v1128 = vld [vmem:[%s5 + $0x180] sm:$0xff]
  %v1129 = vld [vmem:[%s5 + $0x188] sm:$0xff]
  %v1130 = vld [vmem:[%s5 + $0x190] sm:$0xff]
  %v1131 = vld [vmem:[%s5 + $0x198] sm:$0xff]
  %v1132 = vld [vmem:[%s5 + $0x1a0] sm:$0xff]
  %v1133 = vld [vmem:[%s5 + $0x1a8] sm:$0xff]
  %v1134 = vld [vmem:[%s5 + $0x1b0] sm:$0xff]
  %v1135 = vld [vmem:[%s5 + $0x1b8] sm:$0xff]
  %v1136 = vld [vmem:[%s5 + $0x1c0] sm:$0xff]
  %v1137 = vld [vmem:[%s5 + $0x1c8] sm:$0xff]
  %v1138 = vld [vmem:[%s5 + $0x1d0] sm:$0xff]
  %v1139 = vld [vmem:[%s5 + $0x1d8] sm:$0xff]
  %v1140 = vld [vmem:[%s5 + $0x1e0] sm:$0xff]
  %v1141 = vld [vmem:[%s5 + $0x1e8] sm:$0xff]
  %v1142 = vld [vmem:[%s5 + $0x1f0] sm:$0xff]
  %v1143 = vld [vmem:[%s5 + $0x1f8] sm:$0xff]
  %v1144 = vld [vmem:[%s5 + $0x200] sm:$0xff]
  %v1145 = vld [vmem:[%s5 + $0x208] sm:$0xff]
  %v1146 = vld [vmem:[%s5 + $0x210] sm:$0xff]
  %v1147 = vld [vmem:[%s5 + $0x218] sm:$0xff]
  %v1148 = vld [vmem:[%s5 + $0x220] sm:$0xff]
  %v1149 = vld [vmem:[%s5 + $0x228] sm:$0xff]
  %v1150 = vld [vmem:[%s5 + $0x230] sm:$0xff]
  %v1151 = vld [vmem:[%s5 + $0x238] sm:$0xff]
  %v1152 = vld [vmem:[%s5 + $0x240] sm:$0xff]
  %v1153 = vld [vmem:[%s5 + $0x248] sm:$0xff]
  %v1154 = vld [vmem:[%s5 + $0x250] sm:$0xff]
  %v1155 = vld [vmem:[%s5 + $0x258] sm:$0xff]
  %v1156 = vld [vmem:[%s5 + $0x260] sm:$0xff]
  %v1157 = vld [vmem:[%s5 + $0x268] sm:$0xff]
  %v1158 = vld [vmem:[%s5 + $0x270] sm:$0xff]
  %v1159 = vld [vmem:[%s5 + $0x278] sm:$0xff]
  %v1160 = vld [vmem:[%s6] sm:$0xf]
  %v1161 = vld [vmem:[%s7] sm:$0xf]
  %v1162 = vld [vmem:[%s7 + $0x4] sm:$0xf]
  %v1163 = vld [vmem:[%s7 + $0x8] sm:$0xf]
  %v1164 = vld [vmem:[%s7 + $0xc] sm:$0xf]
  %v1165 = vld [vmem:[%s7 + $0x10] sm:$0xf]
  %v1166 = vld [vmem:[%s7 + $0x14] sm:$0xf]
  %v1167 = vld [vmem:[%s7 + $0x18] sm:$0xf]
  %v1168 = vld [vmem:[%s7 + $0x1c] sm:$0xf]
  %v1169 = vld [vmem:[%s7 + $0x20] sm:$0xf]
  %v1170 = vld [vmem:[%s7 + $0x24] sm:$0xf]
  %v1171 = vld [vmem:[%s7 + $0x28] sm:$0xf]
  %v1172 = vld [vmem:[%s7 + $0x2c] sm:$0xf]
  %v1173 = vld [vmem:[%s7 + $0x30] sm:$0xf]
  %v1174 = vld [vmem:[%s7 + $0x34] sm:$0xf]
  %v1175 = vld [vmem:[%s7 + $0x38] sm:$0xf]
  %v1176 = vld [vmem:[%s7 + $0x3c] sm:$0xf]
  %v1177 = vld [vmem:[%s7 + $0x40] sm:$0xf]
  %v1178 = vld [vmem:[%s7 + $0x44] sm:$0xf]
  %v1179 = vld [vmem:[%s7 + $0x48] sm:$0xf]
  %v1180 = vld [vmem:[%s7 + $0x4c] sm:$0xf]
  %v1181 = vld [vmem:[%s7 + $0x50] sm:$0xf]
  %v1182 = vld [vmem:[%s7 + $0x54] sm:$0xf]
  %v1183 = vld [vmem:[%s7 + $0x58] sm:$0xf]
  %v1184 = vld [vmem:[%s7 + $0x5c] sm:$0xf]
  %v1185 = vld [vmem:[%s7 + $0x60] sm:$0xf]
  %v1186 = vld [vmem:[%s7 + $0x64] sm:$0xf]
  %v1187 = vld [vmem:[%s7 + $0x68] sm:$0xf]
  %v1188 = vld [vmem:[%s7 + $0x6c] sm:$0xf]
  %v1189 = vld [vmem:[%s7 + $0x70] sm:$0xf]
  %v1190 = vld [vmem:[%s7 + $0x74] sm:$0xf]
  %v1191 = vld [vmem:[%s7 + $0x78] sm:$0xf]
  %v1192 = vld [vmem:[%s7 + $0x7c] sm:$0xf]
  %v1193 = vld [vmem:[%s7 + $0x80] sm:$0xf]
  %v1194 = vld [vmem:[%s7 + $0x84] sm:$0xf]
  %v1195 = vld [vmem:[%s7 + $0x88] sm:$0xf]
  %v1196 = vld [vmem:[%s7 + $0x8c] sm:$0xf]
  %v1197 = vld [vmem:[%s7 + $0x90] sm:$0xf]
  %v1198 = vld [vmem:[%s7 + $0x94] sm:$0xf]
  %v1199 = vld [vmem:[%s7 + $0x98] sm:$0xf]
  %v1200 = vld [vmem:[%s7 + $0x9c] sm:$0xf]
  %v1201 = vld [vmem:[%s8] sm:$0x1]
  %v1218 = vunpack.c.l.b16 %v903
  %v1219 = vunpack.c.h.b16 %v903
  %v1220 = vunpack.c.l.b16 %v904
  %v1221 = vunpack.c.h.b16 %v904
  %v1222 = vunpack.c.l.b16 %v905
  %v1223 = vunpack.c.h.b16 %v905
  %v1224 = vunpack.c.l.b16 %v906
  %v1225 = vunpack.c.h.b16 %v906
  %v1226 = vunpack.c.l.b16 %v907
  %v1227 = vunpack.c.h.b16 %v907
  %v1228 = vunpack.c.l.b16 %v908
  %v1229 = vunpack.c.h.b16 %v908
  %v1230 = vunpack.c.l.b16 %v909
  %v1231 = vunpack.c.h.b16 %v909
  %v1232 = vunpack.c.l.b16 %v910
  %v1233 = vunpack.c.h.b16 %v910
  %v1234 = vunpack.c.l.b16 %v911
  %v1235 = vunpack.c.h.b16 %v911
  %v1236 = vunpack.c.l.b16 %v912
  %v1237 = vunpack.c.h.b16 %v912
  %v1238 = vunpack.c.l.b16 %v913
  %v1239 = vunpack.c.h.b16 %v913
  %v1240 = vunpack.c.l.b16 %v914
  %v1241 = vunpack.c.h.b16 %v914
  %v1242 = vunpack.c.l.b16 %v915
  %v1243 = vunpack.c.h.b16 %v915
  %v1244 = vunpack.c.l.b16 %v916
  %v1245 = vunpack.c.h.b16 %v916
  %v1246 = vunpack.c.l.b16 %v917
  %v1247 = vunpack.c.h.b16 %v917
  %v1248 = vunpack.c.l.b16 %v918
  %v1249 = vunpack.c.h.b16 %v918
  %v1250 = vlaneseq
  %v1251 = vand.u32 %v1250, 127
  %v1252 = vlaneseq
  %v1253 = vshrl.u32 %v1252, 7
  %v1254 = vsub.s32 %v1251, %v1253
  %v1255 = vrot.slane %v1218, %v1254
  %v1256 = vadd.s32 %v1251, 4294967288
  %v1257 = vlaneseq
  %v1258 = vshrl.u32 %v1257, 7
  %v1259 = vsub.s32 %v1256, %v1258
  %v1260 = vrot.slane %v1219, %v1259
  %vm1261 = vcmask 130112
  %v1262 = vsel %vm1261, %v1260, %v1255
  %v1263 = vadd.s32 %v1251, 4294967280
  %v1264 = vlaneseq
  %v1265 = vshrl.u32 %v1264, 7
  %v1266 = vsub.s32 %v1263, %v1265
  %v1267 = vrot.slane %v1220, %v1266
  %vm1268 = vcmask 195712
  %v1269 = vsel %vm1268, %v1267, %v1262
  %v1270 = vadd.s32 %v1251, 4294967272
  %v1271 = vlaneseq
  %v1272 = vshrl.u32 %v1271, 7
  %v1273 = vsub.s32 %v1270, %v1272
  %v1274 = vrot.slane %v1221, %v1273
  %vm1275 = vcmask 261312
  %v1276 = vsel %vm1275, %v1274, %v1269
  %v1277 = vadd.s32 %v1251, 4294967264
  %v1278 = vlaneseq
  %v1279 = vshrl.u32 %v1278, 7
  %v1280 = vsub.s32 %v1277, %v1279
  %v1281 = vrot.slane %v1222, %v1280
  %vm1282 = vcmask 326912
  %v1283 = vsel %vm1282, %v1281, %v1276
  %v1284 = vadd.s32 %v1251, 4294967256
  %v1285 = vlaneseq
  %v1286 = vshrl.u32 %v1285, 7
  %v1287 = vsub.s32 %v1284, %v1286
  %v1288 = vrot.slane %v1223, %v1287
  %vm1289 = vcmask 392512
  %v1290 = vsel %vm1289, %v1288, %v1283
  %v1291 = vadd.s32 %v1251, 4294967248
  %v1292 = vlaneseq
  %v1293 = vshrl.u32 %v1292, 7
  %v1294 = vsub.s32 %v1291, %v1293
  %v1295 = vrot.slane %v1224, %v1294
  %vm1296 = vcmask 458112
  %v1297 = vsel %vm1296, %v1295, %v1290
  %v1298 = vadd.s32 %v1251, 4294967240
  %v1299 = vlaneseq
  %v1300 = vshrl.u32 %v1299, 7
  %v1301 = vsub.s32 %v1298, %v1300
  %v1302 = vrot.slane %v1225, %v1301
  %vm1303 = vcmask 523712
  %v1304 = vsel %vm1303, %v1302, %v1297
  %v1305 = vadd.s32 %v1251, 4294967232
  %v1306 = vlaneseq
  %v1307 = vshrl.u32 %v1306, 7
  %v1308 = vsub.s32 %v1305, %v1307
  %v1309 = vrot.slane %v1226, %v1308
  %vm1310 = vcmask 589312
  %v1311 = vsel %vm1310, %v1309, %v1304
  %v1312 = vadd.s32 %v1251, 4294967224
  %v1313 = vlaneseq
  %v1314 = vshrl.u32 %v1313, 7
  %v1315 = vsub.s32 %v1312, %v1314
  %v1316 = vrot.slane %v1227, %v1315
  %vm1317 = vcmask 654912
  %v1318 = vsel %vm1317, %v1316, %v1311
  %v1319 = vadd.s32 %v1251, 4294967216
  %v1320 = vlaneseq
  %v1321 = vshrl.u32 %v1320, 7
  %v1322 = vsub.s32 %v1319, %v1321
  %v1323 = vrot.slane %v1228, %v1322
  %vm1324 = vcmask 720512
  %v1325 = vsel %vm1324, %v1323, %v1318
  %v1326 = vadd.s32 %v1251, 4294967208
  %v1327 = vlaneseq
  %v1328 = vshrl.u32 %v1327, 7
  %v1329 = vsub.s32 %v1326, %v1328
  %v1330 = vrot.slane %v1229, %v1329
  %vm1331 = vcmask 786112
  %v1332 = vsel %vm1331, %v1330, %v1325
  %v1333 = vadd.s32 %v1251, 4294967200
  %v1334 = vlaneseq
  %v1335 = vshrl.u32 %v1334, 7
  %v1336 = vsub.s32 %v1333, %v1335
  %v1337 = vrot.slane %v1230, %v1336
  %vm1338 = vcmask 851712
  %v1339 = vsel %vm1338, %v1337, %v1332
  %v1340 = vadd.s32 %v1251, 4294967192
  %v1341 = vlaneseq
  %v1342 = vshrl.u32 %v1341, 7
  %v1343 = vsub.s32 %v1340, %v1342
  %v1344 = vrot.slane %v1231, %v1343
  %vm1345 = vcmask 917312
  %v1346 = vsel %vm1345, %v1344, %v1339
  %v1347 = vadd.s32 %v1251, 4294967184
  %v1348 = vlaneseq
  %v1349 = vshrl.u32 %v1348, 7
  %v1350 = vsub.s32 %v1347, %v1349
  %v1351 = vrot.slane %v1232, %v1350
  %vm1352 = vcmask 982912
  %v1353 = vsel %vm1352, %v1351, %v1346
  %v1354 = vadd.s32 %v1251, 4294967176
  %v1355 = vlaneseq
  %v1356 = vshrl.u32 %v1355, 7
  %v1357 = vsub.s32 %v1354, %v1356
  %v1358 = vrot.slane %v1233, %v1357
  %vm1359 = vcmask 1048512
  %v1360 = vsel %vm1359, %v1358, %v1353
  %v1361 = vlaneseq
  %v1362 = vshrl.u32 %v1361, 7
  %v1363 = vsub.s32 %v1251, %v1362
  %v1364 = vrot.slane %v1234, %v1363
  %v1365 = vlaneseq
  %v1366 = vshrl.u32 %v1365, 7
  %v1367 = vsub.s32 %v1256, %v1366
  %v1368 = vrot.slane %v1235, %v1367
  %v1369 = vsel %vm1261, %v1368, %v1364
  %v1370 = vlaneseq
  %v1371 = vshrl.u32 %v1370, 7
  %v1372 = vsub.s32 %v1263, %v1371
  %v1373 = vrot.slane %v1236, %v1372
  %v1374 = vsel %vm1268, %v1373, %v1369
  %v1375 = vlaneseq
  %v1376 = vshrl.u32 %v1375, 7
  %v1377 = vsub.s32 %v1270, %v1376
  %v1378 = vrot.slane %v1237, %v1377
  %v1379 = vsel %vm1275, %v1378, %v1374
  %v1380 = vlaneseq
  %v1381 = vshrl.u32 %v1380, 7
  %v1382 = vsub.s32 %v1277, %v1381
  %v1383 = vrot.slane %v1238, %v1382
  %v1384 = vsel %vm1282, %v1383, %v1379
  %v1385 = vlaneseq
  %v1386 = vshrl.u32 %v1385, 7
  %v1387 = vsub.s32 %v1284, %v1386
  %v1388 = vrot.slane %v1239, %v1387
  %v1389 = vsel %vm1289, %v1388, %v1384
  %v1390 = vlaneseq
  %v1391 = vshrl.u32 %v1390, 7
  %v1392 = vsub.s32 %v1291, %v1391
  %v1393 = vrot.slane %v1240, %v1392
  %v1394 = vsel %vm1296, %v1393, %v1389
  %v1395 = vlaneseq
  %v1396 = vshrl.u32 %v1395, 7
  %v1397 = vsub.s32 %v1298, %v1396
  %v1398 = vrot.slane %v1241, %v1397
  %v1399 = vsel %vm1303, %v1398, %v1394
  %v1400 = vlaneseq
  %v1401 = vshrl.u32 %v1400, 7
  %v1402 = vsub.s32 %v1305, %v1401
  %v1403 = vrot.slane %v1242, %v1402
  %v1404 = vsel %vm1310, %v1403, %v1399
  %v1405 = vlaneseq
  %v1406 = vshrl.u32 %v1405, 7
  %v1407 = vsub.s32 %v1312, %v1406
  %v1408 = vrot.slane %v1243, %v1407
  %v1409 = vsel %vm1317, %v1408, %v1404
  %v1410 = vlaneseq
  %v1411 = vshrl.u32 %v1410, 7
  %v1412 = vsub.s32 %v1319, %v1411
  %v1413 = vrot.slane %v1244, %v1412
  %v1414 = vsel %vm1324, %v1413, %v1409
  %v1415 = vlaneseq
  %v1416 = vshrl.u32 %v1415, 7
  %v1417 = vsub.s32 %v1326, %v1416
  %v1418 = vrot.slane %v1245, %v1417
  %v1419 = vsel %vm1331, %v1418, %v1414
  %v1420 = vlaneseq
  %v1421 = vshrl.u32 %v1420, 7
  %v1422 = vsub.s32 %v1333, %v1421
  %v1423 = vrot.slane %v1246, %v1422
  %v1424 = vsel %vm1338, %v1423, %v1419
  %v1425 = vlaneseq
  %v1426 = vshrl.u32 %v1425, 7
  %v1427 = vsub.s32 %v1340, %v1426
  %v1428 = vrot.slane %v1247, %v1427
  %v1429 = vsel %vm1345, %v1428, %v1424
  %v1430 = vlaneseq
  %v1431 = vshrl.u32 %v1430, 7
  %v1432 = vsub.s32 %v1347, %v1431
  %v1433 = vrot.slane %v1248, %v1432
  %v1434 = vsel %vm1352, %v1433, %v1429
  %v1435 = vlaneseq
  %v1436 = vshrl.u32 %v1435, 7
  %v1437 = vsub.s32 %v1354, %v1436
  %v1438 = vrot.slane %v1249, %v1437
  %v1439 = vsel %vm1359, %v1438, %v1434
  %vm1440 = vcmask 1041409
  %v1441 = vsel %vm1440, %v1439, %v1360
  %v1442 = vpack.c.b16 %v1441, %v1441
  %v1476 = vunpack.c.l.b16 %v1047
  %v1477 = vunpack.c.h.b16 %v1047
  %v1478 = vunpack.c.l.b16 %v1048
  %v1479 = vunpack.c.l.b16 %v1049
  %v1480 = vunpack.c.h.b16 %v1049
  %v1481 = vunpack.c.l.b16 %v1050
  %v1482 = vunpack.c.l.b16 %v1051
  %v1483 = vunpack.c.h.b16 %v1051
  %v1484 = vunpack.c.l.b16 %v1052
  %v1485 = vunpack.c.l.b16 %v1053
  %v1486 = vunpack.c.h.b16 %v1053
  %v1487 = vunpack.c.l.b16 %v1054
  %v1488 = vunpack.c.l.b16 %v1055
  %v1489 = vunpack.c.h.b16 %v1055
  %v1490 = vunpack.c.l.b16 %v1056
  %v1491 = vunpack.c.l.b16 %v1057
  %v1492 = vunpack.c.h.b16 %v1057
  %v1493 = vunpack.c.l.b16 %v1058
  %v1494 = vunpack.c.l.b16 %v1059
  %v1495 = vunpack.c.h.b16 %v1059
  %v1496 = vunpack.c.l.b16 %v1060
  %v1497 = vunpack.c.l.b16 %v1061
  %v1498 = vunpack.c.h.b16 %v1061
  %v1499 = vunpack.c.l.b16 %v1062
  %v1500 = vunpack.c.l.b16 %v1063
  %v1501 = vunpack.c.h.b16 %v1063
  %v1502 = vunpack.c.l.b16 %v1064
  %v1503 = vunpack.c.l.b16 %v1065
  %v1504 = vunpack.c.h.b16 %v1065
  %v1505 = vunpack.c.l.b16 %v1066
  %v1506 = vunpack.c.l.b16 %v1067
  %v1507 = vunpack.c.h.b16 %v1067
  %v1508 = vunpack.c.l.b16 %v1068
  %v1509 = vunpack.c.l.b16 %v1069
  %v1510 = vunpack.c.h.b16 %v1069
  %v1511 = vunpack.c.l.b16 %v1070
  %v1512 = vunpack.c.l.b16 %v1071
  %v1513 = vunpack.c.h.b16 %v1071
  %v1514 = vunpack.c.l.b16 %v1072
  %v1515 = vunpack.c.l.b16 %v1073
  %v1516 = vunpack.c.h.b16 %v1073
  %v1517 = vunpack.c.l.b16 %v1074
  %v1518 = vunpack.c.l.b16 %v1075
  %v1519 = vunpack.c.h.b16 %v1075
  %v1520 = vunpack.c.l.b16 %v1076
  %v1521 = vunpack.c.l.b16 %v1077
  %v1522 = vunpack.c.h.b16 %v1077
  %v1523 = vunpack.c.l.b16 %v1078
  %v1524 = vpack.c.b16 %v1479, %v1476
  %v1525 = vpack.c.b16 %v1480, %v1477
  %v1526 = vpack.c.b16 %v1481, %v1478
  %v1527 = vpack.c.b16 %v1485, %v1482
  %v1528 = vpack.c.b16 %v1486, %v1483
  %v1529 = vpack.c.b16 %v1487, %v1484
  %v1530 = vpack.c.b16 %v1491, %v1488
  %v1531 = vpack.c.b16 %v1492, %v1489
  %v1532 = vpack.c.b16 %v1493, %v1490
  %v1533 = vpack.c.b16 %v1497, %v1494
  %v1534 = vpack.c.b16 %v1498, %v1495
  %v1535 = vpack.c.b16 %v1499, %v1496
  %v1536 = vpack.c.b16 %v1503, %v1500
  %v1537 = vpack.c.b16 %v1504, %v1501
  %v1538 = vpack.c.b16 %v1505, %v1502
  %v1539 = vpack.c.b16 %v1509, %v1506
  %v1540 = vpack.c.b16 %v1510, %v1507
  %v1541 = vpack.c.b16 %v1511, %v1508
  %v1542 = vpack.c.b16 %v1515, %v1512
  %v1543 = vpack.c.b16 %v1516, %v1513
  %v1544 = vpack.c.b16 %v1517, %v1514
  %v1545 = vpack.c.b16 %v1521, %v1518
  %v1546 = vpack.c.b16 %v1522, %v1519
  %v1547 = vpack.c.b16 %v1523, %v1520
  %1572 = vmatprep.subr.bf16.mxu0 %v1525
  %1573 = vmatpush1.bf16.msra.mxu0 %v1524
  %1574 = vmatprep.subr.bf16.mxu0 %v1528
  %1575 = vmatpush1.bf16.msra.mxu0 %v1527
  %1576 = vmatprep.subr.bf16.mxu0 %v1531
  %1577 = vmatpush1.bf16.msra.mxu0 %v1530
  %1578 = vmatprep.subr.bf16.mxu0 %v1534
  %1579 = vmatpush1.bf16.msra.mxu0 %v1533
  %1580 = vmatprep.subr.bf16.mxu0 %v1537
  %1581 = vmatpush1.bf16.msra.mxu0 %v1536
  %1582 = vmatprep.subr.bf16.mxu0 %v1540
  %1583 = vmatpush1.bf16.msra.mxu0 %v1539
  %1584 = vmatprep.subr.bf16.mxu0 %v1543
  %1585 = vmatpush1.bf16.msra.mxu0 %v1542
  %1586 = vmatprep.subr.bf16.mxu0 %v1546
  %1587 = vmatpush1.bf16.msra.mxu0 %v1545
  %1588 = vmatprep.subr.bf16.mxu0 0
  %1589 = vmatpush1.bf16.msra.mxu0 0
  %1590 = vmatprep.subr.bf16.mxu0 0
  %1591 = vmatpush1.bf16.msra.mxu0 0
  %1592 = vmatprep.subr.bf16.mxu0 0
  %1593 = vmatpush1.bf16.msra.mxu0 0
  %1594 = vmatprep.subr.bf16.mxu0 0
  %1595 = vmatpush1.bf16.msra.mxu0 0
  %1596 = vmatprep.subr.bf16.mxu0 0
  %1597 = vmatpush1.bf16.msra.mxu0 0
  %1598 = vmatprep.subr.bf16.mxu0 0
  %1599 = vmatpush1.bf16.msra.mxu0 0
  %1600 = vmatprep.subr.bf16.mxu0 0
  %1601 = vmatpush1.bf16.msra.mxu0 0
  %1602 = vmatprep.subr.bf16.mxu0 0
  %1603 = vmatpush1.bf16.msra.mxu0 0
  %1604 = vmatprep.mubr.bf16.mxu0 0
  %1605 = vmatmul.mubr.bf16.gmra.mrb[0].mxu0 %v1442
  %v1606 = vpop.f32.mrb[0].mxu0
  %v1607 = vadd.f32 0.0, %v1606
  %v1608 = vpop.f32.mrb[0].mxu0
  %v1609 = vadd.f32 0.0, %v1608
  %v1610 = vpop.f32.mrb[0].mxu0
  %v1611 = vpop.f32.mrb[0].mxu0
  %1612 = vdwg.mxu0
  %1613 = vmatprep.subr.bf16.mxu0 0
  %1614 = vmatpush1.bf16.msra.mxu0 %v1526
  %1615 = vmatprep.subr.bf16.mxu0 0
  %1616 = vmatpush1.bf16.msra.mxu0 %v1529
  %1617 = vmatprep.subr.bf16.mxu0 0
  %1618 = vmatpush1.bf16.msra.mxu0 %v1532
  %1619 = vmatprep.subr.bf16.mxu0 0
  %1620 = vmatpush1.bf16.msra.mxu0 %v1535
  %1621 = vmatprep.subr.bf16.mxu0 0
  %1622 = vmatpush1.bf16.msra.mxu0 %v1538
  %1623 = vmatprep.subr.bf16.mxu0 0
  %1624 = vmatpush1.bf16.msra.mxu0 %v1541
  %1625 = vmatprep.subr.bf16.mxu0 0
  %1626 = vmatpush1.bf16.msra.mxu0 %v1544
  %1627 = vmatprep.subr.bf16.mxu0 0
  %1628 = vmatpush1.bf16.msra.mxu0 %v1547
  %1629 = vmatprep.subr.bf16.mxu0 0
  %1630 = vmatpush1.bf16.msra.mxu0 0
  %1631 = vmatprep.subr.bf16.mxu0 0
  %1632 = vmatpush1.bf16.msra.mxu0 0
  %1633 = vmatprep.subr.bf16.mxu0 0
  %1634 = vmatpush1.bf16.msra.mxu0 0
  %1635 = vmatprep.subr.bf16.mxu0 0
  %1636 = vmatpush1.bf16.msra.mxu0 0
  %1637 = vmatprep.subr.bf16.mxu0 0
  %1638 = vmatpush1.bf16.msra.mxu0 0
  %1639 = vmatprep.subr.bf16.mxu0 0
  %1640 = vmatpush1.bf16.msra.mxu0 0
  %1641 = vmatprep.subr.bf16.mxu0 0
  %1642 = vmatpush1.bf16.msra.mxu0 0
  %1643 = vmatprep.subr.bf16.mxu0 0
  %1644 = vmatpush1.bf16.msra.mxu0 0
  %1645 = vmatprep.mubr.bf16.mxu0 0
  %1646 = vmatmul.mubr.bf16.gmra.mrb[0].mxu0 %v1442
  %v1647 = vpop.f32.mrb[0].mxu0
  %v1648 = vadd.f32 0.0, %v1647
  %v1649 = vpop.f32.mrb[0].mxu0
  %v1650 = vpop.f32.mrb[0].mxu0
  %v1651 = vpop.f32.mrb[0].mxu0
  %1652 = vdwg.mxu0
  %v1717 = vunpack.c.l.b16 %v709
  %v1718 = vunpack.c.h.b16 %v709
  %v1719 = vunpack.c.l.b16 %v710
  %v1720 = vunpack.c.h.b16 %v710
  %v1721 = vunpack.c.l.b16 %v711
  %v1722 = vunpack.c.h.b16 %v711
  %v1723 = vunpack.c.l.b16 %v712
  %v1724 = vunpack.c.h.b16 %v712
  %v1725 = vunpack.c.l.b16 %v713
  %v1726 = vunpack.c.h.b16 %v713
  %v1727 = vunpack.c.l.b16 %v714
  %v1728 = vunpack.c.h.b16 %v714
  %v1729 = vunpack.c.l.b16 %v715
  %v1730 = vunpack.c.h.b16 %v715
  %v1731 = vunpack.c.l.b16 %v716
  %v1732 = vunpack.c.h.b16 %v716
  %v1733 = vunpack.c.l.b16 %v717
  %v1734 = vunpack.c.h.b16 %v717
  %v1735 = vunpack.c.l.b16 %v718
  %v1736 = vunpack.c.h.b16 %v718
  %v1737 = vunpack.c.l.b16 %v719
  %v1738 = vunpack.c.h.b16 %v719
  %v1739 = vunpack.c.l.b16 %v720
  %v1740 = vunpack.c.h.b16 %v720
  %v1741 = vunpack.c.l.b16 %v721
  %v1742 = vunpack.c.h.b16 %v721
  %v1743 = vunpack.c.l.b16 %v722
  %v1744 = vunpack.c.h.b16 %v722
  %v1745 = vunpack.c.l.b16 %v723
  %v1746 = vunpack.c.h.b16 %v723
  %v1747 = vunpack.c.l.b16 %v724
  %v1748 = vunpack.c.h.b16 %v724
  %v1749 = vunpack.c.l.b16 %v725
  %v1750 = vunpack.c.h.b16 %v725
  %v1751 = vunpack.c.l.b16 %v726
  %v1752 = vunpack.c.h.b16 %v726
  %v1753 = vunpack.c.l.b16 %v727
  %v1754 = vunpack.c.h.b16 %v727
  %v1755 = vunpack.c.l.b16 %v728
  %v1756 = vunpack.c.h.b16 %v728
  %v1757 = vunpack.c.l.b16 %v729
  %v1758 = vunpack.c.h.b16 %v729
  %v1759 = vunpack.c.l.b16 %v730
  %v1760 = vunpack.c.h.b16 %v730
  %v1761 = vunpack.c.l.b16 %v731
  %v1762 = vunpack.c.h.b16 %v731
  %v1763 = vunpack.c.l.b16 %v732
  %v1764 = vunpack.c.h.b16 %v732
  %v1765 = vunpack.c.l.b16 %v733
  %v1766 = vunpack.c.h.b16 %v733
  %v1767 = vunpack.c.l.b16 %v734
  %v1768 = vunpack.c.h.b16 %v734
  %v1769 = vunpack.c.l.b16 %v735
  %v1770 = vunpack.c.h.b16 %v735
  %v1771 = vunpack.c.l.b16 %v736
  %v1772 = vunpack.c.h.b16 %v736
  %v1773 = vunpack.c.l.b16 %v737
  %v1774 = vunpack.c.h.b16 %v737
  %v1775 = vunpack.c.l.b16 %v738
  %v1776 = vunpack.c.h.b16 %v738
  %v1777 = vunpack.c.l.b16 %v739
  %v1778 = vunpack.c.h.b16 %v739
  %v1779 = vunpack.c.l.b16 %v740
  %v1780 = vunpack.c.h.b16 %v740
  %v1781 = vunpack.c.l.b16 %v741
  %v1782 = vunpack.c.h.b16 %v741
  %v1783 = vunpack.c.l.b16 %v742
  %v1784 = vunpack.c.h.b16 %v742
  %v1785 = vunpack.c.l.b16 %v743
  %v1786 = vunpack.c.h.b16 %v743
  %v1787 = vunpack.c.l.b16 %v744
  %v1788 = vunpack.c.h.b16 %v744
  %v1789 = vunpack.c.l.b16 %v745
  %v1790 = vunpack.c.h.b16 %v745
  %v1791 = vunpack.c.l.b16 %v746
  %v1792 = vunpack.c.h.b16 %v746
  %v1793 = vunpack.c.l.b16 %v747
  %v1794 = vunpack.c.h.b16 %v747
  %v1795 = vunpack.c.l.b16 %v748
  %v1796 = vunpack.c.h.b16 %v748
  %v1797 = vunpack.c.l.b16 %v749
  %v1798 = vunpack.c.h.b16 %v749
  %v1799 = vunpack.c.l.b16 %v750
  %v1800 = vunpack.c.h.b16 %v750
  %v1801 = vunpack.c.l.b16 %v751
  %v1802 = vunpack.c.h.b16 %v751
  %v1803 = vunpack.c.l.b16 %v752
  %v1804 = vunpack.c.h.b16 %v752
  %v1805 = vunpack.c.l.b16 %v753
  %v1806 = vunpack.c.h.b16 %v753
  %v1807 = vunpack.c.l.b16 %v754
  %v1808 = vunpack.c.h.b16 %v754
  %v1809 = vunpack.c.l.b16 %v755
  %v1810 = vunpack.c.h.b16 %v755
  %v1811 = vunpack.c.l.b16 %v756
  %v1812 = vunpack.c.h.b16 %v756
  %v1813 = vunpack.c.l.b16 %v757
  %v1814 = vunpack.c.h.b16 %v757
  %v1815 = vunpack.c.l.b16 %v758
  %v1816 = vunpack.c.h.b16 %v758
  %v1817 = vunpack.c.l.b16 %v759
  %v1818 = vunpack.c.h.b16 %v759
  %v1819 = vunpack.c.l.b16 %v760
  %v1820 = vunpack.c.h.b16 %v760
  %v1821 = vunpack.c.l.b16 %v761
  %v1822 = vunpack.c.h.b16 %v761
  %v1823 = vunpack.c.l.b16 %v762
  %v1824 = vunpack.c.h.b16 %v762
  %v1825 = vunpack.c.l.b16 %v763
  %v1826 = vunpack.c.h.b16 %v763
  %v1827 = vunpack.c.l.b16 %v764
  %v1828 = vunpack.c.h.b16 %v764
  %v1829 = vunpack.c.l.b16 %v765
  %v1830 = vunpack.c.h.b16 %v765
  %v1831 = vunpack.c.l.b16 %v766
  %v1832 = vunpack.c.h.b16 %v766
  %v1833 = vunpack.c.l.b16 %v767
  %v1834 = vunpack.c.h.b16 %v767
  %v1835 = vunpack.c.l.b16 %v768
  %v1836 = vunpack.c.h.b16 %v768
  %v1837 = vunpack.c.l.b16 %v769
  %v1838 = vunpack.c.h.b16 %v769
  %v1839 = vunpack.c.l.b16 %v770
  %v1840 = vunpack.c.h.b16 %v770
  %v1841 = vunpack.c.l.b16 %v771
  %v1842 = vunpack.c.h.b16 %v771
  %v1843 = vunpack.c.l.b16 %v772
  %v1844 = vunpack.c.h.b16 %v772
  %v1845 = vlaneseq
  %v1846 = vshrl.u32 %v1845, 7
  %v1847 = vsub.s32 %v1251, %v1846
  %v1848 = vrot.slane %v1717, %v1847
  %v1849 = vlaneseq
  %v1850 = vshrl.u32 %v1849, 7
  %v1851 = vsub.s32 %v1256, %v1850
  %v1852 = vrot.slane %v1718, %v1851
  %v1853 = vsel %vm1261, %v1852, %v1848
  %v1854 = vlaneseq
  %v1855 = vshrl.u32 %v1854, 7
  %v1856 = vsub.s32 %v1263, %v1855
  %v1857 = vrot.slane %v1719, %v1856
  %v1858 = vsel %vm1268, %v1857, %v1853
  %v1859 = vlaneseq
  %v1860 = vshrl.u32 %v1859, 7
  %v1861 = vsub.s32 %v1270, %v1860
  %v1862 = vrot.slane %v1720, %v1861
  %v1863 = vsel %vm1275, %v1862, %v1858
  %v1864 = vlaneseq
  %v1865 = vshrl.u32 %v1864, 7
  %v1866 = vsub.s32 %v1277, %v1865
  %v1867 = vrot.slane %v1721, %v1866
  %v1868 = vsel %vm1282, %v1867, %v1863
  %v1869 = vlaneseq
  %v1870 = vshrl.u32 %v1869, 7
  %v1871 = vsub.s32 %v1284, %v1870
  %v1872 = vrot.slane %v1722, %v1871
  %v1873 = vsel %vm1289, %v1872, %v1868
  %v1874 = vlaneseq
  %v1875 = vshrl.u32 %v1874, 7
  %v1876 = vsub.s32 %v1291, %v1875
  %v1877 = vrot.slane %v1723, %v1876
  %v1878 = vsel %vm1296, %v1877, %v1873
  %v1879 = vlaneseq
  %v1880 = vshrl.u32 %v1879, 7
  %v1881 = vsub.s32 %v1298, %v1880
  %v1882 = vrot.slane %v1724, %v1881
  %v1883 = vsel %vm1303, %v1882, %v1878
  %v1884 = vlaneseq
  %v1885 = vshrl.u32 %v1884, 7
  %v1886 = vsub.s32 %v1305, %v1885
  %v1887 = vrot.slane %v1725, %v1886
  %v1888 = vsel %vm1310, %v1887, %v1883
  %v1889 = vlaneseq
  %v1890 = vshrl.u32 %v1889, 7
  %v1891 = vsub.s32 %v1312, %v1890
  %v1892 = vrot.slane %v1726, %v1891
  %v1893 = vsel %vm1317, %v1892, %v1888
  %v1894 = vlaneseq
  %v1895 = vshrl.u32 %v1894, 7
  %v1896 = vsub.s32 %v1319, %v1895
  %v1897 = vrot.slane %v1727, %v1896
  %v1898 = vsel %vm1324, %v1897, %v1893
  %v1899 = vlaneseq
  %v1900 = vshrl.u32 %v1899, 7
  %v1901 = vsub.s32 %v1326, %v1900
  %v1902 = vrot.slane %v1728, %v1901
  %v1903 = vsel %vm1331, %v1902, %v1898
  %v1904 = vlaneseq
  %v1905 = vshrl.u32 %v1904, 7
  %v1906 = vsub.s32 %v1333, %v1905
  %v1907 = vrot.slane %v1729, %v1906
  %v1908 = vsel %vm1338, %v1907, %v1903
  %v1909 = vlaneseq
  %v1910 = vshrl.u32 %v1909, 7
  %v1911 = vsub.s32 %v1340, %v1910
  %v1912 = vrot.slane %v1730, %v1911
  %v1913 = vsel %vm1345, %v1912, %v1908
  %v1914 = vlaneseq
  %v1915 = vshrl.u32 %v1914, 7
  %v1916 = vsub.s32 %v1347, %v1915
  %v1917 = vrot.slane %v1731, %v1916
  %v1918 = vsel %vm1352, %v1917, %v1913
  %v1919 = vlaneseq
  %v1920 = vshrl.u32 %v1919, 7
  %v1921 = vsub.s32 %v1354, %v1920
  %v1922 = vrot.slane %v1732, %v1921
  %v1923 = vsel %vm1359, %v1922, %v1918
  %v1924 = vlaneseq
  %v1925 = vshrl.u32 %v1924, 7
  %v1926 = vsub.s32 %v1251, %v1925
  %v1927 = vrot.slane %v1733, %v1926
  %v1928 = vlaneseq
  %v1929 = vshrl.u32 %v1928, 7
  %v1930 = vsub.s32 %v1256, %v1929
  %v1931 = vrot.slane %v1734, %v1930
  %v1932 = vsel %vm1261, %v1931, %v1927
  %v1933 = vlaneseq
  %v1934 = vshrl.u32 %v1933, 7
  %v1935 = vsub.s32 %v1263, %v1934
  %v1936 = vrot.slane %v1735, %v1935
  %v1937 = vsel %vm1268, %v1936, %v1932
  %v1938 = vlaneseq
  %v1939 = vshrl.u32 %v1938, 7
  %v1940 = vsub.s32 %v1270, %v1939
  %v1941 = vrot.slane %v1736, %v1940
  %v1942 = vsel %vm1275, %v1941, %v1937
  %v1943 = vlaneseq
  %v1944 = vshrl.u32 %v1943, 7
  %v1945 = vsub.s32 %v1277, %v1944
  %v1946 = vrot.slane %v1737, %v1945
  %v1947 = vsel %vm1282, %v1946, %v1942
  %v1948 = vlaneseq
  %v1949 = vshrl.u32 %v1948, 7
  %v1950 = vsub.s32 %v1284, %v1949
  %v1951 = vrot.slane %v1738, %v1950
  %v1952 = vsel %vm1289, %v1951, %v1947
  %v1953 = vlaneseq
  %v1954 = vshrl.u32 %v1953, 7
  %v1955 = vsub.s32 %v1291, %v1954
  %v1956 = vrot.slane %v1739, %v1955
  %v1957 = vsel %vm1296, %v1956, %v1952
  %v1958 = vlaneseq
  %v1959 = vshrl.u32 %v1958, 7
  %v1960 = vsub.s32 %v1298, %v1959
  %v1961 = vrot.slane %v1740, %v1960
  %v1962 = vsel %vm1303, %v1961, %v1957
  %v1963 = vlaneseq
  %v1964 = vshrl.u32 %v1963, 7
  %v1965 = vsub.s32 %v1305, %v1964
  %v1966 = vrot.slane %v1741, %v1965
  %v1967 = vsel %vm1310, %v1966, %v1962
  %v1968 = vlaneseq
  %v1969 = vshrl.u32 %v1968, 7
  %v1970 = vsub.s32 %v1312, %v1969
  %v1971 = vrot.slane %v1742, %v1970
  %v1972 = vsel %vm1317, %v1971, %v1967
  %v1973 = vlaneseq
  %v1974 = vshrl.u32 %v1973, 7
  %v1975 = vsub.s32 %v1319, %v1974
  %v1976 = vrot.slane %v1743, %v1975
  %v1977 = vsel %vm1324, %v1976, %v1972
  %v1978 = vlaneseq
  %v1979 = vshrl.u32 %v1978, 7
  %v1980 = vsub.s32 %v1326, %v1979
  %v1981 = vrot.slane %v1744, %v1980
  %v1982 = vsel %vm1331, %v1981, %v1977
  %v1983 = vlaneseq
  %v1984 = vshrl.u32 %v1983, 7
  %v1985 = vsub.s32 %v1333, %v1984
  %v1986 = vrot.slane %v1745, %v1985
  %v1987 = vsel %vm1338, %v1986, %v1982
  %v1988 = vlaneseq
  %v1989 = vshrl.u32 %v1988, 7
  %v1990 = vsub.s32 %v1340, %v1989
  %v1991 = vrot.slane %v1746, %v1990
  %v1992 = vsel %vm1345, %v1991, %v1987
  %v1993 = vlaneseq
  %v1994 = vshrl.u32 %v1993, 7
  %v1995 = vsub.s32 %v1347, %v1994
  %v1996 = vrot.slane %v1747, %v1995
  %v1997 = vsel %vm1352, %v1996, %v1992
  %v1998 = vlaneseq
  %v1999 = vshrl.u32 %v1998, 7
  %v2000 = vsub.s32 %v1354, %v1999
  %v2001 = vrot.slane %v1748, %v2000
  %v2002 = vsel %vm1359, %v2001, %v1997
  %v2003 = vlaneseq
  %v2004 = vshrl.u32 %v2003, 7
  %v2005 = vsub.s32 %v1251, %v2004
  %v2006 = vrot.slane %v1749, %v2005
  %v2007 = vlaneseq
  %v2008 = vshrl.u32 %v2007, 7
  %v2009 = vsub.s32 %v1256, %v2008
  %v2010 = vrot.slane %v1750, %v2009
  %v2011 = vsel %vm1261, %v2010, %v2006
  %v2012 = vlaneseq
  %v2013 = vshrl.u32 %v2012, 7
  %v2014 = vsub.s32 %v1263, %v2013
  %v2015 = vrot.slane %v1751, %v2014
  %v2016 = vsel %vm1268, %v2015, %v2011
  %v2017 = vlaneseq
  %v2018 = vshrl.u32 %v2017, 7
  %v2019 = vsub.s32 %v1270, %v2018
  %v2020 = vrot.slane %v1752, %v2019
  %v2021 = vsel %vm1275, %v2020, %v2016
  %v2022 = vlaneseq
  %v2023 = vshrl.u32 %v2022, 7
  %v2024 = vsub.s32 %v1277, %v2023
  %v2025 = vrot.slane %v1753, %v2024
  %v2026 = vsel %vm1282, %v2025, %v2021
  %v2027 = vlaneseq
  %v2028 = vshrl.u32 %v2027, 7
  %v2029 = vsub.s32 %v1284, %v2028
  %v2030 = vrot.slane %v1754, %v2029
  %v2031 = vsel %vm1289, %v2030, %v2026
  %v2032 = vlaneseq
  %v2033 = vshrl.u32 %v2032, 7
  %v2034 = vsub.s32 %v1291, %v2033
  %v2035 = vrot.slane %v1755, %v2034
  %v2036 = vsel %vm1296, %v2035, %v2031
  %v2037 = vlaneseq
  %v2038 = vshrl.u32 %v2037, 7
  %v2039 = vsub.s32 %v1298, %v2038
  %v2040 = vrot.slane %v1756, %v2039
  %v2041 = vsel %vm1303, %v2040, %v2036
  %v2042 = vlaneseq
  %v2043 = vshrl.u32 %v2042, 7
  %v2044 = vsub.s32 %v1305, %v2043
  %v2045 = vrot.slane %v1757, %v2044
  %v2046 = vsel %vm1310, %v2045, %v2041
  %v2047 = vlaneseq
  %v2048 = vshrl.u32 %v2047, 7
  %v2049 = vsub.s32 %v1312, %v2048
  %v2050 = vrot.slane %v1758, %v2049
  %v2051 = vsel %vm1317, %v2050, %v2046
  %v2052 = vlaneseq
  %v2053 = vshrl.u32 %v2052, 7
  %v2054 = vsub.s32 %v1319, %v2053
  %v2055 = vrot.slane %v1759, %v2054
  %v2056 = vsel %vm1324, %v2055, %v2051
  %v2057 = vlaneseq
  %v2058 = vshrl.u32 %v2057, 7
  %v2059 = vsub.s32 %v1326, %v2058
  %v2060 = vrot.slane %v1760, %v2059
  %v2061 = vsel %vm1331, %v2060, %v2056
  %v2062 = vlaneseq
  %v2063 = vshrl.u32 %v2062, 7
  %v2064 = vsub.s32 %v1333, %v2063
  %v2065 = vrot.slane %v1761, %v2064
  %v2066 = vsel %vm1338, %v2065, %v2061
  %v2067 = vlaneseq
  %v2068 = vshrl.u32 %v2067, 7
  %v2069 = vsub.s32 %v1340, %v2068
  %v2070 = vrot.slane %v1762, %v2069
  %v2071 = vsel %vm1345, %v2070, %v2066
  %v2072 = vlaneseq
  %v2073 = vshrl.u32 %v2072, 7
  %v2074 = vsub.s32 %v1347, %v2073
  %v2075 = vrot.slane %v1763, %v2074
  %v2076 = vsel %vm1352, %v2075, %v2071
  %v2077 = vlaneseq
  %v2078 = vshrl.u32 %v2077, 7
  %v2079 = vsub.s32 %v1354, %v2078
  %v2080 = vrot.slane %v1764, %v2079
  %v2081 = vsel %vm1359, %v2080, %v2076
  %v2082 = vlaneseq
  %v2083 = vshrl.u32 %v2082, 7
  %v2084 = vsub.s32 %v1251, %v2083
  %v2085 = vrot.slane %v1765, %v2084
  %v2086 = vlaneseq
  %v2087 = vshrl.u32 %v2086, 7
  %v2088 = vsub.s32 %v1256, %v2087
  %v2089 = vrot.slane %v1766, %v2088
  %v2090 = vsel %vm1261, %v2089, %v2085
  %v2091 = vlaneseq
  %v2092 = vshrl.u32 %v2091, 7
  %v2093 = vsub.s32 %v1263, %v2092
  %v2094 = vrot.slane %v1767, %v2093
  %v2095 = vsel %vm1268, %v2094, %v2090
  %v2096 = vlaneseq
  %v2097 = vshrl.u32 %v2096, 7
  %v2098 = vsub.s32 %v1270, %v2097
  %v2099 = vrot.slane %v1768, %v2098
  %v2100 = vsel %vm1275, %v2099, %v2095
  %v2101 = vlaneseq
  %v2102 = vshrl.u32 %v2101, 7
  %v2103 = vsub.s32 %v1277, %v2102
  %v2104 = vrot.slane %v1769, %v2103
  %v2105 = vsel %vm1282, %v2104, %v2100
  %v2106 = vlaneseq
  %v2107 = vshrl.u32 %v2106, 7
  %v2108 = vsub.s32 %v1284, %v2107
  %v2109 = vrot.slane %v1770, %v2108
  %v2110 = vsel %vm1289, %v2109, %v2105
  %v2111 = vlaneseq
  %v2112 = vshrl.u32 %v2111, 7
  %v2113 = vsub.s32 %v1291, %v2112
  %v2114 = vrot.slane %v1771, %v2113
  %v2115 = vsel %vm1296, %v2114, %v2110
  %v2116 = vlaneseq
  %v2117 = vshrl.u32 %v2116, 7
  %v2118 = vsub.s32 %v1298, %v2117
  %v2119 = vrot.slane %v1772, %v2118
  %v2120 = vsel %vm1303, %v2119, %v2115
  %v2121 = vlaneseq
  %v2122 = vshrl.u32 %v2121, 7
  %v2123 = vsub.s32 %v1305, %v2122
  %v2124 = vrot.slane %v1773, %v2123
  %v2125 = vsel %vm1310, %v2124, %v2120
  %v2126 = vlaneseq
  %v2127 = vshrl.u32 %v2126, 7
  %v2128 = vsub.s32 %v1312, %v2127
  %v2129 = vrot.slane %v1774, %v2128
  %v2130 = vsel %vm1317, %v2129, %v2125
  %v2131 = vlaneseq
  %v2132 = vshrl.u32 %v2131, 7
  %v2133 = vsub.s32 %v1319, %v2132
  %v2134 = vrot.slane %v1775, %v2133
  %v2135 = vsel %vm1324, %v2134, %v2130
  %v2136 = vlaneseq
  %v2137 = vshrl.u32 %v2136, 7
  %v2138 = vsub.s32 %v1326, %v2137
  %v2139 = vrot.slane %v1776, %v2138
  %v2140 = vsel %vm1331, %v2139, %v2135
  %v2141 = vlaneseq
  %v2142 = vshrl.u32 %v2141, 7
  %v2143 = vsub.s32 %v1333, %v2142
  %v2144 = vrot.slane %v1777, %v2143
  %v2145 = vsel %vm1338, %v2144, %v2140
  %v2146 = vlaneseq
  %v2147 = vshrl.u32 %v2146, 7
  %v2148 = vsub.s32 %v1340, %v2147
  %v2149 = vrot.slane %v1778, %v2148
  %v2150 = vsel %vm1345, %v2149, %v2145
  %v2151 = vlaneseq
  %v2152 = vshrl.u32 %v2151, 7
  %v2153 = vsub.s32 %v1347, %v2152
  %v2154 = vrot.slane %v1779, %v2153
  %v2155 = vsel %vm1352, %v2154, %v2150
  %v2156 = vlaneseq
  %v2157 = vshrl.u32 %v2156, 7
  %v2158 = vsub.s32 %v1354, %v2157
  %v2159 = vrot.slane %v1780, %v2158
  %v2160 = vsel %vm1359, %v2159, %v2155
  %v2161 = vlaneseq
  %v2162 = vshrl.u32 %v2161, 7
  %v2163 = vsub.s32 %v1251, %v2162
  %v2164 = vrot.slane %v1781, %v2163
  %v2165 = vlaneseq
  %v2166 = vshrl.u32 %v2165, 7
  %v2167 = vsub.s32 %v1256, %v2166
  %v2168 = vrot.slane %v1782, %v2167
  %v2169 = vsel %vm1261, %v2168, %v2164
  %v2170 = vlaneseq
  %v2171 = vshrl.u32 %v2170, 7
  %v2172 = vsub.s32 %v1263, %v2171
  %v2173 = vrot.slane %v1783, %v2172
  %v2174 = vsel %vm1268, %v2173, %v2169
  %v2175 = vlaneseq
  %v2176 = vshrl.u32 %v2175, 7
  %v2177 = vsub.s32 %v1270, %v2176
  %v2178 = vrot.slane %v1784, %v2177
  %v2179 = vsel %vm1275, %v2178, %v2174
  %v2180 = vlaneseq
  %v2181 = vshrl.u32 %v2180, 7
  %v2182 = vsub.s32 %v1277, %v2181
  %v2183 = vrot.slane %v1785, %v2182
  %v2184 = vsel %vm1282, %v2183, %v2179
  %v2185 = vlaneseq
  %v2186 = vshrl.u32 %v2185, 7
  %v2187 = vsub.s32 %v1284, %v2186
  %v2188 = vrot.slane %v1786, %v2187
  %v2189 = vsel %vm1289, %v2188, %v2184
  %v2190 = vlaneseq
  %v2191 = vshrl.u32 %v2190, 7
  %v2192 = vsub.s32 %v1291, %v2191
  %v2193 = vrot.slane %v1787, %v2192
  %v2194 = vsel %vm1296, %v2193, %v2189
  %v2195 = vlaneseq
  %v2196 = vshrl.u32 %v2195, 7
  %v2197 = vsub.s32 %v1298, %v2196
  %v2198 = vrot.slane %v1788, %v2197
  %v2199 = vsel %vm1303, %v2198, %v2194
  %v2200 = vlaneseq
  %v2201 = vshrl.u32 %v2200, 7
  %v2202 = vsub.s32 %v1305, %v2201
  %v2203 = vrot.slane %v1789, %v2202
  %v2204 = vsel %vm1310, %v2203, %v2199
  %v2205 = vlaneseq
  %v2206 = vshrl.u32 %v2205, 7
  %v2207 = vsub.s32 %v1312, %v2206
  %v2208 = vrot.slane %v1790, %v2207
  %v2209 = vsel %vm1317, %v2208, %v2204
  %v2210 = vlaneseq
  %v2211 = vshrl.u32 %v2210, 7
  %v2212 = vsub.s32 %v1319, %v2211
  %v2213 = vrot.slane %v1791, %v2212
  %v2214 = vsel %vm1324, %v2213, %v2209
  %v2215 = vlaneseq
  %v2216 = vshrl.u32 %v2215, 7
  %v2217 = vsub.s32 %v1326, %v2216
  %v2218 = vrot.slane %v1792, %v2217
  %v2219 = vsel %vm1331, %v2218, %v2214
  %v2220 = vlaneseq
  %v2221 = vshrl.u32 %v2220, 7
  %v2222 = vsub.s32 %v1333, %v2221
  %v2223 = vrot.slane %v1793, %v2222
  %v2224 = vsel %vm1338, %v2223, %v2219
  %v2225 = vlaneseq
  %v2226 = vshrl.u32 %v2225, 7
  %v2227 = vsub.s32 %v1340, %v2226
  %v2228 = vrot.slane %v1794, %v2227
  %v2229 = vsel %vm1345, %v2228, %v2224
  %v2230 = vlaneseq
  %v2231 = vshrl.u32 %v2230, 7
  %v2232 = vsub.s32 %v1347, %v2231
  %v2233 = vrot.slane %v1795, %v2232
  %v2234 = vsel %vm1352, %v2233, %v2229
  %v2235 = vlaneseq
  %v2236 = vshrl.u32 %v2235, 7
  %v2237 = vsub.s32 %v1354, %v2236
  %v2238 = vrot.slane %v1796, %v2237
  %v2239 = vsel %vm1359, %v2238, %v2234
  %v2240 = vlaneseq
  %v2241 = vshrl.u32 %v2240, 7
  %v2242 = vsub.s32 %v1251, %v2241
  %v2243 = vrot.slane %v1797, %v2242
  %v2244 = vlaneseq
  %v2245 = vshrl.u32 %v2244, 7
  %v2246 = vsub.s32 %v1256, %v2245
  %v2247 = vrot.slane %v1798, %v2246
  %v2248 = vsel %vm1261, %v2247, %v2243
  %v2249 = vlaneseq
  %v2250 = vshrl.u32 %v2249, 7
  %v2251 = vsub.s32 %v1263, %v2250
  %v2252 = vrot.slane %v1799, %v2251
  %v2253 = vsel %vm1268, %v2252, %v2248
  %v2254 = vlaneseq
  %v2255 = vshrl.u32 %v2254, 7
  %v2256 = vsub.s32 %v1270, %v2255
  %v2257 = vrot.slane %v1800, %v2256
  %v2258 = vsel %vm1275, %v2257, %v2253
  %v2259 = vlaneseq
  %v2260 = vshrl.u32 %v2259, 7
  %v2261 = vsub.s32 %v1277, %v2260
  %v2262 = vrot.slane %v1801, %v2261
  %v2263 = vsel %vm1282, %v2262, %v2258
  %v2264 = vlaneseq
  %v2265 = vshrl.u32 %v2264, 7
  %v2266 = vsub.s32 %v1284, %v2265
  %v2267 = vrot.slane %v1802, %v2266
  %v2268 = vsel %vm1289, %v2267, %v2263
  %v2269 = vlaneseq
  %v2270 = vshrl.u32 %v2269, 7
  %v2271 = vsub.s32 %v1291, %v2270
  %v2272 = vrot.slane %v1803, %v2271
  %v2273 = vsel %vm1296, %v2272, %v2268
  %v2274 = vlaneseq
  %v2275 = vshrl.u32 %v2274, 7
  %v2276 = vsub.s32 %v1298, %v2275
  %v2277 = vrot.slane %v1804, %v2276
  %v2278 = vsel %vm1303, %v2277, %v2273
  %v2279 = vlaneseq
  %v2280 = vshrl.u32 %v2279, 7
  %v2281 = vsub.s32 %v1305, %v2280
  %v2282 = vrot.slane %v1805, %v2281
  %v2283 = vsel %vm1310, %v2282, %v2278
  %v2284 = vlaneseq
  %v2285 = vshrl.u32 %v2284, 7
  %v2286 = vsub.s32 %v1312, %v2285
  %v2287 = vrot.slane %v1806, %v2286
  %v2288 = vsel %vm1317, %v2287, %v2283
  %v2289 = vlaneseq
  %v2290 = vshrl.u32 %v2289, 7
  %v2291 = vsub.s32 %v1319, %v2290
  %v2292 = vrot.slane %v1807, %v2291
  %v2293 = vsel %vm1324, %v2292, %v2288
  %v2294 = vlaneseq
  %v2295 = vshrl.u32 %v2294, 7
  %v2296 = vsub.s32 %v1326, %v2295
  %v2297 = vrot.slane %v1808, %v2296
  %v2298 = vsel %vm1331, %v2297, %v2293
  %v2299 = vlaneseq
  %v2300 = vshrl.u32 %v2299, 7
  %v2301 = vsub.s32 %v1333, %v2300
  %v2302 = vrot.slane %v1809, %v2301
  %v2303 = vsel %vm1338, %v2302, %v2298
  %v2304 = vlaneseq
  %v2305 = vshrl.u32 %v2304, 7
  %v2306 = vsub.s32 %v1340, %v2305
  %v2307 = vrot.slane %v1810, %v2306
  %v2308 = vsel %vm1345, %v2307, %v2303
  %v2309 = vlaneseq
  %v2310 = vshrl.u32 %v2309, 7
  %v2311 = vsub.s32 %v1347, %v2310
  %v2312 = vrot.slane %v1811, %v2311
  %v2313 = vsel %vm1352, %v2312, %v2308
  %v2314 = vlaneseq
  %v2315 = vshrl.u32 %v2314, 7
  %v2316 = vsub.s32 %v1354, %v2315
  %v2317 = vrot.slane %v1812, %v2316
  %v2318 = vsel %vm1359, %v2317, %v2313
  %v2319 = vlaneseq
  %v2320 = vshrl.u32 %v2319, 7
  %v2321 = vsub.s32 %v1251, %v2320
  %v2322 = vrot.slane %v1813, %v2321
  %v2323 = vlaneseq
  %v2324 = vshrl.u32 %v2323, 7
  %v2325 = vsub.s32 %v1256, %v2324
  %v2326 = vrot.slane %v1814, %v2325
  %v2327 = vsel %vm1261, %v2326, %v2322
  %v2328 = vlaneseq
  %v2329 = vshrl.u32 %v2328, 7
  %v2330 = vsub.s32 %v1263, %v2329
  %v2331 = vrot.slane %v1815, %v2330
  %v2332 = vsel %vm1268, %v2331, %v2327
  %v2333 = vlaneseq
  %v2334 = vshrl.u32 %v2333, 7
  %v2335 = vsub.s32 %v1270, %v2334
  %v2336 = vrot.slane %v1816, %v2335
  %v2337 = vsel %vm1275, %v2336, %v2332
  %v2338 = vlaneseq
  %v2339 = vshrl.u32 %v2338, 7
  %v2340 = vsub.s32 %v1277, %v2339
  %v2341 = vrot.slane %v1817, %v2340
  %v2342 = vsel %vm1282, %v2341, %v2337
  %v2343 = vlaneseq
  %v2344 = vshrl.u32 %v2343, 7
  %v2345 = vsub.s32 %v1284, %v2344
  %v2346 = vrot.slane %v1818, %v2345
  %v2347 = vsel %vm1289, %v2346, %v2342
  %v2348 = vlaneseq
  %v2349 = vshrl.u32 %v2348, 7
  %v2350 = vsub.s32 %v1291, %v2349
  %v2351 = vrot.slane %v1819, %v2350
  %v2352 = vsel %vm1296, %v2351, %v2347
  %v2353 = vlaneseq
  %v2354 = vshrl.u32 %v2353, 7
  %v2355 = vsub.s32 %v1298, %v2354
  %v2356 = vrot.slane %v1820, %v2355
  %v2357 = vsel %vm1303, %v2356, %v2352
  %v2358 = vlaneseq
  %v2359 = vshrl.u32 %v2358, 7
  %v2360 = vsub.s32 %v1305, %v2359
  %v2361 = vrot.slane %v1821, %v2360
  %v2362 = vsel %vm1310, %v2361, %v2357
  %v2363 = vlaneseq
  %v2364 = vshrl.u32 %v2363, 7
  %v2365 = vsub.s32 %v1312, %v2364
  %v2366 = vrot.slane %v1822, %v2365
  %v2367 = vsel %vm1317, %v2366, %v2362
  %v2368 = vlaneseq
  %v2369 = vshrl.u32 %v2368, 7
  %v2370 = vsub.s32 %v1319, %v2369
  %v2371 = vrot.slane %v1823, %v2370
  %v2372 = vsel %vm1324, %v2371, %v2367
  %v2373 = vlaneseq
  %v2374 = vshrl.u32 %v2373, 7
  %v2375 = vsub.s32 %v1326, %v2374
  %v2376 = vrot.slane %v1824, %v2375
  %v2377 = vsel %vm1331, %v2376, %v2372
  %v2378 = vlaneseq
  %v2379 = vshrl.u32 %v2378, 7
  %v2380 = vsub.s32 %v1333, %v2379
  %v2381 = vrot.slane %v1825, %v2380
  %v2382 = vsel %vm1338, %v2381, %v2377
  %v2383 = vlaneseq
  %v2384 = vshrl.u32 %v2383, 7
  %v2385 = vsub.s32 %v1340, %v2384
  %v2386 = vrot.slane %v1826, %v2385
  %v2387 = vsel %vm1345, %v2386, %v2382
  %v2388 = vlaneseq
  %v2389 = vshrl.u32 %v2388, 7
  %v2390 = vsub.s32 %v1347, %v2389
  %v2391 = vrot.slane %v1827, %v2390
  %v2392 = vsel %vm1352, %v2391, %v2387
  %v2393 = vlaneseq
  %v2394 = vshrl.u32 %v2393, 7
  %v2395 = vsub.s32 %v1354, %v2394
  %v2396 = vrot.slane %v1828, %v2395
  %v2397 = vsel %vm1359, %v2396, %v2392
  %v2398 = vlaneseq
  %v2399 = vshrl.u32 %v2398, 7
  %v2400 = vsub.s32 %v1251, %v2399
  %v2401 = vrot.slane %v1829, %v2400
  %v2402 = vlaneseq
  %v2403 = vshrl.u32 %v2402, 7
  %v2404 = vsub.s32 %v1256, %v2403
  %v2405 = vrot.slane %v1830, %v2404
  %v2406 = vsel %vm1261, %v2405, %v2401
  %v2407 = vlaneseq
  %v2408 = vshrl.u32 %v2407, 7
  %v2409 = vsub.s32 %v1263, %v2408
  %v2410 = vrot.slane %v1831, %v2409
  %v2411 = vsel %vm1268, %v2410, %v2406
  %v2412 = vlaneseq
  %v2413 = vshrl.u32 %v2412, 7
  %v2414 = vsub.s32 %v1270, %v2413
  %v2415 = vrot.slane %v1832, %v2414
  %v2416 = vsel %vm1275, %v2415, %v2411
  %v2417 = vlaneseq
  %v2418 = vshrl.u32 %v2417, 7
  %v2419 = vsub.s32 %v1277, %v2418
  %v2420 = vrot.slane %v1833, %v2419
  %v2421 = vsel %vm1282, %v2420, %v2416
  %v2422 = vlaneseq
  %v2423 = vshrl.u32 %v2422, 7
  %v2424 = vsub.s32 %v1284, %v2423
  %v2425 = vrot.slane %v1834, %v2424
  %v2426 = vsel %vm1289, %v2425, %v2421
  %v2427 = vlaneseq
  %v2428 = vshrl.u32 %v2427, 7
  %v2429 = vsub.s32 %v1291, %v2428
  %v2430 = vrot.slane %v1835, %v2429
  %v2431 = vsel %vm1296, %v2430, %v2426
  %v2432 = vlaneseq
  %v2433 = vshrl.u32 %v2432, 7
  %v2434 = vsub.s32 %v1298, %v2433
  %v2435 = vrot.slane %v1836, %v2434
  %v2436 = vsel %vm1303, %v2435, %v2431
  %v2437 = vlaneseq
  %v2438 = vshrl.u32 %v2437, 7
  %v2439 = vsub.s32 %v1305, %v2438
  %v2440 = vrot.slane %v1837, %v2439
  %v2441 = vsel %vm1310, %v2440, %v2436
  %v2442 = vlaneseq
  %v2443 = vshrl.u32 %v2442, 7
  %v2444 = vsub.s32 %v1312, %v2443
  %v2445 = vrot.slane %v1838, %v2444
  %v2446 = vsel %vm1317, %v2445, %v2441
  %v2447 = vlaneseq
  %v2448 = vshrl.u32 %v2447, 7
  %v2449 = vsub.s32 %v1319, %v2448
  %v2450 = vrot.slane %v1839, %v2449
  %v2451 = vsel %vm1324, %v2450, %v2446
  %v2452 = vlaneseq
  %v2453 = vshrl.u32 %v2452, 7
  %v2454 = vsub.s32 %v1326, %v2453
  %v2455 = vrot.slane %v1840, %v2454
  %v2456 = vsel %vm1331, %v2455, %v2451
  %v2457 = vlaneseq
  %v2458 = vshrl.u32 %v2457, 7
  %v2459 = vsub.s32 %v1333, %v2458
  %v2460 = vrot.slane %v1841, %v2459
  %v2461 = vsel %vm1338, %v2460, %v2456
  %v2462 = vlaneseq
  %v2463 = vshrl.u32 %v2462, 7
  %v2464 = vsub.s32 %v1340, %v2463
  %v2465 = vrot.slane %v1842, %v2464
  %v2466 = vsel %vm1345, %v2465, %v2461
  %v2467 = vlaneseq
  %v2468 = vshrl.u32 %v2467, 7
  %v2469 = vsub.s32 %v1347, %v2468
  %v2470 = vrot.slane %v1843, %v2469
  %v2471 = vsel %vm1352, %v2470, %v2466
  %v2472 = vlaneseq
  %v2473 = vshrl.u32 %v2472, 7
  %v2474 = vsub.s32 %v1354, %v2473
  %v2475 = vrot.slane %v1844, %v2474
  %v2476 = vsel %vm1359, %v2475, %v2471
  %v2477 = vsel %vm1440, %v2239, %v1923
  %v2478 = vsel %vm1440, %v2318, %v2002
  %v2479 = vsel %vm1440, %v2397, %v2081
  %v2480 = vsel %vm1440, %v2476, %v2160
  %v2481 = vpack.c.b16 %v2477, %v2477
  %v2482 = vpack.c.b16 %v2478, %v2478
  %v2483 = vpack.c.b16 %v2479, %v2479
  %v2484 = vpack.c.b16 %v2480, %v2480
  %v2617 = vunpack.c.l.b16 %v919
  %v2618 = vunpack.c.h.b16 %v919
  %v2619 = vunpack.c.l.b16 %v920
  %v2620 = vunpack.c.l.b16 %v921
  %v2621 = vunpack.c.h.b16 %v921
  %v2622 = vunpack.c.l.b16 %v922
  %v2623 = vunpack.c.l.b16 %v923
  %v2624 = vunpack.c.h.b16 %v923
  %v2625 = vunpack.c.l.b16 %v924
  %v2626 = vunpack.c.l.b16 %v925
  %v2627 = vunpack.c.h.b16 %v925
  %v2628 = vunpack.c.l.b16 %v926
  %v2629 = vunpack.c.l.b16 %v927
  %v2630 = vunpack.c.h.b16 %v927
  %v2631 = vunpack.c.l.b16 %v928
  %v2632 = vunpack.c.l.b16 %v929
  %v2633 = vunpack.c.h.b16 %v929
  %v2634 = vunpack.c.l.b16 %v930
  %v2635 = vunpack.c.l.b16 %v931
  %v2636 = vunpack.c.h.b16 %v931
  %v2637 = vunpack.c.l.b16 %v932
  %v2638 = vunpack.c.l.b16 %v933
  %v2639 = vunpack.c.h.b16 %v933
  %v2640 = vunpack.c.l.b16 %v934
  %v2641 = vunpack.c.l.b16 %v935
  %v2642 = vunpack.c.h.b16 %v935
  %v2643 = vunpack.c.l.b16 %v936
  %v2644 = vunpack.c.l.b16 %v937
  %v2645 = vunpack.c.h.b16 %v937
  %v2646 = vunpack.c.l.b16 %v938
  %v2647 = vunpack.c.l.b16 %v939
  %v2648 = vunpack.c.h.b16 %v939
  %v2649 = vunpack.c.l.b16 %v940
  %v2650 = vunpack.c.l.b16 %v941
  %v2651 = vunpack.c.h.b16 %v941
  %v2652 = vunpack.c.l.b16 %v942
  %v2653 = vunpack.c.l.b16 %v943
  %v2654 = vunpack.c.h.b16 %v943
  %v2655 = vunpack.c.l.b16 %v944
  %v2656 = vunpack.c.l.b16 %v945
  %v2657 = vunpack.c.h.b16 %v945
  %v2658 = vunpack.c.l.b16 %v946
  %v2659 = vunpack.c.l.b16 %v947
  %v2660 = vunpack.c.h.b16 %v947
  %v2661 = vunpack.c.l.b16 %v948
  %v2662 = vunpack.c.l.b16 %v949
  %v2663 = vunpack.c.h.b16 %v949
  %v2664 = vunpack.c.l.b16 %v950
  %v2665 = vunpack.c.l.b16 %v951
  %v2666 = vunpack.c.h.b16 %v951
  %v2667 = vunpack.c.l.b16 %v952
  %v2668 = vunpack.c.l.b16 %v953
  %v2669 = vunpack.c.h.b16 %v953
  %v2670 = vunpack.c.l.b16 %v954
  %v2671 = vunpack.c.l.b16 %v955
  %v2672 = vunpack.c.h.b16 %v955
  %v2673 = vunpack.c.l.b16 %v956
  %v2674 = vunpack.c.l.b16 %v957
  %v2675 = vunpack.c.h.b16 %v957
  %v2676 = vunpack.c.l.b16 %v958
  %v2677 = vunpack.c.l.b16 %v959
  %v2678 = vunpack.c.h.b16 %v959
  %v2679 = vunpack.c.l.b16 %v960
  %v2680 = vunpack.c.l.b16 %v961
  %v2681 = vunpack.c.h.b16 %v961
  %v2682 = vunpack.c.l.b16 %v962
  %v2683 = vunpack.c.l.b16 %v963
  %v2684 = vunpack.c.h.b16 %v963
  %v2685 = vunpack.c.l.b16 %v964
  %v2686 = vunpack.c.l.b16 %v965
  %v2687 = vunpack.c.h.b16 %v965
  %v2688 = vunpack.c.l.b16 %v966
  %v2689 = vunpack.c.l.b16 %v967
  %v2690 = vunpack.c.h.b16 %v967
  %v2691 = vunpack.c.l.b16 %v968
  %v2692 = vunpack.c.l.b16 %v969
  %v2693 = vunpack.c.h.b16 %v969
  %v2694 = vunpack.c.l.b16 %v970
  %v2695 = vunpack.c.l.b16 %v971
  %v2696 = vunpack.c.h.b16 %v971
  %v2697 = vunpack.c.l.b16 %v972
  %v2698 = vunpack.c.l.b16 %v973
  %v2699 = vunpack.c.h.b16 %v973
  %v2700 = vunpack.c.l.b16 %v974
  %v2701 = vunpack.c.l.b16 %v975
  %v2702 = vunpack.c.h.b16 %v975
  %v2703 = vunpack.c.l.b16 %v976
  %v2704 = vunpack.c.l.b16 %v977
  %v2705 = vunpack.c.h.b16 %v977
  %v2706 = vunpack.c.l.b16 %v978
  %v2707 = vunpack.c.l.b16 %v979
  %v2708 = vunpack.c.h.b16 %v979
  %v2709 = vunpack.c.l.b16 %v980
  %v2710 = vunpack.c.l.b16 %v981
  %v2711 = vunpack.c.h.b16 %v981
  %v2712 = vunpack.c.l.b16 %v982
  %v2713 = vunpack.c.l.b16 %v983
  %v2714 = vunpack.c.h.b16 %v983
  %v2715 = vunpack.c.l.b16 %v984
  %v2716 = vunpack.c.l.b16 %v985
  %v2717 = vunpack.c.h.b16 %v985
  %v2718 = vunpack.c.l.b16 %v986
  %v2719 = vunpack.c.l.b16 %v987
  %v2720 = vunpack.c.h.b16 %v987
  %v2721 = vunpack.c.l.b16 %v988
  %v2722 = vunpack.c.l.b16 %v989
  %v2723 = vunpack.c.h.b16 %v989
  %v2724 = vunpack.c.l.b16 %v990
  %v2725 = vunpack.c.l.b16 %v991
  %v2726 = vunpack.c.h.b16 %v991
  %v2727 = vunpack.c.l.b16 %v992
  %v2728 = vunpack.c.l.b16 %v993
  %v2729 = vunpack.c.h.b16 %v993
  %v2730 = vunpack.c.l.b16 %v994
  %v2731 = vunpack.c.l.b16 %v995
  %v2732 = vunpack.c.h.b16 %v995
  %v2733 = vunpack.c.l.b16 %v996
  %v2734 = vunpack.c.l.b16 %v997
  %v2735 = vunpack.c.h.b16 %v997
  %v2736 = vunpack.c.l.b16 %v998
  %v2737 = vunpack.c.l.b16 %v999
  %v2738 = vunpack.c.h.b16 %v999
  %v2739 = vunpack.c.l.b16 %v1000
  %v2740 = vunpack.c.l.b16 %v1001
  %v2741 = vunpack.c.h.b16 %v1001
  %v2742 = vunpack.c.l.b16 %v1002
  %v2743 = vunpack.c.l.b16 %v1003
  %v2744 = vunpack.c.h.b16 %v1003
  %v2745 = vunpack.c.l.b16 %v1004
  %v2746 = vunpack.c.l.b16 %v1005
  %v2747 = vunpack.c.h.b16 %v1005
  %v2748 = vunpack.c.l.b16 %v1006
  %v2749 = vunpack.c.l.b16 %v1007
  %v2750 = vunpack.c.h.b16 %v1007
  %v2751 = vunpack.c.l.b16 %v1008
  %v2752 = vunpack.c.l.b16 %v1009
  %v2753 = vunpack.c.h.b16 %v1009
  %v2754 = vunpack.c.l.b16 %v1010
  %v2755 = vunpack.c.l.b16 %v1011
  %v2756 = vunpack.c.h.b16 %v1011
  %v2757 = vunpack.c.l.b16 %v1012
  %v2758 = vunpack.c.l.b16 %v1013
  %v2759 = vunpack.c.h.b16 %v1013
  %v2760 = vunpack.c.l.b16 %v1014
  %v2761 = vunpack.c.l.b16 %v1015
  %v2762 = vunpack.c.h.b16 %v1015
  %v2763 = vunpack.c.l.b16 %v1016
  %v2764 = vunpack.c.l.b16 %v1017
  %v2765 = vunpack.c.h.b16 %v1017
  %v2766 = vunpack.c.l.b16 %v1018
  %v2767 = vunpack.c.l.b16 %v1019
  %v2768 = vunpack.c.h.b16 %v1019
  %v2769 = vunpack.c.l.b16 %v1020
  %v2770 = vunpack.c.l.b16 %v1021
  %v2771 = vunpack.c.h.b16 %v1021
  %v2772 = vunpack.c.l.b16 %v1022
  %v2773 = vunpack.c.l.b16 %v1023
  %v2774 = vunpack.c.h.b16 %v1023
  %v2775 = vunpack.c.l.b16 %v1024
  %v2776 = vunpack.c.l.b16 %v1025
  %v2777 = vunpack.c.h.b16 %v1025
  %v2778 = vunpack.c.l.b16 %v1026
  %v2779 = vunpack.c.l.b16 %v1027
  %v2780 = vunpack.c.h.b16 %v1027
  %v2781 = vunpack.c.l.b16 %v1028
  %v2782 = vunpack.c.l.b16 %v1029
  %v2783 = vunpack.c.h.b16 %v1029
  %v2784 = vunpack.c.l.b16 %v1030
  %v2785 = vunpack.c.l.b16 %v1031
  %v2786 = vunpack.c.h.b16 %v1031
  %v2787 = vunpack.c.l.b16 %v1032
  %v2788 = vunpack.c.l.b16 %v1033
  %v2789 = vunpack.c.h.b16 %v1033
  %v2790 = vunpack.c.l.b16 %v1034
  %v2791 = vunpack.c.l.b16 %v1035
  %v2792 = vunpack.c.h.b16 %v1035
  %v2793 = vunpack.c.l.b16 %v1036
  %v2794 = vunpack.c.l.b16 %v1037
  %v2795 = vunpack.c.h.b16 %v1037
  %v2796 = vunpack.c.l.b16 %v1038
  %v2797 = vunpack.c.l.b16 %v1039
  %v2798 = vunpack.c.h.b16 %v1039
  %v2799 = vunpack.c.l.b16 %v1040
  %v2800 = vunpack.c.l.b16 %v1041
  %v2801 = vunpack.c.h.b16 %v1041
  %v2802 = vunpack.c.l.b16 %v1042
  %v2803 = vunpack.c.l.b16 %v1043
  %v2804 = vunpack.c.h.b16 %v1043
  %v2805 = vunpack.c.l.b16 %v1044
  %v2806 = vunpack.c.l.b16 %v1045
  %v2807 = vunpack.c.h.b16 %v1045
  %v2808 = vunpack.c.l.b16 %v1046
  %v2809 = vpack.c.b16 %v2620, %v2617
  %v2810 = vpack.c.b16 %v2621, %v2618
  %v2811 = vpack.c.b16 %v2622, %v2619
  %v2812 = vpack.c.b16 %v2626, %v2623
  %v2813 = vpack.c.b16 %v2627, %v2624
  %v2814 = vpack.c.b16 %v2628, %v2625
  %v2815 = vpack.c.b16 %v2632, %v2629
  %v2816 = vpack.c.b16 %v2633, %v2630
  %v2817 = vpack.c.b16 %v2634, %v2631
  %v2818 = vpack.c.b16 %v2638, %v2635
  %v2819 = vpack.c.b16 %v2639, %v2636
  %v2820 = vpack.c.b16 %v2640, %v2637
  %v2821 = vpack.c.b16 %v2644, %v2641
  %v2822 = vpack.c.b16 %v2645, %v2642
  %v2823 = vpack.c.b16 %v2646, %v2643
  %v2824 = vpack.c.b16 %v2650, %v2647
  %v2825 = vpack.c.b16 %v2651, %v2648
  %v2826 = vpack.c.b16 %v2652, %v2649
  %v2827 = vpack.c.b16 %v2656, %v2653
  %v2828 = vpack.c.b16 %v2657, %v2654
  %v2829 = vpack.c.b16 %v2658, %v2655
  %v2830 = vpack.c.b16 %v2662, %v2659
  %v2831 = vpack.c.b16 %v2663, %v2660
  %v2832 = vpack.c.b16 %v2664, %v2661
  %v2833 = vpack.c.b16 %v2668, %v2665
  %v2834 = vpack.c.b16 %v2669, %v2666
  %v2835 = vpack.c.b16 %v2670, %v2667
  %v2836 = vpack.c.b16 %v2674, %v2671
  %v2837 = vpack.c.b16 %v2675, %v2672
  %v2838 = vpack.c.b16 %v2676, %v2673
  %v2839 = vpack.c.b16 %v2680, %v2677
  %v2840 = vpack.c.b16 %v2681, %v2678
  %v2841 = vpack.c.b16 %v2682, %v2679
  %v2842 = vpack.c.b16 %v2686, %v2683
  %v2843 = vpack.c.b16 %v2687, %v2684
  %v2844 = vpack.c.b16 %v2688, %v2685
  %v2845 = vpack.c.b16 %v2692, %v2689
  %v2846 = vpack.c.b16 %v2693, %v2690
  %v2847 = vpack.c.b16 %v2694, %v2691
  %v2848 = vpack.c.b16 %v2698, %v2695
  %v2849 = vpack.c.b16 %v2699, %v2696
  %v2850 = vpack.c.b16 %v2700, %v2697
  %v2851 = vpack.c.b16 %v2704, %v2701
  %v2852 = vpack.c.b16 %v2705, %v2702
  %v2853 = vpack.c.b16 %v2706, %v2703
  %v2854 = vpack.c.b16 %v2710, %v2707
  %v2855 = vpack.c.b16 %v2711, %v2708
  %v2856 = vpack.c.b16 %v2712, %v2709
  %v2857 = vpack.c.b16 %v2716, %v2713
  %v2858 = vpack.c.b16 %v2717, %v2714
  %v2859 = vpack.c.b16 %v2718, %v2715
  %v2860 = vpack.c.b16 %v2722, %v2719
  %v2861 = vpack.c.b16 %v2723, %v2720
  %v2862 = vpack.c.b16 %v2724, %v2721
  %v2863 = vpack.c.b16 %v2728, %v2725
  %v2864 = vpack.c.b16 %v2729, %v2726
  %v2865 = vpack.c.b16 %v2730, %v2727
  %v2866 = vpack.c.b16 %v2734, %v2731
  %v2867 = vpack.c.b16 %v2735, %v2732
  %v2868 = vpack.c.b16 %v2736, %v2733
  %v2869 = vpack.c.b16 %v2740, %v2737
  %v2870 = vpack.c.b16 %v2741, %v2738
  %v2871 = vpack.c.b16 %v2742, %v2739
  %v2872 = vpack.c.b16 %v2746, %v2743
  %v2873 = vpack.c.b16 %v2747, %v2744
  %v2874 = vpack.c.b16 %v2748, %v2745
  %v2875 = vpack.c.b16 %v2752, %v2749
  %v2876 = vpack.c.b16 %v2753, %v2750
  %v2877 = vpack.c.b16 %v2754, %v2751
  %v2878 = vpack.c.b16 %v2758, %v2755
  %v2879 = vpack.c.b16 %v2759, %v2756
  %v2880 = vpack.c.b16 %v2760, %v2757
  %v2881 = vpack.c.b16 %v2764, %v2761
  %v2882 = vpack.c.b16 %v2765, %v2762
  %v2883 = vpack.c.b16 %v2766, %v2763
  %v2884 = vpack.c.b16 %v2770, %v2767
  %v2885 = vpack.c.b16 %v2771, %v2768
  %v2886 = vpack.c.b16 %v2772, %v2769
  %v2887 = vpack.c.b16 %v2776, %v2773
  %v2888 = vpack.c.b16 %v2777, %v2774
  %v2889 = vpack.c.b16 %v2778, %v2775
  %v2890 = vpack.c.b16 %v2782, %v2779
  %v2891 = vpack.c.b16 %v2783, %v2780
  %v2892 = vpack.c.b16 %v2784, %v2781
  %v2893 = vpack.c.b16 %v2788, %v2785
  %v2894 = vpack.c.b16 %v2789, %v2786
  %v2895 = vpack.c.b16 %v2790, %v2787
  %v2896 = vpack.c.b16 %v2794, %v2791
  %v2897 = vpack.c.b16 %v2795, %v2792
  %v2898 = vpack.c.b16 %v2796, %v2793
  %v2899 = vpack.c.b16 %v2800, %v2797
  %v2900 = vpack.c.b16 %v2801, %v2798
  %v2901 = vpack.c.b16 %v2802, %v2799
  %v2902 = vpack.c.b16 %v2806, %v2803
  %v2903 = vpack.c.b16 %v2807, %v2804
  %v2904 = vpack.c.b16 %v2808, %v2805
  %3001 = vmatprep.subr.bf16.mxu0 %v2810
  %3002 = vmatpush1.bf16.msra.mxu0 %v2809
  %3003 = vmatprep.subr.bf16.mxu0 %v2813
  %3004 = vmatpush1.bf16.msra.mxu0 %v2812
  %3005 = vmatprep.subr.bf16.mxu0 %v2816
  %3006 = vmatpush1.bf16.msra.mxu0 %v2815
  %3007 = vmatprep.subr.bf16.mxu0 %v2819
  %3008 = vmatpush1.bf16.msra.mxu0 %v2818
  %3009 = vmatprep.subr.bf16.mxu0 %v2822
  %3010 = vmatpush1.bf16.msra.mxu0 %v2821
  %3011 = vmatprep.subr.bf16.mxu0 %v2825
  %3012 = vmatpush1.bf16.msra.mxu0 %v2824
  %3013 = vmatprep.subr.bf16.mxu0 %v2828
  %3014 = vmatpush1.bf16.msra.mxu0 %v2827
  %3015 = vmatprep.subr.bf16.mxu0 %v2831
  %3016 = vmatpush1.bf16.msra.mxu0 %v2830
  %3017 = vmatprep.subr.bf16.mxu0 %v2834
  %3018 = vmatpush1.bf16.msra.mxu0 %v2833
  %3019 = vmatprep.subr.bf16.mxu0 %v2837
  %3020 = vmatpush1.bf16.msra.mxu0 %v2836
  %3021 = vmatprep.subr.bf16.mxu0 %v2840
  %3022 = vmatpush1.bf16.msra.mxu0 %v2839
  %3023 = vmatprep.subr.bf16.mxu0 %v2843
  %3024 = vmatpush1.bf16.msra.mxu0 %v2842
  %3025 = vmatprep.subr.bf16.mxu0 %v2846
  %3026 = vmatpush1.bf16.msra.mxu0 %v2845
  %3027 = vmatprep.subr.bf16.mxu0 %v2849
  %3028 = vmatpush1.bf16.msra.mxu0 %v2848
  %3029 = vmatprep.subr.bf16.mxu0 %v2852
  %3030 = vmatpush1.bf16.msra.mxu0 %v2851
  %3031 = vmatprep.subr.bf16.mxu0 %v2855
  %3032 = vmatpush1.bf16.msra.mxu0 %v2854
  %3033 = vmatprep.mubr.bf16.mxu0 %v2482
  %3034 = vmatmul.mubr.bf16.gmra.mrb[0].mxu0 %v2481
  %v3035 = vpop.f32.mrb[0].mxu0
  %v3036 = vadd.f32 %v1607, %v3035
  %v3037 = vpop.f32.mrb[0].mxu0
  %v3038 = vadd.f32 %v1609, %v3037
  %v3039 = vpop.f32.mrb[0].mxu0
  %v3040 = vpop.f32.mrb[0].mxu0
  %3041 = vdwg.mxu0
  %3042 = vmatprep.subr.bf16.mxu0 %v2858
  %3043 = vmatpush1.bf16.msra.mxu0 %v2857
  %3044 = vmatprep.subr.bf16.mxu0 %v2861
  %3045 = vmatpush1.bf16.msra.mxu0 %v2860
  %3046 = vmatprep.subr.bf16.mxu0 %v2864
  %3047 = vmatpush1.bf16.msra.mxu0 %v2863
  %3048 = vmatprep.subr.bf16.mxu0 %v2867
  %3049 = vmatpush1.bf16.msra.mxu0 %v2866
  %3050 = vmatprep.subr.bf16.mxu0 %v2870
  %3051 = vmatpush1.bf16.msra.mxu0 %v2869
  %3052 = vmatprep.subr.bf16.mxu0 %v2873
  %3053 = vmatpush1.bf16.msra.mxu0 %v2872
  %3054 = vmatprep.subr.bf16.mxu0 %v2876
  %3055 = vmatpush1.bf16.msra.mxu0 %v2875
  %3056 = vmatprep.subr.bf16.mxu0 %v2879
  %3057 = vmatpush1.bf16.msra.mxu0 %v2878
  %3058 = vmatprep.subr.bf16.mxu0 %v2882
  %3059 = vmatpush1.bf16.msra.mxu0 %v2881
  %3060 = vmatprep.subr.bf16.mxu0 %v2885
  %3061 = vmatpush1.bf16.msra.mxu0 %v2884
  %3062 = vmatprep.subr.bf16.mxu0 %v2888
  %3063 = vmatpush1.bf16.msra.mxu0 %v2887
  %3064 = vmatprep.subr.bf16.mxu0 %v2891
  %3065 = vmatpush1.bf16.msra.mxu0 %v2890
  %3066 = vmatprep.subr.bf16.mxu0 %v2894
  %3067 = vmatpush1.bf16.msra.mxu0 %v2893
  %3068 = vmatprep.subr.bf16.mxu0 %v2897
  %3069 = vmatpush1.bf16.msra.mxu0 %v2896
  %3070 = vmatprep.subr.bf16.mxu0 %v2900
  %3071 = vmatpush1.bf16.msra.mxu0 %v2899
  %3072 = vmatprep.subr.bf16.mxu0 %v2903
  %3073 = vmatpush1.bf16.msra.mxu0 %v2902
  %3074 = vmatprep.mubr.bf16.mxu0 %v2484
  %3075 = vmatmul.mubr.bf16.gmra.mrb[0].mxu0 %v2483
  %v3076 = vpop.f32.mrb[0].mxu0
  %v3077 = vadd.f32 %v3036, %v3076
  %v3078 = vpop.f32.mrb[0].mxu0
  %v3079 = vadd.f32 %v3038, %v3078
  %v3080 = vpop.f32.mrb[0].mxu0
  %v3081 = vpop.f32.mrb[0].mxu0
  %3082 = vdwg.mxu0
  %3083 = vmatprep.subr.bf16.mxu0 0
  %3084 = vmatpush1.bf16.msra.mxu0 %v2811
  %3085 = vmatprep.subr.bf16.mxu0 0
  %3086 = vmatpush1.bf16.msra.mxu0 %v2814
  %3087 = vmatprep.subr.bf16.mxu0 0
  %3088 = vmatpush1.bf16.msra.mxu0 %v2817
  %3089 = vmatprep.subr.bf16.mxu0 0
  %3090 = vmatpush1.bf16.msra.mxu0 %v2820
  %3091 = vmatprep.subr.bf16.mxu0 0
  %3092 = vmatpush1.bf16.msra.mxu0 %v2823
  %3093 = vmatprep.subr.bf16.mxu0 0
  %3094 = vmatpush1.bf16.msra.mxu0 %v2826
  %3095 = vmatprep.subr.bf16.mxu0 0
  %3096 = vmatpush1.bf16.msra.mxu0 %v2829
  %3097 = vmatprep.subr.bf16.mxu0 0
  %3098 = vmatpush1.bf16.msra.mxu0 %v2832
  %3099 = vmatprep.subr.bf16.mxu0 0
  %3100 = vmatpush1.bf16.msra.mxu0 %v2835
  %3101 = vmatprep.subr.bf16.mxu0 0
  %3102 = vmatpush1.bf16.msra.mxu0 %v2838
  %3103 = vmatprep.subr.bf16.mxu0 0
  %3104 = vmatpush1.bf16.msra.mxu0 %v2841
  %3105 = vmatprep.subr.bf16.mxu0 0
  %3106 = vmatpush1.bf16.msra.mxu0 %v2844
  %3107 = vmatprep.subr.bf16.mxu0 0
  %3108 = vmatpush1.bf16.msra.mxu0 %v2847
  %3109 = vmatprep.subr.bf16.mxu0 0
  %3110 = vmatpush1.bf16.msra.mxu0 %v2850
  %3111 = vmatprep.subr.bf16.mxu0 0
  %3112 = vmatpush1.bf16.msra.mxu0 %v2853
  %3113 = vmatprep.subr.bf16.mxu0 0
  %3114 = vmatpush1.bf16.msra.mxu0 %v2856
  %3115 = vmatprep.mubr.bf16.mxu0 %v2482
  %3116 = vmatmul.mubr.bf16.gmra.mrb[0].mxu0 %v2481
  %v3117 = vpop.f32.mrb[0].mxu0
  %v3118 = vadd.f32 %v1648, %v3117
  %v3119 = vpop.f32.mrb[0].mxu0
  %v3120 = vpop.f32.mrb[0].mxu0
  %v3121 = vpop.f32.mrb[0].mxu0
  %3122 = vdwg.mxu0
  %3123 = vmatprep.subr.bf16.mxu0 0
  %3124 = vmatpush1.bf16.msra.mxu0 %v2859
  %3125 = vmatprep.subr.bf16.mxu0 0
  %3126 = vmatpush1.bf16.msra.mxu0 %v2862
  %3127 = vmatprep.subr.bf16.mxu0 0
  %3128 = vmatpush1.bf16.msra.mxu0 %v2865
  %3129 = vmatprep.subr.bf16.mxu0 0
  %3130 = vmatpush1.bf16.msra.mxu0 %v2868
  %3131 = vmatprep.subr.bf16.mxu0 0
  %3132 = vmatpush1.bf16.msra.mxu0 %v2871
  %3133 = vmatprep.subr.bf16.mxu0 0
  %3134 = vmatpush1.bf16.msra.mxu0 %v2874
  %3135 = vmatprep.subr.bf16.mxu0 0
  %3136 = vmatpush1.bf16.msra.mxu0 %v2877
  %3137 = vmatprep.subr.bf16.mxu0 0
  %3138 = vmatpush1.bf16.msra.mxu0 %v2880
  %3139 = vmatprep.subr.bf16.mxu0 0
  %3140 = vmatpush1.bf16.msra.mxu0 %v2883
  %3141 = vmatprep.subr.bf16.mxu0 0
  %3142 = vmatpush1.bf16.msra.mxu0 %v2886
  %3143 = vmatprep.subr.bf16.mxu0 0
  %3144 = vmatpush1.bf16.msra.mxu0 %v2889
  %3145 = vmatprep.subr.bf16.mxu0 0
  %3146 = vmatpush1.bf16.msra.mxu0 %v2892
  %3147 = vmatprep.subr.bf16.mxu0 0
  %3148 = vmatpush1.bf16.msra.mxu0 %v2895
  %3149 = vmatprep.subr.bf16.mxu0 0
  %3150 = vmatpush1.bf16.msra.mxu0 %v2898
  %3151 = vmatprep.subr.bf16.mxu0 0
  %3152 = vmatpush1.bf16.msra.mxu0 %v2901
  %3153 = vmatprep.subr.bf16.mxu0 0
  %3154 = vmatpush1.bf16.msra.mxu0 %v2904
  %3155 = vmatprep.mubr.bf16.mxu0 %v2484
  %3156 = vmatmul.mubr.bf16.gmra.mrb[0].mxu0 %v2483
  %v3157 = vpop.f32.mrb[0].mxu0
  %v3158 = vadd.f32 %v3118, %v3157
  %v3159 = vpop.f32.mrb[0].mxu0
  %v3160 = vpop.f32.mrb[0].mxu0
  %v3161 = vpop.f32.mrb[0].mxu0
  %3162 = vdwg.mxu0
  %v3164 = vlaneseq
  %v3165 = vshrl.u32 %v3164, 7
  %v3166 = vsub.s32 0, %v3165
  %v3167 = vrot.slane %v1079, %v3166
  %v3168 = vlaneseq
  %v3169 = vshrl.u32 %v3168, 7
  %v3170 = vsub.s32 1, %v3169
  %v3171 = vrot.slane %v1079, %v3170
  %v3172 = vlaneseq
  %v3173 = vshrl.u32 %v3172, 7
  %v3174 = vsub.s32 2, %v3173
  %v3175 = vrot.slane %v1079, %v3174
  %v3179 = vadd.f32 %v3077, %v3167
  %v3180 = vadd.f32 %v3079, %v3171
  %v3181 = vadd.f32 %v3158, %v3175
  %v3182 = vmax.f32 %v3179, 0.0
  %v3183 = vmax.f32 %v3180, 0.0
  %v3184 = vmax.f32 %v3181, 0.0
  %v3185 = vpack.c.bf16 %v3182, %v3182
  %v3186 = vpack.c.bf16 %v3183, %v3183
  %v3187 = vpack.c.bf16 %v3184, %v3184
  %v3189 = vlaneseq
  %v3190 = vshrl.u32 %v3189, 7
  %v3191 = vsub.s32 0, %v3190
  %v3192 = vrot.slane %v1160, %v3191
  %v3193 = vlaneseq
  %v3194 = vshrl.u32 %v3193, 7
  %v3195 = vsub.s32 1, %v3194
  %v3196 = vrot.slane %v1160, %v3195
  %v3197 = vlaneseq
  %v3198 = vshrl.u32 %v3197, 7
  %v3199 = vsub.s32 2, %v3198
  %v3200 = vrot.slane %v1160, %v3199
  %v3201 = vlaneseq
  %v3202 = vshrl.u32 %v3201, 7
  %v3203 = vsub.s32 3, %v3202
  %v3204 = vrot.slane %v1160, %v3203
  %v3289 = vunpack.c.l.b16 %v1080
  %v3290 = vunpack.c.h.b16 %v1080
  %v3291 = vunpack.c.l.b16 %v1081
  %v3292 = vunpack.c.h.b16 %v1081
  %v3293 = vunpack.c.l.b16 %v1082
  %v3294 = vunpack.c.h.b16 %v1082
  %v3295 = vunpack.c.l.b16 %v1083
  %v3296 = vunpack.c.h.b16 %v1083
  %v3297 = vunpack.c.l.b16 %v1084
  %v3298 = vunpack.c.h.b16 %v1084
  %v3299 = vunpack.c.l.b16 %v1085
  %v3300 = vunpack.c.h.b16 %v1085
  %v3301 = vunpack.c.l.b16 %v1086
  %v3302 = vunpack.c.h.b16 %v1086
  %v3303 = vunpack.c.l.b16 %v1087
  %v3304 = vunpack.c.h.b16 %v1087
  %v3305 = vunpack.c.l.b16 %v1088
  %v3306 = vunpack.c.h.b16 %v1088
  %v3307 = vunpack.c.l.b16 %v1089
  %v3308 = vunpack.c.h.b16 %v1089
  %v3309 = vunpack.c.l.b16 %v1090
  %v3310 = vunpack.c.h.b16 %v1090
  %v3311 = vunpack.c.l.b16 %v1091
  %v3312 = vunpack.c.h.b16 %v1091
  %v3313 = vunpack.c.l.b16 %v1092
  %v3314 = vunpack.c.h.b16 %v1092
  %v3315 = vunpack.c.l.b16 %v1093
  %v3316 = vunpack.c.h.b16 %v1093
  %v3317 = vunpack.c.l.b16 %v1094
  %v3318 = vunpack.c.h.b16 %v1094
  %v3319 = vunpack.c.l.b16 %v1095
  %v3320 = vunpack.c.h.b16 %v1095
  %v3321 = vunpack.c.l.b16 %v1096
  %v3322 = vunpack.c.h.b16 %v1096
  %v3323 = vunpack.c.l.b16 %v1097
  %v3324 = vunpack.c.h.b16 %v1097
  %v3325 = vunpack.c.l.b16 %v1098
  %v3326 = vunpack.c.h.b16 %v1098
  %v3327 = vunpack.c.l.b16 %v1099
  %v3328 = vunpack.c.h.b16 %v1099
  %v3329 = vunpack.c.l.b16 %v1100
  %v3330 = vunpack.c.h.b16 %v1100
  %v3331 = vunpack.c.l.b16 %v1101
  %v3332 = vunpack.c.h.b16 %v1101
  %v3333 = vunpack.c.l.b16 %v1102
  %v3334 = vunpack.c.h.b16 %v1102
  %v3335 = vunpack.c.l.b16 %v1103
  %v3336 = vunpack.c.h.b16 %v1103
  %v3337 = vunpack.c.l.b16 %v1104
  %v3338 = vunpack.c.h.b16 %v1104
  %v3339 = vunpack.c.l.b16 %v1105
  %v3340 = vunpack.c.h.b16 %v1105
  %v3341 = vunpack.c.l.b16 %v1106
  %v3342 = vunpack.c.h.b16 %v1106
  %v3343 = vunpack.c.l.b16 %v1107
  %v3344 = vunpack.c.h.b16 %v1107
  %v3345 = vunpack.c.l.b16 %v1108
  %v3346 = vunpack.c.h.b16 %v1108
  %v3347 = vunpack.c.l.b16 %v1109
  %v3348 = vunpack.c.h.b16 %v1109
  %v3349 = vunpack.c.l.b16 %v1110
  %v3350 = vunpack.c.h.b16 %v1110
  %v3351 = vunpack.c.l.b16 %v1111
  %v3352 = vunpack.c.h.b16 %v1111
  %v3353 = vunpack.c.l.b16 %v1112
  %v3354 = vunpack.c.h.b16 %v1112
  %v3355 = vunpack.c.l.b16 %v1113
  %v3356 = vunpack.c.h.b16 %v1113
  %v3357 = vunpack.c.l.b16 %v1114
  %v3358 = vunpack.c.h.b16 %v1114
  %v3359 = vunpack.c.l.b16 %v1115
  %v3360 = vunpack.c.h.b16 %v1115
  %v3361 = vunpack.c.l.b16 %v1116
  %v3362 = vunpack.c.h.b16 %v1116
  %v3363 = vunpack.c.l.b16 %v1117
  %v3364 = vunpack.c.h.b16 %v1117
  %v3365 = vunpack.c.l.b16 %v1118
  %v3366 = vunpack.c.h.b16 %v1118
  %v3367 = vunpack.c.l.b16 %v1119
  %v3368 = vunpack.c.h.b16 %v1119
  %v3369 = vunpack.c.l.b16 %v1120
  %v3370 = vunpack.c.h.b16 %v1120
  %v3371 = vunpack.c.l.b16 %v1121
  %v3372 = vunpack.c.h.b16 %v1121
  %v3373 = vunpack.c.l.b16 %v1122
  %v3374 = vunpack.c.h.b16 %v1122
  %v3375 = vunpack.c.l.b16 %v1123
  %v3376 = vunpack.c.h.b16 %v1123
  %v3377 = vunpack.c.l.b16 %v1124
  %v3378 = vunpack.c.h.b16 %v1124
  %v3379 = vunpack.c.l.b16 %v1125
  %v3380 = vunpack.c.h.b16 %v1125
  %v3381 = vunpack.c.l.b16 %v1126
  %v3382 = vunpack.c.h.b16 %v1126
  %v3383 = vunpack.c.l.b16 %v1127
  %v3384 = vunpack.c.h.b16 %v1127
  %v3385 = vunpack.c.l.b16 %v1128
  %v3386 = vunpack.c.h.b16 %v1128
  %v3387 = vunpack.c.l.b16 %v1129
  %v3388 = vunpack.c.h.b16 %v1129
  %v3389 = vunpack.c.l.b16 %v1130
  %v3390 = vunpack.c.h.b16 %v1130
  %v3391 = vunpack.c.l.b16 %v1131
  %v3392 = vunpack.c.h.b16 %v1131
  %v3393 = vunpack.c.l.b16 %v1132
  %v3394 = vunpack.c.h.b16 %v1132
  %v3395 = vunpack.c.l.b16 %v1133
  %v3396 = vunpack.c.h.b16 %v1133
  %v3397 = vunpack.c.l.b16 %v1134
  %v3398 = vunpack.c.h.b16 %v1134
  %v3399 = vunpack.c.l.b16 %v1135
  %v3400 = vunpack.c.h.b16 %v1135
  %v3401 = vunpack.c.l.b16 %v1136
  %v3402 = vunpack.c.h.b16 %v1136
  %v3403 = vunpack.c.l.b16 %v1137
  %v3404 = vunpack.c.h.b16 %v1137
  %v3405 = vunpack.c.l.b16 %v1138
  %v3406 = vunpack.c.h.b16 %v1138
  %v3407 = vunpack.c.l.b16 %v1139
  %v3408 = vunpack.c.h.b16 %v1139
  %v3409 = vunpack.c.l.b16 %v1140
  %v3410 = vunpack.c.h.b16 %v1140
  %v3411 = vunpack.c.l.b16 %v1141
  %v3412 = vunpack.c.h.b16 %v1141
  %v3413 = vunpack.c.l.b16 %v1142
  %v3414 = vunpack.c.h.b16 %v1142
  %v3415 = vunpack.c.l.b16 %v1143
  %v3416 = vunpack.c.h.b16 %v1143
  %v3417 = vunpack.c.l.b16 %v1144
  %v3418 = vunpack.c.h.b16 %v1144
  %v3419 = vunpack.c.l.b16 %v1145
  %v3420 = vunpack.c.h.b16 %v1145
  %v3421 = vunpack.c.l.b16 %v1146
  %v3422 = vunpack.c.h.b16 %v1146
  %v3423 = vunpack.c.l.b16 %v1147
  %v3424 = vunpack.c.h.b16 %v1147
  %v3425 = vunpack.c.l.b16 %v1148
  %v3426 = vunpack.c.h.b16 %v1148
  %v3427 = vunpack.c.l.b16 %v1149
  %v3428 = vunpack.c.h.b16 %v1149
  %v3429 = vunpack.c.l.b16 %v1150
  %v3430 = vunpack.c.h.b16 %v1150
  %v3431 = vunpack.c.l.b16 %v1151
  %v3432 = vunpack.c.h.b16 %v1151
  %v3433 = vunpack.c.l.b16 %v1152
  %v3434 = vunpack.c.h.b16 %v1152
  %v3435 = vunpack.c.l.b16 %v1153
  %v3436 = vunpack.c.h.b16 %v1153
  %v3437 = vunpack.c.l.b16 %v1154
  %v3438 = vunpack.c.h.b16 %v1154
  %v3439 = vunpack.c.l.b16 %v1155
  %v3440 = vunpack.c.h.b16 %v1155
  %v3441 = vunpack.c.l.b16 %v1156
  %v3442 = vunpack.c.h.b16 %v1156
  %v3443 = vunpack.c.l.b16 %v1157
  %v3444 = vunpack.c.h.b16 %v1157
  %v3445 = vunpack.c.l.b16 %v1158
  %v3446 = vunpack.c.h.b16 %v1158
  %v3447 = vunpack.c.l.b16 %v1159
  %v3448 = vunpack.c.h.b16 %v1159
  %v3449 = vpack.c.b16 %v3293, %v3289
  %v3450 = vpack.c.b16 %v3294, %v3290
  %v3451 = vpack.c.b16 %v3295, %v3291
  %v3452 = vpack.c.b16 %v3296, %v3292
  %v3453 = vpack.c.b16 %v3301, %v3297
  %v3454 = vpack.c.b16 %v3302, %v3298
  %v3455 = vpack.c.b16 %v3303, %v3299
  %v3456 = vpack.c.b16 %v3304, %v3300
  %v3457 = vpack.c.b16 %v3309, %v3305
  %v3458 = vpack.c.b16 %v3310, %v3306
  %v3459 = vpack.c.b16 %v3311, %v3307
  %v3460 = vpack.c.b16 %v3312, %v3308
  %v3461 = vpack.c.b16 %v3317, %v3313
  %v3462 = vpack.c.b16 %v3318, %v3314
  %v3463 = vpack.c.b16 %v3319, %v3315
  %v3464 = vpack.c.b16 %v3320, %v3316
  %v3465 = vpack.c.b16 %v3325, %v3321
  %v3466 = vpack.c.b16 %v3326, %v3322
  %v3467 = vpack.c.b16 %v3327, %v3323
  %v3468 = vpack.c.b16 %v3328, %v3324
  %v3469 = vpack.c.b16 %v3333, %v3329
  %v3470 = vpack.c.b16 %v3334, %v3330
  %v3471 = vpack.c.b16 %v3335, %v3331
  %v3472 = vpack.c.b16 %v3336, %v3332
  %v3473 = vpack.c.b16 %v3341, %v3337
  %v3474 = vpack.c.b16 %v3342, %v3338
  %v3475 = vpack.c.b16 %v3343, %v3339
  %v3476 = vpack.c.b16 %v3344, %v3340
  %v3477 = vpack.c.b16 %v3349, %v3345
  %v3478 = vpack.c.b16 %v3350, %v3346
  %v3479 = vpack.c.b16 %v3351, %v3347
  %v3480 = vpack.c.b16 %v3352, %v3348
  %v3481 = vpack.c.b16 %v3357, %v3353
  %v3482 = vpack.c.b16 %v3358, %v3354
  %v3483 = vpack.c.b16 %v3359, %v3355
  %v3484 = vpack.c.b16 %v3360, %v3356
  %v3485 = vpack.c.b16 %v3365, %v3361
  %v3486 = vpack.c.b16 %v3366, %v3362
  %v3487 = vpack.c.b16 %v3367, %v3363
  %v3488 = vpack.c.b16 %v3368, %v3364
  %v3489 = vpack.c.b16 %v3373, %v3369
  %v3490 = vpack.c.b16 %v3374, %v3370
  %v3491 = vpack.c.b16 %v3375, %v3371
  %v3492 = vpack.c.b16 %v3376, %v3372
  %v3493 = vpack.c.b16 %v3381, %v3377
  %v3494 = vpack.c.b16 %v3382, %v3378
  %v3495 = vpack.c.b16 %v3383, %v3379
  %v3496 = vpack.c.b16 %v3384, %v3380
  %v3497 = vpack.c.b16 %v3389, %v3385
  %v3498 = vpack.c.b16 %v3390, %v3386
  %v3499 = vpack.c.b16 %v3391, %v3387
  %v3500 = vpack.c.b16 %v3392, %v3388
  %v3501 = vpack.c.b16 %v3397, %v3393
  %v3502 = vpack.c.b16 %v3398, %v3394
  %v3503 = vpack.c.b16 %v3399, %v3395
  %v3504 = vpack.c.b16 %v3400, %v3396
  %v3505 = vpack.c.b16 %v3405, %v3401
  %v3506 = vpack.c.b16 %v3406, %v3402
  %v3507 = vpack.c.b16 %v3407, %v3403
  %v3508 = vpack.c.b16 %v3408, %v3404
  %v3509 = vpack.c.b16 %v3413, %v3409
  %v3510 = vpack.c.b16 %v3414, %v3410
  %v3511 = vpack.c.b16 %v3415, %v3411
  %v3512 = vpack.c.b16 %v3416, %v3412
  %v3513 = vpack.c.b16 %v3421, %v3417
  %v3514 = vpack.c.b16 %v3422, %v3418
  %v3515 = vpack.c.b16 %v3423, %v3419
  %v3516 = vpack.c.b16 %v3424, %v3420
  %v3517 = vpack.c.b16 %v3429, %v3425
  %v3518 = vpack.c.b16 %v3430, %v3426
  %v3519 = vpack.c.b16 %v3431, %v3427
  %v3520 = vpack.c.b16 %v3432, %v3428
  %v3521 = vpack.c.b16 %v3437, %v3433
  %v3522 = vpack.c.b16 %v3438, %v3434
  %v3523 = vpack.c.b16 %v3439, %v3435
  %v3524 = vpack.c.b16 %v3440, %v3436
  %v3525 = vpack.c.b16 %v3445, %v3441
  %v3526 = vpack.c.b16 %v3446, %v3442
  %v3527 = vpack.c.b16 %v3447, %v3443
  %v3528 = vpack.c.b16 %v3448, %v3444
  %vm3609 = vcmask 523264
  %v3611 = vsel %vm3609, %v3187, 0
  %3613 = vmatprep.subr.bf16.mxu0 %v3450
  %3614 = vmatpush1.bf16.msra.mxu0 %v3449
  %3615 = vmatprep.subr.bf16.mxu0 %v3454
  %3616 = vmatpush1.bf16.msra.mxu0 %v3453
  %3617 = vmatprep.subr.bf16.mxu0 %v3458
  %3618 = vmatpush1.bf16.msra.mxu0 %v3457
  %3619 = vmatprep.subr.bf16.mxu0 %v3462
  %3620 = vmatpush1.bf16.msra.mxu0 %v3461
  %3621 = vmatprep.subr.bf16.mxu0 %v3466
  %3622 = vmatpush1.bf16.msra.mxu0 %v3465
  %3623 = vmatprep.subr.bf16.mxu0 %v3470
  %3624 = vmatpush1.bf16.msra.mxu0 %v3469
  %3625 = vmatprep.subr.bf16.mxu0 %v3474
  %3626 = vmatpush1.bf16.msra.mxu0 %v3473
  %3627 = vmatprep.subr.bf16.mxu0 %v3478
  %3628 = vmatpush1.bf16.msra.mxu0 %v3477
  %3629 = vmatprep.subr.bf16.mxu0 %v3482
  %3630 = vmatpush1.bf16.msra.mxu0 %v3481
  %3631 = vmatprep.subr.bf16.mxu0 %v3486
  %3632 = vmatpush1.bf16.msra.mxu0 %v3485
  %3633 = vmatprep.subr.bf16.mxu0 %v3490
  %3634 = vmatpush1.bf16.msra.mxu0 %v3489
  %3635 = vmatprep.subr.bf16.mxu0 %v3494
  %3636 = vmatpush1.bf16.msra.mxu0 %v3493
  %3637 = vmatprep.subr.bf16.mxu0 %v3498
  %3638 = vmatpush1.bf16.msra.mxu0 %v3497
  %3639 = vmatprep.subr.bf16.mxu0 %v3502
  %3640 = vmatpush1.bf16.msra.mxu0 %v3501
  %3641 = vmatprep.subr.bf16.mxu0 %v3506
  %3642 = vmatpush1.bf16.msra.mxu0 %v3505
  %3643 = vmatprep.subr.bf16.mxu0 %v3510
  %3644 = vmatpush1.bf16.msra.mxu0 %v3509
  %3645 = vmatprep.mubr.bf16.mxu0 %v3186
  %3646 = vmatmul.mubr.bf16.gmra.mrb[0].mxu0 %v3185
  %v3647 = vpop.f32.mrb[0].mxu0
  %v3648 = vadd.f32 %v3192, %v3647
  %v3649 = vpop.f32.mrb[0].mxu0
  %v3650 = vadd.f32 %v3196, %v3649
  %v3651 = vpop.f32.mrb[0].mxu0
  %v3652 = vpop.f32.mrb[0].mxu0
  %3653 = vdwg.mxu0
  %3654 = vmatprep.subr.bf16.mxu0 %v3514
  %3655 = vmatpush1.bf16.msra.mxu0 %v3513
  %3656 = vmatprep.subr.bf16.mxu0 %v3518
  %3657 = vmatpush1.bf16.msra.mxu0 %v3517
  %3658 = vmatprep.subr.bf16.mxu0 %v3522
  %3659 = vmatpush1.bf16.msra.mxu0 %v3521
  %3660 = vmatprep.subr.bf16.mxu0 %v3526
  %3661 = vmatpush1.bf16.msra.mxu0 %v3525
  %3662 = vmatprep.subr.bf16.mxu0 0
  %3663 = vmatpush1.bf16.msra.mxu0 0
  %3664 = vmatprep.subr.bf16.mxu0 0
  %3665 = vmatpush1.bf16.msra.mxu0 0
  %3666 = vmatprep.subr.bf16.mxu0 0
  %3667 = vmatpush1.bf16.msra.mxu0 0
  %3668 = vmatprep.subr.bf16.mxu0 0
  %3669 = vmatpush1.bf16.msra.mxu0 0
  %3670 = vmatprep.subr.bf16.mxu0 0
  %3671 = vmatpush1.bf16.msra.mxu0 0
  %3672 = vmatprep.subr.bf16.mxu0 0
  %3673 = vmatpush1.bf16.msra.mxu0 0
  %3674 = vmatprep.subr.bf16.mxu0 0
  %3675 = vmatpush1.bf16.msra.mxu0 0
  %3676 = vmatprep.subr.bf16.mxu0 0
  %3677 = vmatpush1.bf16.msra.mxu0 0
  %3678 = vmatprep.subr.bf16.mxu0 0
  %3679 = vmatpush1.bf16.msra.mxu0 0
  %3680 = vmatprep.subr.bf16.mxu0 0
  %3681 = vmatpush1.bf16.msra.mxu0 0
  %3682 = vmatprep.subr.bf16.mxu0 0
  %3683 = vmatpush1.bf16.msra.mxu0 0
  %3684 = vmatprep.subr.bf16.mxu0 0
  %3685 = vmatpush1.bf16.msra.mxu0 0
  %3686 = vmatprep.mubr.bf16.mxu0 0
  %3687 = vmatmul.mubr.bf16.gmra.mrb[0].mxu0 %v3611
  %v3688 = vpop.f32.mrb[0].mxu0
  %v3689 = vadd.f32 %v3648, %v3688
  %v3690 = vpop.f32.mrb[0].mxu0
  %v3691 = vadd.f32 %v3650, %v3690
  %v3692 = vpop.f32.mrb[0].mxu0
  %v3693 = vpop.f32.mrb[0].mxu0
  %3694 = vdwg.mxu0
  %3695 = vmatprep.subr.bf16.mxu0 %v3452
  %3696 = vmatpush1.bf16.msra.mxu0 %v3451
  %3697 = vmatprep.subr.bf16.mxu0 %v3456
  %3698 = vmatpush1.bf16.msra.mxu0 %v3455
  %3699 = vmatprep.subr.bf16.mxu0 %v3460
  %3700 = vmatpush1.bf16.msra.mxu0 %v3459
  %3701 = vmatprep.subr.bf16.mxu0 %v3464
  %3702 = vmatpush1.bf16.msra.mxu0 %v3463
  %3703 = vmatprep.subr.bf16.mxu0 %v3468
  %3704 = vmatpush1.bf16.msra.mxu0 %v3467
  %3705 = vmatprep.subr.bf16.mxu0 %v3472
  %3706 = vmatpush1.bf16.msra.mxu0 %v3471
  %3707 = vmatprep.subr.bf16.mxu0 %v3476
  %3708 = vmatpush1.bf16.msra.mxu0 %v3475
  %3709 = vmatprep.subr.bf16.mxu0 %v3480
  %3710 = vmatpush1.bf16.msra.mxu0 %v3479
  %3711 = vmatprep.subr.bf16.mxu0 %v3484
  %3712 = vmatpush1.bf16.msra.mxu0 %v3483
  %3713 = vmatprep.subr.bf16.mxu0 %v3488
  %3714 = vmatpush1.bf16.msra.mxu0 %v3487
  %3715 = vmatprep.subr.bf16.mxu0 %v3492
  %3716 = vmatpush1.bf16.msra.mxu0 %v3491
  %3717 = vmatprep.subr.bf16.mxu0 %v3496
  %3718 = vmatpush1.bf16.msra.mxu0 %v3495
  %3719 = vmatprep.subr.bf16.mxu0 %v3500
  %3720 = vmatpush1.bf16.msra.mxu0 %v3499
  %3721 = vmatprep.subr.bf16.mxu0 %v3504
  %3722 = vmatpush1.bf16.msra.mxu0 %v3503
  %3723 = vmatprep.subr.bf16.mxu0 %v3508
  %3724 = vmatpush1.bf16.msra.mxu0 %v3507
  %3725 = vmatprep.subr.bf16.mxu0 %v3512
  %3726 = vmatpush1.bf16.msra.mxu0 %v3511
  %3727 = vmatprep.mubr.bf16.mxu0 %v3186
  %3728 = vmatmul.mubr.bf16.gmra.mrb[0].mxu0 %v3185
  %v3729 = vpop.f32.mrb[0].mxu0
  %v3730 = vadd.f32 %v3200, %v3729
  %v3731 = vpop.f32.mrb[0].mxu0
  %v3732 = vadd.f32 %v3204, %v3731
  %v3733 = vpop.f32.mrb[0].mxu0
  %v3734 = vpop.f32.mrb[0].mxu0
  %3735 = vdwg.mxu0
  %3736 = vmatprep.subr.bf16.mxu0 %v3516
  %3737 = vmatpush1.bf16.msra.mxu0 %v3515
  %3738 = vmatprep.subr.bf16.mxu0 %v3520
  %3739 = vmatpush1.bf16.msra.mxu0 %v3519
  %3740 = vmatprep.subr.bf16.mxu0 %v3524
  %3741 = vmatpush1.bf16.msra.mxu0 %v3523
  %3742 = vmatprep.subr.bf16.mxu0 %v3528
  %3743 = vmatpush1.bf16.msra.mxu0 %v3527
  %3744 = vmatprep.subr.bf16.mxu0 0
  %3745 = vmatpush1.bf16.msra.mxu0 0
  %3746 = vmatprep.subr.bf16.mxu0 0
  %3747 = vmatpush1.bf16.msra.mxu0 0
  %3748 = vmatprep.subr.bf16.mxu0 0
  %3749 = vmatpush1.bf16.msra.mxu0 0
  %3750 = vmatprep.subr.bf16.mxu0 0
  %3751 = vmatpush1.bf16.msra.mxu0 0
  %3752 = vmatprep.subr.bf16.mxu0 0
  %3753 = vmatpush1.bf16.msra.mxu0 0
  %3754 = vmatprep.subr.bf16.mxu0 0
  %3755 = vmatpush1.bf16.msra.mxu0 0
  %3756 = vmatprep.subr.bf16.mxu0 0
  %3757 = vmatpush1.bf16.msra.mxu0 0
  %3758 = vmatprep.subr.bf16.mxu0 0
  %3759 = vmatpush1.bf16.msra.mxu0 0
  %3760 = vmatprep.subr.bf16.mxu0 0
  %3761 = vmatpush1.bf16.msra.mxu0 0
  %3762 = vmatprep.subr.bf16.mxu0 0
  %3763 = vmatpush1.bf16.msra.mxu0 0
  %3764 = vmatprep.subr.bf16.mxu0 0
  %3765 = vmatpush1.bf16.msra.mxu0 0
  %3766 = vmatprep.subr.bf16.mxu0 0
  %3767 = vmatpush1.bf16.msra.mxu0 0
  %3768 = vmatprep.mubr.bf16.mxu0 0
  %3769 = vmatmul.mubr.bf16.gmra.mrb[0].mxu0 %v3611
  %v3770 = vpop.f32.mrb[0].mxu0
  %v3771 = vadd.f32 %v3730, %v3770
  %v3772 = vpop.f32.mrb[0].mxu0
  %v3773 = vadd.f32 %v3732, %v3772
  %v3774 = vpop.f32.mrb[0].mxu0
  %v3775 = vpop.f32.mrb[0].mxu0
  %3776 = vdwg.mxu0
  %v3777 = vxor.u32 %v3689, 2147483648
  %v3778 = vxor.u32 %v3691, 2147483648
  %v3779 = vxor.u32 %v3771, 2147483648
  %v3780 = vxor.u32 %v3773, 2147483648
  %v3781 = vmul.f32 %v3777, 1.442695
  %v3782 = vpow.pop %v3781
  %v3783 = vmul.f32 %v3778, 1.442695
  %v3784 = vpow.pop %v3783
  %v3785 = vmul.f32 %v3779, 1.442695
  %v3786 = vpow.pop %v3785
  %v3787 = vmul.f32 %v3780, 1.442695
  %v3788 = vpow.pop %v3787
  %v3789 = vadd.f32 %v3782, 1.0
  %v3790 = vadd.f32 %v3784, 1.0
  %v3791 = vadd.f32 %v3786, 1.0
  %v3792 = vadd.f32 %v3788, 1.0
  %v3793 = vrcp.pop %v3789
  %v3794 = vmul.f32 1.0, %v3793
  %v3795 = vrcp.pop %v3790
  %v3796 = vmul.f32 1.0, %v3795
  %v3797 = vrcp.pop %v3791
  %v3798 = vmul.f32 1.0, %v3797
  %v3799 = vrcp.pop %v3792
  %v3800 = vmul.f32 1.0, %v3799
  %v3802 = vlaneseq
  %v3803 = vshrl.u32 %v3802, 7
  %v3804 = vsub.s32 0, %v3803
  %v3805 = vrot.slane %v1201, %v3804
  %v3847 = vunpack.c.l.b16 %v1161
  %v3848 = vunpack.c.l.b16 %v1162
  %v3849 = vunpack.c.l.b16 %v1163
  %v3850 = vunpack.c.l.b16 %v1164
  %v3851 = vunpack.c.l.b16 %v1165
  %v3852 = vunpack.c.l.b16 %v1166
  %v3853 = vunpack.c.l.b16 %v1167
  %v3854 = vunpack.c.l.b16 %v1168
  %v3855 = vunpack.c.l.b16 %v1169
  %v3856 = vunpack.c.l.b16 %v1170
  %v3857 = vunpack.c.l.b16 %v1171
  %v3858 = vunpack.c.l.b16 %v1172
  %v3859 = vunpack.c.l.b16 %v1173
  %v3860 = vunpack.c.l.b16 %v1174
  %v3861 = vunpack.c.l.b16 %v1175
  %v3862 = vunpack.c.l.b16 %v1176
  %v3863 = vunpack.c.l.b16 %v1177
  %v3864 = vunpack.c.l.b16 %v1178
  %v3865 = vunpack.c.l.b16 %v1179
  %v3866 = vunpack.c.l.b16 %v1180
  %v3867 = vunpack.c.l.b16 %v1181
  %v3868 = vunpack.c.l.b16 %v1182
  %v3869 = vunpack.c.l.b16 %v1183
  %v3870 = vunpack.c.l.b16 %v1184
  %v3871 = vunpack.c.l.b16 %v1185
  %v3872 = vunpack.c.l.b16 %v1186
  %v3873 = vunpack.c.l.b16 %v1187
  %v3874 = vunpack.c.l.b16 %v1188
  %v3875 = vunpack.c.l.b16 %v1189
  %v3876 = vunpack.c.l.b16 %v1190
  %v3877 = vunpack.c.l.b16 %v1191
  %v3878 = vunpack.c.l.b16 %v1192
  %v3879 = vunpack.c.l.b16 %v1193
  %v3880 = vunpack.c.l.b16 %v1194
  %v3881 = vunpack.c.l.b16 %v1195
  %v3882 = vunpack.c.l.b16 %v1196
  %v3883 = vunpack.c.l.b16 %v1197
  %v3884 = vunpack.c.l.b16 %v1198
  %v3885 = vunpack.c.l.b16 %v1199
  %v3886 = vunpack.c.l.b16 %v1200
  %v3887 = vpack.c.b16 %v3848, %v3847
  %v3888 = vpack.c.b16 %v3850, %v3849
  %v3889 = vpack.c.b16 %v3852, %v3851
  %v3890 = vpack.c.b16 %v3854, %v3853
  %v3891 = vpack.c.b16 %v3856, %v3855
  %v3892 = vpack.c.b16 %v3858, %v3857
  %v3893 = vpack.c.b16 %v3860, %v3859
  %v3894 = vpack.c.b16 %v3862, %v3861
  %v3895 = vpack.c.b16 %v3864, %v3863
  %v3896 = vpack.c.b16 %v3866, %v3865
  %v3897 = vpack.c.b16 %v3868, %v3867
  %v3898 = vpack.c.b16 %v3870, %v3869
  %v3899 = vpack.c.b16 %v3872, %v3871
  %v3900 = vpack.c.b16 %v3874, %v3873
  %v3901 = vpack.c.b16 %v3876, %v3875
  %v3902 = vpack.c.b16 %v3878, %v3877
  %v3903 = vpack.c.b16 %v3880, %v3879
  %v3904 = vpack.c.b16 %v3882, %v3881
  %v3905 = vpack.c.b16 %v3884, %v3883
  %v3906 = vpack.c.b16 %v3886, %v3885
  %3927 = vmatprep.subr.bf16.mxu0 0
  %3928 = vmatpush1.bf16.msra.mxu0 %v3887
  %3929 = vmatprep.subr.bf16.mxu0 0
  %3930 = vmatpush1.bf16.msra.mxu0 %v3888
  %3931 = vmatprep.subr.bf16.mxu0 0
  %3932 = vmatpush1.bf16.msra.mxu0 %v3889
  %3933 = vmatprep.subr.bf16.mxu0 0
  %3934 = vmatpush1.bf16.msra.mxu0 %v3890
  %3935 = vmatprep.subr.bf16.mxu0 0
  %3936 = vmatpush1.bf16.msra.mxu0 %v3891
  %3937 = vmatprep.subr.bf16.mxu0 0
  %3938 = vmatpush1.bf16.msra.mxu0 %v3892
  %3939 = vmatprep.subr.bf16.mxu0 0
  %3940 = vmatpush1.bf16.msra.mxu0 %v3893
  %3941 = vmatprep.subr.bf16.mxu0 0
  %3942 = vmatpush1.bf16.msra.mxu0 %v3894
  %3943 = vmatprep.subr.bf16.mxu0 0
  %3944 = vmatpush1.bf16.msra.mxu0 %v3895
  %3945 = vmatprep.subr.bf16.mxu0 0
  %3946 = vmatpush1.bf16.msra.mxu0 %v3896
  %3947 = vmatprep.subr.bf16.mxu0 0
  %3948 = vmatpush1.bf16.msra.mxu0 %v3897
  %3949 = vmatprep.subr.bf16.mxu0 0
  %3950 = vmatpush1.bf16.msra.mxu0 %v3898
  %3951 = vmatprep.subr.bf16.mxu0 0
  %3952 = vmatpush1.bf16.msra.mxu0 %v3899
  %3953 = vmatprep.subr.bf16.mxu0 0
  %3954 = vmatpush1.bf16.msra.mxu0 %v3900
  %3955 = vmatprep.subr.bf16.mxu0 0
  %3956 = vmatpush1.bf16.msra.mxu0 %v3901
  %3957 = vmatprep.subr.bf16.mxu0 0
  %3958 = vmatpush1.bf16.msra.mxu0 %v3902
  %3959 = vmatprep.mubr.bf16.mxu0 %v3186
  %3960 = vmatmul.mubr.bf16.gmra.mrb[0].mxu0 %v3185
  %v3961 = vpop.f32.mrb[0].mxu0
  %v3962 = vadd.f32 %v3805, %v3961
  %v3963 = vpop.f32.mrb[0].mxu0
  %v3964 = vpop.f32.mrb[0].mxu0
  %v3965 = vpop.f32.mrb[0].mxu0
  %3966 = vdwg.mxu0
  %3967 = vmatprep.subr.bf16.mxu0 0
  %3968 = vmatpush1.bf16.msra.mxu0 %v3903
  %3969 = vmatprep.subr.bf16.mxu0 0
  %3970 = vmatpush1.bf16.msra.mxu0 %v3904
  %3971 = vmatprep.subr.bf16.mxu0 0
  %3972 = vmatpush1.bf16.msra.mxu0 %v3905
  %3973 = vmatprep.subr.bf16.mxu0 0
  %3974 = vmatpush1.bf16.msra.mxu0 %v3906
  %3975 = vmatprep.subr.bf16.mxu0 0
  %3976 = vmatpush1.bf16.msra.mxu0 0
  %3977 = vmatprep.subr.bf16.mxu0 0
  %3978 = vmatpush1.bf16.msra.mxu0 0
  %3979 = vmatprep.subr.bf16.mxu0 0
  %3980 = vmatpush1.bf16.msra.mxu0 0
  %3981 = vmatprep.subr.bf16.mxu0 0
  %3982 = vmatpush1.bf16.msra.mxu0 0
  %3983 = vmatprep.subr.bf16.mxu0 0
  %3984 = vmatpush1.bf16.msra.mxu0 0
  %3985 = vmatprep.subr.bf16.mxu0 0
  %3986 = vmatpush1.bf16.msra.mxu0 0
  %3987 = vmatprep.subr.bf16.mxu0 0
  %3988 = vmatpush1.bf16.msra.mxu0 0
  %3989 = vmatprep.subr.bf16.mxu0 0
  %3990 = vmatpush1.bf16.msra.mxu0 0
  %3991 = vmatprep.subr.bf16.mxu0 0
  %3992 = vmatpush1.bf16.msra.mxu0 0
  %3993 = vmatprep.subr.bf16.mxu0 0
  %3994 = vmatpush1.bf16.msra.mxu0 0
  %3995 = vmatprep.subr.bf16.mxu0 0
  %3996 = vmatpush1.bf16.msra.mxu0 0
  %3997 = vmatprep.subr.bf16.mxu0 0
  %3998 = vmatpush1.bf16.msra.mxu0 0
  %3999 = vmatprep.mubr.bf16.mxu0 0
  %4000 = vmatmul.mubr.bf16.gmra.mrb[0].mxu0 %v3611
  %v4001 = vpop.f32.mrb[0].mxu0
  %v4002 = vadd.f32 %v3962, %v4001
  %v4003 = vpop.f32.mrb[0].mxu0
  %v4004 = vpop.f32.mrb[0].mxu0
  %v4005 = vpop.f32.mrb[0].mxu0
  %4006 = vdwg.mxu0
  %v4007 = vxor.u32 %v4002, 2147483648
  %v4008 = vmul.f32 %v4007, 1.442695
  %v4009 = vpow.pop %v4008
  %v4010 = vadd.f32 %v4009, 1.0
  %v4011 = vrcp.pop %v4010
  %v4012 = vmul.f32 1.0, %v4011
  %v4013 = vlaneseq
  %v4014 = vshrl.u32 %v4013, 7
  %v4015 = vsub.s32 0, %v4014
  %v4016 = vrot.slane %v3794, %v4015
  %4018 = vbcast.lane.b32.xlu0 %v4016, 256
  %v4019 = vpop.permute.xlu0 %4018
  %s4021 = sor.u32 256, 8
  %4022 = vbcast.lane.b32.xlu0 %v4016, %s4021
  %v4023 = vpop.permute.xlu0 %4022
  %s4025 = sor.u32 256, 16
  %4026 = vbcast.lane.b32.xlu0 %v4016, %s4025
  %v4027 = vpop.permute.xlu0 %4026
  %s4029 = sor.u32 256, 24
  %4030 = vbcast.lane.b32.xlu0 %v4016, %s4029
  %v4031 = vpop.permute.xlu0 %4030
  %s4033 = sor.u32 256, 32
  %4034 = vbcast.lane.b32.xlu0 %v4016, %s4033
  %v4035 = vpop.permute.xlu0 %4034
  %s4037 = sor.u32 256, 40
  %4038 = vbcast.lane.b32.xlu0 %v4016, %s4037
  %v4039 = vpop.permute.xlu0 %4038
  %s4041 = sor.u32 256, 48
  %4042 = vbcast.lane.b32.xlu0 %v4016, %s4041
  %v4043 = vpop.permute.xlu0 %4042
  %s4045 = sor.u32 256, 56
  %4046 = vbcast.lane.b32.xlu0 %v4016, %s4045
  %v4047 = vpop.permute.xlu0 %4046
  %s4049 = sor.u32 256, 64
  %4050 = vbcast.lane.b32.xlu0 %v4016, %s4049
  %v4051 = vpop.permute.xlu0 %4050
  %s4053 = sor.u32 256, 72
  %4054 = vbcast.lane.b32.xlu0 %v4016, %s4053
  %v4055 = vpop.permute.xlu0 %4054
  %s4057 = sor.u32 256, 80
  %4058 = vbcast.lane.b32.xlu0 %v4016, %s4057
  %v4059 = vpop.permute.xlu0 %4058
  %s4061 = sor.u32 256, 88
  %4062 = vbcast.lane.b32.xlu0 %v4016, %s4061
  %v4063 = vpop.permute.xlu0 %4062
  %s4065 = sor.u32 256, 96
  %4066 = vbcast.lane.b32.xlu0 %v4016, %s4065
  %v4067 = vpop.permute.xlu0 %4066
  %s4069 = sor.u32 256, 104
  %4070 = vbcast.lane.b32.xlu0 %v4016, %s4069
  %v4071 = vpop.permute.xlu0 %4070
  %s4073 = sor.u32 256, 112
  %4074 = vbcast.lane.b32.xlu0 %v4016, %s4073
  %v4075 = vpop.permute.xlu0 %4074
  %s4077 = sor.u32 256, 120
  %4078 = vbcast.lane.b32.xlu0 %v4016, %s4077
  %v4079 = vpop.permute.xlu0 %4078
  %v4080 = vlaneseq
  %v4081 = vshrl.u32 %v4080, 7
  %v4082 = vsub.s32 0, %v4081
  %v4083 = vrot.slane %v3796, %v4082
  %4085 = vbcast.lane.b32.xlu0 %v4083, 256
  %v4086 = vpop.permute.xlu0 %4085
  %s4088 = sor.u32 256, 8
  %4089 = vbcast.lane.b32.xlu0 %v4083, %s4088
  %v4090 = vpop.permute.xlu0 %4089
  %s4092 = sor.u32 256, 16
  %4093 = vbcast.lane.b32.xlu0 %v4083, %s4092
  %v4094 = vpop.permute.xlu0 %4093
  %s4096 = sor.u32 256, 24
  %4097 = vbcast.lane.b32.xlu0 %v4083, %s4096
  %v4098 = vpop.permute.xlu0 %4097
  %s4100 = sor.u32 256, 32
  %4101 = vbcast.lane.b32.xlu0 %v4083, %s4100
  %v4102 = vpop.permute.xlu0 %4101
  %s4104 = sor.u32 256, 40
  %4105 = vbcast.lane.b32.xlu0 %v4083, %s4104
  %v4106 = vpop.permute.xlu0 %4105
  %s4108 = sor.u32 256, 48
  %4109 = vbcast.lane.b32.xlu0 %v4083, %s4108
  %v4110 = vpop.permute.xlu0 %4109
  %s4112 = sor.u32 256, 56
  %4113 = vbcast.lane.b32.xlu0 %v4083, %s4112
  %v4114 = vpop.permute.xlu0 %4113
  %s4116 = sor.u32 256, 64
  %4117 = vbcast.lane.b32.xlu0 %v4083, %s4116
  %v4118 = vpop.permute.xlu0 %4117
  %s4120 = sor.u32 256, 72
  %4121 = vbcast.lane.b32.xlu0 %v4083, %s4120
  %v4122 = vpop.permute.xlu0 %4121
  %s4124 = sor.u32 256, 80
  %4125 = vbcast.lane.b32.xlu0 %v4083, %s4124
  %v4126 = vpop.permute.xlu0 %4125
  %s4128 = sor.u32 256, 88
  %4129 = vbcast.lane.b32.xlu0 %v4083, %s4128
  %v4130 = vpop.permute.xlu0 %4129
  %s4132 = sor.u32 256, 96
  %4133 = vbcast.lane.b32.xlu0 %v4083, %s4132
  %v4134 = vpop.permute.xlu0 %4133
  %s4136 = sor.u32 256, 104
  %4137 = vbcast.lane.b32.xlu0 %v4083, %s4136
  %v4138 = vpop.permute.xlu0 %4137
  %s4140 = sor.u32 256, 112
  %4141 = vbcast.lane.b32.xlu0 %v4083, %s4140
  %v4142 = vpop.permute.xlu0 %4141
  %s4144 = sor.u32 256, 120
  %4145 = vbcast.lane.b32.xlu0 %v4083, %s4144
  %v4146 = vpop.permute.xlu0 %4145
  %v4147 = vlaneseq
  %v4148 = vshrl.u32 %v4147, 7
  %v4149 = vsub.s32 0, %v4148
  %v4150 = vrot.slane %v3798, %v4149
  %4152 = vbcast.lane.b32.xlu0 %v4150, 256
  %v4153 = vpop.permute.xlu0 %4152
  %s4155 = sor.u32 256, 8
  %4156 = vbcast.lane.b32.xlu0 %v4150, %s4155
  %v4157 = vpop.permute.xlu0 %4156
  %s4159 = sor.u32 256, 16
  %4160 = vbcast.lane.b32.xlu0 %v4150, %s4159
  %v4161 = vpop.permute.xlu0 %4160
  %s4163 = sor.u32 256, 24
  %4164 = vbcast.lane.b32.xlu0 %v4150, %s4163
  %v4165 = vpop.permute.xlu0 %4164
  %s4167 = sor.u32 256, 32
  %4168 = vbcast.lane.b32.xlu0 %v4150, %s4167
  %v4169 = vpop.permute.xlu0 %4168
  %s4171 = sor.u32 256, 40
  %4172 = vbcast.lane.b32.xlu0 %v4150, %s4171
  %v4173 = vpop.permute.xlu0 %4172
  %s4175 = sor.u32 256, 48
  %4176 = vbcast.lane.b32.xlu0 %v4150, %s4175
  %v4177 = vpop.permute.xlu0 %4176
  %s4179 = sor.u32 256, 56
  %4180 = vbcast.lane.b32.xlu0 %v4150, %s4179
  %v4181 = vpop.permute.xlu0 %4180
  %s4183 = sor.u32 256, 64
  %4184 = vbcast.lane.b32.xlu0 %v4150, %s4183
  %v4185 = vpop.permute.xlu0 %4184
  %s4187 = sor.u32 256, 72
  %4188 = vbcast.lane.b32.xlu0 %v4150, %s4187
  %v4189 = vpop.permute.xlu0 %4188
  %s4191 = sor.u32 256, 80
  %4192 = vbcast.lane.b32.xlu0 %v4150, %s4191
  %v4193 = vpop.permute.xlu0 %4192
  %s4195 = sor.u32 256, 88
  %4196 = vbcast.lane.b32.xlu0 %v4150, %s4195
  %v4197 = vpop.permute.xlu0 %4196
  %s4199 = sor.u32 256, 96
  %4200 = vbcast.lane.b32.xlu0 %v4150, %s4199
  %v4201 = vpop.permute.xlu0 %4200
  %s4203 = sor.u32 256, 104
  %4204 = vbcast.lane.b32.xlu0 %v4150, %s4203
  %v4205 = vpop.permute.xlu0 %4204
  %s4207 = sor.u32 256, 112
  %4208 = vbcast.lane.b32.xlu0 %v4150, %s4207
  %v4209 = vpop.permute.xlu0 %4208
  %s4211 = sor.u32 256, 120
  %4212 = vbcast.lane.b32.xlu0 %v4150, %s4211
  %v4213 = vpop.permute.xlu0 %4212
  %v4214 = vlaneseq
  %v4215 = vshrl.u32 %v4214, 7
  %v4216 = vsub.s32 0, %v4215
  %v4217 = vrot.slane %v3800, %v4216
  %4219 = vbcast.lane.b32.xlu0 %v4217, 256
  %v4220 = vpop.permute.xlu0 %4219
  %s4222 = sor.u32 256, 8
  %4223 = vbcast.lane.b32.xlu0 %v4217, %s4222
  %v4224 = vpop.permute.xlu0 %4223
  %s4226 = sor.u32 256, 16
  %4227 = vbcast.lane.b32.xlu0 %v4217, %s4226
  %v4228 = vpop.permute.xlu0 %4227
  %s4230 = sor.u32 256, 24
  %4231 = vbcast.lane.b32.xlu0 %v4217, %s4230
  %v4232 = vpop.permute.xlu0 %4231
  %s4234 = sor.u32 256, 32
  %4235 = vbcast.lane.b32.xlu0 %v4217, %s4234
  %v4236 = vpop.permute.xlu0 %4235
  %s4238 = sor.u32 256, 40
  %4239 = vbcast.lane.b32.xlu0 %v4217, %s4238
  %v4240 = vpop.permute.xlu0 %4239
  %s4242 = sor.u32 256, 48
  %4243 = vbcast.lane.b32.xlu0 %v4217, %s4242
  %v4244 = vpop.permute.xlu0 %4243
  %s4246 = sor.u32 256, 56
  %4247 = vbcast.lane.b32.xlu0 %v4217, %s4246
  %v4248 = vpop.permute.xlu0 %4247
  %s4250 = sor.u32 256, 64
  %4251 = vbcast.lane.b32.xlu0 %v4217, %s4250
  %v4252 = vpop.permute.xlu0 %4251
  %s4254 = sor.u32 256, 72
  %4255 = vbcast.lane.b32.xlu0 %v4217, %s4254
  %v4256 = vpop.permute.xlu0 %4255
  %s4258 = sor.u32 256, 80
  %4259 = vbcast.lane.b32.xlu0 %v4217, %s4258
  %v4260 = vpop.permute.xlu0 %4259
  %s4262 = sor.u32 256, 88
  %4263 = vbcast.lane.b32.xlu0 %v4217, %s4262
  %v4264 = vpop.permute.xlu0 %4263
  %s4266 = sor.u32 256, 96
  %4267 = vbcast.lane.b32.xlu0 %v4217, %s4266
  %v4268 = vpop.permute.xlu0 %4267
  %s4270 = sor.u32 256, 104
  %4271 = vbcast.lane.b32.xlu0 %v4217, %s4270
  %v4272 = vpop.permute.xlu0 %4271
  %s4274 = sor.u32 256, 112
  %4275 = vbcast.lane.b32.xlu0 %v4217, %s4274
  %v4276 = vpop.permute.xlu0 %4275
  %s4278 = sor.u32 256, 120
  %4279 = vbcast.lane.b32.xlu0 %v4217, %s4278
  %v4280 = vpop.permute.xlu0 %4279
  %v4281 = vlaneseq
  %v4282 = vshrl.u32 %v4281, 7
  %v4283 = vsub.s32 1, %v4282
  %v4284 = vrot.slane %v3794, %v4283
  %4286 = vbcast.lane.b32.xlu0 %v4284, 256
  %v4287 = vpop.permute.xlu0 %4286
  %s4289 = sor.u32 256, 8
  %4290 = vbcast.lane.b32.xlu0 %v4284, %s4289
  %v4291 = vpop.permute.xlu0 %4290
  %s4293 = sor.u32 256, 16
  %4294 = vbcast.lane.b32.xlu0 %v4284, %s4293
  %v4295 = vpop.permute.xlu0 %4294
  %s4297 = sor.u32 256, 24
  %4298 = vbcast.lane.b32.xlu0 %v4284, %s4297
  %v4299 = vpop.permute.xlu0 %4298
  %s4301 = sor.u32 256, 32
  %4302 = vbcast.lane.b32.xlu0 %v4284, %s4301
  %v4303 = vpop.permute.xlu0 %4302
  %s4305 = sor.u32 256, 40
  %4306 = vbcast.lane.b32.xlu0 %v4284, %s4305
  %v4307 = vpop.permute.xlu0 %4306
  %s4309 = sor.u32 256, 48
  %4310 = vbcast.lane.b32.xlu0 %v4284, %s4309
  %v4311 = vpop.permute.xlu0 %4310
  %s4313 = sor.u32 256, 56
  %4314 = vbcast.lane.b32.xlu0 %v4284, %s4313
  %v4315 = vpop.permute.xlu0 %4314
  %s4317 = sor.u32 256, 64
  %4318 = vbcast.lane.b32.xlu0 %v4284, %s4317
  %v4319 = vpop.permute.xlu0 %4318
  %s4321 = sor.u32 256, 72
  %4322 = vbcast.lane.b32.xlu0 %v4284, %s4321
  %v4323 = vpop.permute.xlu0 %4322
  %s4325 = sor.u32 256, 80
  %4326 = vbcast.lane.b32.xlu0 %v4284, %s4325
  %v4327 = vpop.permute.xlu0 %4326
  %s4329 = sor.u32 256, 88
  %4330 = vbcast.lane.b32.xlu0 %v4284, %s4329
  %v4331 = vpop.permute.xlu0 %4330
  %s4333 = sor.u32 256, 96
  %4334 = vbcast.lane.b32.xlu0 %v4284, %s4333
  %v4335 = vpop.permute.xlu0 %4334
  %s4337 = sor.u32 256, 104
  %4338 = vbcast.lane.b32.xlu0 %v4284, %s4337
  %v4339 = vpop.permute.xlu0 %4338
  %s4341 = sor.u32 256, 112
  %4342 = vbcast.lane.b32.xlu0 %v4284, %s4341
  %v4343 = vpop.permute.xlu0 %4342
  %s4345 = sor.u32 256, 120
  %4346 = vbcast.lane.b32.xlu0 %v4284, %s4345
  %v4347 = vpop.permute.xlu0 %4346
  %v4348 = vlaneseq
  %v4349 = vshrl.u32 %v4348, 7
  %v4350 = vsub.s32 1, %v4349
  %v4351 = vrot.slane %v3796, %v4350
  %4353 = vbcast.lane.b32.xlu0 %v4351, 256
  %v4354 = vpop.permute.xlu0 %4353
  %s4356 = sor.u32 256, 8
  %4357 = vbcast.lane.b32.xlu0 %v4351, %s4356
  %v4358 = vpop.permute.xlu0 %4357
  %s4360 = sor.u32 256, 16
  %4361 = vbcast.lane.b32.xlu0 %v4351, %s4360
  %v4362 = vpop.permute.xlu0 %4361
  %s4364 = sor.u32 256, 24
  %4365 = vbcast.lane.b32.xlu0 %v4351, %s4364
  %v4366 = vpop.permute.xlu0 %4365
  %s4368 = sor.u32 256, 32
  %4369 = vbcast.lane.b32.xlu0 %v4351, %s4368
  %v4370 = vpop.permute.xlu0 %4369
  %s4372 = sor.u32 256, 40
  %4373 = vbcast.lane.b32.xlu0 %v4351, %s4372
  %v4374 = vpop.permute.xlu0 %4373
  %s4376 = sor.u32 256, 48
  %4377 = vbcast.lane.b32.xlu0 %v4351, %s4376
  %v4378 = vpop.permute.xlu0 %4377
  %s4380 = sor.u32 256, 56
  %4381 = vbcast.lane.b32.xlu0 %v4351, %s4380
  %v4382 = vpop.permute.xlu0 %4381
  %s4384 = sor.u32 256, 64
  %4385 = vbcast.lane.b32.xlu0 %v4351, %s4384
  %v4386 = vpop.permute.xlu0 %4385
  %s4388 = sor.u32 256, 72
  %4389 = vbcast.lane.b32.xlu0 %v4351, %s4388
  %v4390 = vpop.permute.xlu0 %4389
  %s4392 = sor.u32 256, 80
  %4393 = vbcast.lane.b32.xlu0 %v4351, %s4392
  %v4394 = vpop.permute.xlu0 %4393
  %s4396 = sor.u32 256, 88
  %4397 = vbcast.lane.b32.xlu0 %v4351, %s4396
  %v4398 = vpop.permute.xlu0 %4397
  %s4400 = sor.u32 256, 96
  %4401 = vbcast.lane.b32.xlu0 %v4351, %s4400
  %v4402 = vpop.permute.xlu0 %4401
  %s4404 = sor.u32 256, 104
  %4405 = vbcast.lane.b32.xlu0 %v4351, %s4404
  %v4406 = vpop.permute.xlu0 %4405
  %s4408 = sor.u32 256, 112
  %4409 = vbcast.lane.b32.xlu0 %v4351, %s4408
  %v4410 = vpop.permute.xlu0 %4409
  %s4412 = sor.u32 256, 120
  %4413 = vbcast.lane.b32.xlu0 %v4351, %s4412
  %v4414 = vpop.permute.xlu0 %4413
  %v4415 = vlaneseq
  %v4416 = vshrl.u32 %v4415, 7
  %v4417 = vsub.s32 1, %v4416
  %v4418 = vrot.slane %v3798, %v4417
  %4420 = vbcast.lane.b32.xlu0 %v4418, 256
  %v4421 = vpop.permute.xlu0 %4420
  %s4423 = sor.u32 256, 8
  %4424 = vbcast.lane.b32.xlu0 %v4418, %s4423
  %v4425 = vpop.permute.xlu0 %4424
  %s4427 = sor.u32 256, 16
  %4428 = vbcast.lane.b32.xlu0 %v4418, %s4427
  %v4429 = vpop.permute.xlu0 %4428
  %s4431 = sor.u32 256, 24
  %4432 = vbcast.lane.b32.xlu0 %v4418, %s4431
  %v4433 = vpop.permute.xlu0 %4432
  %s4435 = sor.u32 256, 32
  %4436 = vbcast.lane.b32.xlu0 %v4418, %s4435
  %v4437 = vpop.permute.xlu0 %4436
  %s4439 = sor.u32 256, 40
  %4440 = vbcast.lane.b32.xlu0 %v4418, %s4439
  %v4441 = vpop.permute.xlu0 %4440
  %s4443 = sor.u32 256, 48
  %4444 = vbcast.lane.b32.xlu0 %v4418, %s4443
  %v4445 = vpop.permute.xlu0 %4444
  %s4447 = sor.u32 256, 56
  %4448 = vbcast.lane.b32.xlu0 %v4418, %s4447
  %v4449 = vpop.permute.xlu0 %4448
  %s4451 = sor.u32 256, 64
  %4452 = vbcast.lane.b32.xlu0 %v4418, %s4451
  %v4453 = vpop.permute.xlu0 %4452
  %s4455 = sor.u32 256, 72
  %4456 = vbcast.lane.b32.xlu0 %v4418, %s4455
  %v4457 = vpop.permute.xlu0 %4456
  %s4459 = sor.u32 256, 80
  %4460 = vbcast.lane.b32.xlu0 %v4418, %s4459
  %v4461 = vpop.permute.xlu0 %4460
  %s4463 = sor.u32 256, 88
  %4464 = vbcast.lane.b32.xlu0 %v4418, %s4463
  %v4465 = vpop.permute.xlu0 %4464
  %s4467 = sor.u32 256, 96
  %4468 = vbcast.lane.b32.xlu0 %v4418, %s4467
  %v4469 = vpop.permute.xlu0 %4468
  %s4471 = sor.u32 256, 104
  %4472 = vbcast.lane.b32.xlu0 %v4418, %s4471
  %v4473 = vpop.permute.xlu0 %4472
  %s4475 = sor.u32 256, 112
  %4476 = vbcast.lane.b32.xlu0 %v4418, %s4475
  %v4477 = vpop.permute.xlu0 %4476
  %s4479 = sor.u32 256, 120
  %4480 = vbcast.lane.b32.xlu0 %v4418, %s4479
  %v4481 = vpop.permute.xlu0 %4480
  %v4482 = vlaneseq
  %v4483 = vshrl.u32 %v4482, 7
  %v4484 = vsub.s32 1, %v4483
  %v4485 = vrot.slane %v3800, %v4484
  %4487 = vbcast.lane.b32.xlu0 %v4485, 256
  %v4488 = vpop.permute.xlu0 %4487
  %s4490 = sor.u32 256, 8
  %4491 = vbcast.lane.b32.xlu0 %v4485, %s4490
  %v4492 = vpop.permute.xlu0 %4491
  %s4494 = sor.u32 256, 16
  %4495 = vbcast.lane.b32.xlu0 %v4485, %s4494
  %v4496 = vpop.permute.xlu0 %4495
  %s4498 = sor.u32 256, 24
  %4499 = vbcast.lane.b32.xlu0 %v4485, %s4498
  %v4500 = vpop.permute.xlu0 %4499
  %s4502 = sor.u32 256, 32
  %4503 = vbcast.lane.b32.xlu0 %v4485, %s4502
  %v4504 = vpop.permute.xlu0 %4503
  %s4506 = sor.u32 256, 40
  %4507 = vbcast.lane.b32.xlu0 %v4485, %s4506
  %v4508 = vpop.permute.xlu0 %4507
  %s4510 = sor.u32 256, 48
  %4511 = vbcast.lane.b32.xlu0 %v4485, %s4510
  %v4512 = vpop.permute.xlu0 %4511
  %s4514 = sor.u32 256, 56
  %4515 = vbcast.lane.b32.xlu0 %v4485, %s4514
  %v4516 = vpop.permute.xlu0 %4515
  %s4518 = sor.u32 256, 64
  %4519 = vbcast.lane.b32.xlu0 %v4485, %s4518
  %v4520 = vpop.permute.xlu0 %4519
  %s4522 = sor.u32 256, 72
  %4523 = vbcast.lane.b32.xlu0 %v4485, %s4522
  %v4524 = vpop.permute.xlu0 %4523
  %s4526 = sor.u32 256, 80
  %4527 = vbcast.lane.b32.xlu0 %v4485, %s4526
  %v4528 = vpop.permute.xlu0 %4527
  %s4530 = sor.u32 256, 88
  %4531 = vbcast.lane.b32.xlu0 %v4485, %s4530
  %v4532 = vpop.permute.xlu0 %4531
  %s4534 = sor.u32 256, 96
  %4535 = vbcast.lane.b32.xlu0 %v4485, %s4534
  %v4536 = vpop.permute.xlu0 %4535
  %s4538 = sor.u32 256, 104
  %4539 = vbcast.lane.b32.xlu0 %v4485, %s4538
  %v4540 = vpop.permute.xlu0 %4539
  %s4542 = sor.u32 256, 112
  %4543 = vbcast.lane.b32.xlu0 %v4485, %s4542
  %v4544 = vpop.permute.xlu0 %4543
  %s4546 = sor.u32 256, 120
  %4547 = vbcast.lane.b32.xlu0 %v4485, %s4546
  %v4548 = vpop.permute.xlu0 %4547
  %v4549 = vmul.f32 %v35, %v4019
  %v4550 = vmul.f32 %v36, %v4023
  %v4551 = vmul.f32 %v37, %v4027
  %v4552 = vmul.f32 %v38, %v4031
  %v4553 = vmul.f32 %v39, %v4035
  %v4554 = vmul.f32 %v40, %v4039
  %v4555 = vmul.f32 %v41, %v4043
  %v4556 = vmul.f32 %v42, %v4047
  %v4557 = vmul.f32 %v43, %v4051
  %v4558 = vmul.f32 %v44, %v4055
  %v4559 = vmul.f32 %v45, %v4059
  %v4560 = vmul.f32 %v46, %v4063
  %v4561 = vmul.f32 %v47, %v4067
  %v4562 = vmul.f32 %v48, %v4071
  %v4563 = vmul.f32 %v49, %v4075
  %v4564 = vmul.f32 %v50, %v4079
  %v4565 = vmul.f32 %v51, %v4086
  %v4566 = vmul.f32 %v52, %v4090
  %v4567 = vmul.f32 %v53, %v4094
  %v4568 = vmul.f32 %v54, %v4098
  %v4569 = vmul.f32 %v55, %v4102
  %v4570 = vmul.f32 %v56, %v4106
  %v4571 = vmul.f32 %v57, %v4110
  %v4572 = vmul.f32 %v58, %v4114
  %v4573 = vmul.f32 %v59, %v4118
  %v4574 = vmul.f32 %v60, %v4122
  %v4575 = vmul.f32 %v61, %v4126
  %v4576 = vmul.f32 %v62, %v4130
  %v4577 = vmul.f32 %v63, %v4134
  %v4578 = vmul.f32 %v64, %v4138
  %v4579 = vmul.f32 %v65, %v4142
  %v4580 = vmul.f32 %v66, %v4146
  %v4581 = vmul.f32 %v67, %v4153
  %v4582 = vmul.f32 %v68, %v4157
  %v4583 = vmul.f32 %v69, %v4161
  %v4584 = vmul.f32 %v70, %v4165
  %v4585 = vmul.f32 %v71, %v4169
  %v4586 = vmul.f32 %v72, %v4173
  %v4587 = vmul.f32 %v73, %v4177
  %v4588 = vmul.f32 %v74, %v4181
  %v4589 = vmul.f32 %v75, %v4185
  %v4590 = vmul.f32 %v76, %v4189
  %v4591 = vmul.f32 %v77, %v4193
  %v4592 = vmul.f32 %v78, %v4197
  %v4593 = vmul.f32 %v79, %v4201
  %v4594 = vmul.f32 %v80, %v4205
  %v4595 = vmul.f32 %v81, %v4209
  %v4596 = vmul.f32 %v82, %v4213
  %v4597 = vmul.f32 %v83, %v4220
  %v4598 = vmul.f32 %v84, %v4224
  %v4599 = vmul.f32 %v85, %v4228
  %v4600 = vmul.f32 %v86, %v4232
  %v4601 = vmul.f32 %v87, %v4236
  %v4602 = vmul.f32 %v88, %v4240
  %v4603 = vmul.f32 %v89, %v4244
  %v4604 = vmul.f32 %v90, %v4248
  %v4605 = vmul.f32 %v91, %v4252
  %v4606 = vmul.f32 %v92, %v4256
  %v4607 = vmul.f32 %v93, %v4260
  %v4608 = vmul.f32 %v94, %v4264
  %v4609 = vmul.f32 %v95, %v4268
  %v4610 = vmul.f32 %v96, %v4272
  %v4611 = vmul.f32 %v97, %v4276
  %v4612 = vmul.f32 %v98, %v4280
  %v4613 = vmul.f32 %v99, %v4287
  %v4614 = vmul.f32 %v100, %v4291
  %v4615 = vmul.f32 %v101, %v4295
  %v4616 = vmul.f32 %v102, %v4299
  %v4617 = vmul.f32 %v103, %v4303
  %v4618 = vmul.f32 %v104, %v4307
  %v4619 = vmul.f32 %v105, %v4311
  %v4620 = vmul.f32 %v106, %v4315
  %v4621 = vmul.f32 %v107, %v4319
  %v4622 = vmul.f32 %v108, %v4323
  %v4623 = vmul.f32 %v109, %v4327
  %v4624 = vmul.f32 %v110, %v4331
  %v4625 = vmul.f32 %v111, %v4335
  %v4626 = vmul.f32 %v112, %v4339
  %v4627 = vmul.f32 %v113, %v4343
  %v4628 = vmul.f32 %v114, %v4347
  %v4629 = vmul.f32 %v115, %v4354
  %v4630 = vmul.f32 %v116, %v4358
  %v4631 = vmul.f32 %v117, %v4362
  %v4632 = vmul.f32 %v118, %v4366
  %v4633 = vmul.f32 %v119, %v4370
  %v4634 = vmul.f32 %v120, %v4374
  %v4635 = vmul.f32 %v121, %v4378
  %v4636 = vmul.f32 %v122, %v4382
  %v4637 = vmul.f32 %v123, %v4386
  %v4638 = vmul.f32 %v124, %v4390
  %v4639 = vmul.f32 %v125, %v4394
  %v4640 = vmul.f32 %v126, %v4398
  %v4641 = vmul.f32 %v127, %v4402
  %v4642 = vmul.f32 %v128, %v4406
  %v4643 = vmul.f32 %v129, %v4410
  %v4644 = vmul.f32 %v130, %v4414
  %v4645 = vmul.f32 %v131, %v4421
  %v4646 = vmul.f32 %v132, %v4425
  %v4647 = vmul.f32 %v133, %v4429
  %v4648 = vmul.f32 %v134, %v4433
  %v4649 = vmul.f32 %v135, %v4437
  %v4650 = vmul.f32 %v136, %v4441
  %v4651 = vmul.f32 %v137, %v4445
  %v4652 = vmul.f32 %v138, %v4449
  %v4653 = vmul.f32 %v139, %v4453
  %v4654 = vmul.f32 %v140, %v4457
  %v4655 = vmul.f32 %v141, %v4461
  %v4656 = vmul.f32 %v142, %v4465
  %v4657 = vmul.f32 %v143, %v4469
  %v4658 = vmul.f32 %v144, %v4473
  %v4659 = vmul.f32 %v145, %v4477
  %v4660 = vmul.f32 %v146, %v4481
  %v4661 = vmul.f32 %v147, %v4488
  %v4662 = vmul.f32 %v148, %v4492
  %v4663 = vmul.f32 %v149, %v4496
  %v4664 = vmul.f32 %v150, %v4500
  %v4665 = vmul.f32 %v151, %v4504
  %v4666 = vmul.f32 %v152, %v4508
  %v4667 = vmul.f32 %v153, %v4512
  %v4668 = vmul.f32 %v154, %v4516
  %v4669 = vmul.f32 %v155, %v4520
  %v4670 = vmul.f32 %v156, %v4524
  %v4671 = vmul.f32 %v157, %v4528
  %v4672 = vmul.f32 %v158, %v4532
  %v4673 = vmul.f32 %v159, %v4536
  %v4674 = vmul.f32 %v160, %v4540
  %v4675 = vmul.f32 %v161, %v4544
  %v4676 = vmul.f32 %v162, %v4548
  %4677 = vst.msk [vmem:[%s9] sm:$0xff] %vm195, %v4549
  %4678 = vst.msk [vmem:[%s9 + $0x8] sm:$0xff] %vm195, %v4550
  %4679 = vst.msk [vmem:[%s9 + $0x10] sm:$0xff] %vm195, %v4551
  %4680 = vst.msk [vmem:[%s9 + $0x18] sm:$0xff] %vm195, %v4552
  %4681 = vst.msk [vmem:[%s9 + $0x20] sm:$0xff] %vm195, %v4553
  %4682 = vst.msk [vmem:[%s9 + $0x28] sm:$0xff] %vm195, %v4554
  %4683 = vst.msk [vmem:[%s9 + $0x30] sm:$0xff] %vm195, %v4555
  %4684 = vst.msk [vmem:[%s9 + $0x38] sm:$0xff] %vm195, %v4556
  %4685 = vst.msk [vmem:[%s9 + $0x40] sm:$0xff] %vm195, %v4557
  %4686 = vst.msk [vmem:[%s9 + $0x48] sm:$0xff] %vm195, %v4558
  %4687 = vst.msk [vmem:[%s9 + $0x50] sm:$0xff] %vm195, %v4559
  %4688 = vst.msk [vmem:[%s9 + $0x58] sm:$0xff] %vm195, %v4560
  %4689 = vst.msk [vmem:[%s9 + $0x60] sm:$0xff] %vm195, %v4561
  %4690 = vst.msk [vmem:[%s9 + $0x68] sm:$0xff] %vm195, %v4562
  %4691 = vst.msk [vmem:[%s9 + $0x70] sm:$0xff] %vm195, %v4563
  %4692 = vst.msk [vmem:[%s9 + $0x78] sm:$0xff] %vm195, %v4564
  %4693 = vst.msk [vmem:[%s9 + $0x80] sm:$0xff] %vm195, %v4565
  %4694 = vst.msk [vmem:[%s9 + $0x88] sm:$0xff] %vm195, %v4566
  %4695 = vst.msk [vmem:[%s9 + $0x90] sm:$0xff] %vm195, %v4567
  %4696 = vst.msk [vmem:[%s9 + $0x98] sm:$0xff] %vm195, %v4568
  %4697 = vst.msk [vmem:[%s9 + $0xa0] sm:$0xff] %vm195, %v4569
  %4698 = vst.msk [vmem:[%s9 + $0xa8] sm:$0xff] %vm195, %v4570
  %4699 = vst.msk [vmem:[%s9 + $0xb0] sm:$0xff] %vm195, %v4571
  %4700 = vst.msk [vmem:[%s9 + $0xb8] sm:$0xff] %vm195, %v4572
  %4701 = vst.msk [vmem:[%s9 + $0xc0] sm:$0xff] %vm195, %v4573
  %4702 = vst.msk [vmem:[%s9 + $0xc8] sm:$0xff] %vm195, %v4574
  %4703 = vst.msk [vmem:[%s9 + $0xd0] sm:$0xff] %vm195, %v4575
  %4704 = vst.msk [vmem:[%s9 + $0xd8] sm:$0xff] %vm195, %v4576
  %4705 = vst.msk [vmem:[%s9 + $0xe0] sm:$0xff] %vm195, %v4577
  %4706 = vst.msk [vmem:[%s9 + $0xe8] sm:$0xff] %vm195, %v4578
  %4707 = vst.msk [vmem:[%s9 + $0xf0] sm:$0xff] %vm195, %v4579
  %4708 = vst.msk [vmem:[%s9 + $0xf8] sm:$0xff] %vm195, %v4580
  %4709 = vst.msk [vmem:[%s9 + $0x100] sm:$0xff] %vm195, %v4581
  %4710 = vst.msk [vmem:[%s9 + $0x108] sm:$0xff] %vm195, %v4582
  %4711 = vst.msk [vmem:[%s9 + $0x110] sm:$0xff] %vm195, %v4583
  %4712 = vst.msk [vmem:[%s9 + $0x118] sm:$0xff] %vm195, %v4584
  %4713 = vst.msk [vmem:[%s9 + $0x120] sm:$0xff] %vm195, %v4585
  %4714 = vst.msk [vmem:[%s9 + $0x128] sm:$0xff] %vm195, %v4586
  %4715 = vst.msk [vmem:[%s9 + $0x130] sm:$0xff] %vm195, %v4587
  %4716 = vst.msk [vmem:[%s9 + $0x138] sm:$0xff] %vm195, %v4588
  %4717 = vst.msk [vmem:[%s9 + $0x140] sm:$0xff] %vm195, %v4589
  %4718 = vst.msk [vmem:[%s9 + $0x148] sm:$0xff] %vm195, %v4590
  %4719 = vst.msk [vmem:[%s9 + $0x150] sm:$0xff] %vm195, %v4591
  %4720 = vst.msk [vmem:[%s9 + $0x158] sm:$0xff] %vm195, %v4592
  %4721 = vst.msk [vmem:[%s9 + $0x160] sm:$0xff] %vm195, %v4593
  %4722 = vst.msk [vmem:[%s9 + $0x168] sm:$0xff] %vm195, %v4594
  %4723 = vst.msk [vmem:[%s9 + $0x170] sm:$0xff] %vm195, %v4595
  %4724 = vst.msk [vmem:[%s9 + $0x178] sm:$0xff] %vm195, %v4596
  %4725 = vst.msk [vmem:[%s9 + $0x180] sm:$0xff] %vm195, %v4597
  %4726 = vst.msk [vmem:[%s9 + $0x188] sm:$0xff] %vm195, %v4598
  %4727 = vst.msk [vmem:[%s9 + $0x190] sm:$0xff] %vm195, %v4599
  %4728 = vst.msk [vmem:[%s9 + $0x198] sm:$0xff] %vm195, %v4600
  %4729 = vst.msk [vmem:[%s9 + $0x1a0] sm:$0xff] %vm195, %v4601
  %4730 = vst.msk [vmem:[%s9 + $0x1a8] sm:$0xff] %vm195, %v4602
  %4731 = vst.msk [vmem:[%s9 + $0x1b0] sm:$0xff] %vm195, %v4603
  %4732 = vst.msk [vmem:[%s9 + $0x1b8] sm:$0xff] %vm195, %v4604
  %4733 = vst.msk [vmem:[%s9 + $0x1c0] sm:$0xff] %vm195, %v4605
  %4734 = vst.msk [vmem:[%s9 + $0x1c8] sm:$0xff] %vm195, %v4606
  %4735 = vst.msk [vmem:[%s9 + $0x1d0] sm:$0xff] %vm195, %v4607
  %4736 = vst.msk [vmem:[%s9 + $0x1d8] sm:$0xff] %vm195, %v4608
  %4737 = vst.msk [vmem:[%s9 + $0x1e0] sm:$0xff] %vm195, %v4609
  %4738 = vst.msk [vmem:[%s9 + $0x1e8] sm:$0xff] %vm195, %v4610
  %4739 = vst.msk [vmem:[%s9 + $0x1f0] sm:$0xff] %vm195, %v4611
  %4740 = vst.msk [vmem:[%s9 + $0x1f8] sm:$0xff] %vm195, %v4612
  %4741 = vst.msk [vmem:[%s9 + $0x200] sm:$0xff] %vm195, %v4613
  %4742 = vst.msk [vmem:[%s9 + $0x208] sm:$0xff] %vm195, %v4614
  %4743 = vst.msk [vmem:[%s9 + $0x210] sm:$0xff] %vm195, %v4615
  %4744 = vst.msk [vmem:[%s9 + $0x218] sm:$0xff] %vm195, %v4616
  %4745 = vst.msk [vmem:[%s9 + $0x220] sm:$0xff] %vm195, %v4617
  %4746 = vst.msk [vmem:[%s9 + $0x228] sm:$0xff] %vm195, %v4618
  %4747 = vst.msk [vmem:[%s9 + $0x230] sm:$0xff] %vm195, %v4619
  %4748 = vst.msk [vmem:[%s9 + $0x238] sm:$0xff] %vm195, %v4620
  %4749 = vst.msk [vmem:[%s9 + $0x240] sm:$0xff] %vm195, %v4621
  %4750 = vst.msk [vmem:[%s9 + $0x248] sm:$0xff] %vm195, %v4622
  %4751 = vst.msk [vmem:[%s9 + $0x250] sm:$0xff] %vm195, %v4623
  %4752 = vst.msk [vmem:[%s9 + $0x258] sm:$0xff] %vm195, %v4624
  %4753 = vst.msk [vmem:[%s9 + $0x260] sm:$0xff] %vm195, %v4625
  %4754 = vst.msk [vmem:[%s9 + $0x268] sm:$0xff] %vm195, %v4626
  %4755 = vst.msk [vmem:[%s9 + $0x270] sm:$0xff] %vm195, %v4627
  %4756 = vst.msk [vmem:[%s9 + $0x278] sm:$0xff] %vm195, %v4628
  %4757 = vst.msk [vmem:[%s9 + $0x280] sm:$0xff] %vm195, %v4629
  %4758 = vst.msk [vmem:[%s9 + $0x288] sm:$0xff] %vm195, %v4630
  %4759 = vst.msk [vmem:[%s9 + $0x290] sm:$0xff] %vm195, %v4631
  %4760 = vst.msk [vmem:[%s9 + $0x298] sm:$0xff] %vm195, %v4632
  %4761 = vst.msk [vmem:[%s9 + $0x2a0] sm:$0xff] %vm195, %v4633
  %4762 = vst.msk [vmem:[%s9 + $0x2a8] sm:$0xff] %vm195, %v4634
  %4763 = vst.msk [vmem:[%s9 + $0x2b0] sm:$0xff] %vm195, %v4635
  %4764 = vst.msk [vmem:[%s9 + $0x2b8] sm:$0xff] %vm195, %v4636
  %4765 = vst.msk [vmem:[%s9 + $0x2c0] sm:$0xff] %vm195, %v4637
  %4766 = vst.msk [vmem:[%s9 + $0x2c8] sm:$0xff] %vm195, %v4638
  %4767 = vst.msk [vmem:[%s9 + $0x2d0] sm:$0xff] %vm195, %v4639
  %4768 = vst.msk [vmem:[%s9 + $0x2d8] sm:$0xff] %vm195, %v4640
  %4769 = vst.msk [vmem:[%s9 + $0x2e0] sm:$0xff] %vm195, %v4641
  %4770 = vst.msk [vmem:[%s9 + $0x2e8] sm:$0xff] %vm195, %v4642
  %4771 = vst.msk [vmem:[%s9 + $0x2f0] sm:$0xff] %vm195, %v4643
  %4772 = vst.msk [vmem:[%s9 + $0x2f8] sm:$0xff] %vm195, %v4644
  %4773 = vst.msk [vmem:[%s9 + $0x300] sm:$0xff] %vm195, %v4645
  %4774 = vst.msk [vmem:[%s9 + $0x308] sm:$0xff] %vm195, %v4646
  %4775 = vst.msk [vmem:[%s9 + $0x310] sm:$0xff] %vm195, %v4647
  %4776 = vst.msk [vmem:[%s9 + $0x318] sm:$0xff] %vm195, %v4648
  %4777 = vst.msk [vmem:[%s9 + $0x320] sm:$0xff] %vm195, %v4649
  %4778 = vst.msk [vmem:[%s9 + $0x328] sm:$0xff] %vm195, %v4650
  %4779 = vst.msk [vmem:[%s9 + $0x330] sm:$0xff] %vm195, %v4651
  %4780 = vst.msk [vmem:[%s9 + $0x338] sm:$0xff] %vm195, %v4652
  %4781 = vst.msk [vmem:[%s9 + $0x340] sm:$0xff] %vm195, %v4653
  %4782 = vst.msk [vmem:[%s9 + $0x348] sm:$0xff] %vm195, %v4654
  %4783 = vst.msk [vmem:[%s9 + $0x350] sm:$0xff] %vm195, %v4655
  %4784 = vst.msk [vmem:[%s9 + $0x358] sm:$0xff] %vm195, %v4656
  %4785 = vst.msk [vmem:[%s9 + $0x360] sm:$0xff] %vm195, %v4657
  %4786 = vst.msk [vmem:[%s9 + $0x368] sm:$0xff] %vm195, %v4658
  %4787 = vst.msk [vmem:[%s9 + $0x370] sm:$0xff] %vm195, %v4659
  %4788 = vst.msk [vmem:[%s9 + $0x378] sm:$0xff] %vm195, %v4660
  %4789 = vst.msk [vmem:[%s9 + $0x380] sm:$0xff] %vm195, %v4661
  %4790 = vst.msk [vmem:[%s9 + $0x388] sm:$0xff] %vm195, %v4662
  %4791 = vst.msk [vmem:[%s9 + $0x390] sm:$0xff] %vm195, %v4663
  %4792 = vst.msk [vmem:[%s9 + $0x398] sm:$0xff] %vm195, %v4664
  %4793 = vst.msk [vmem:[%s9 + $0x3a0] sm:$0xff] %vm195, %v4665
  %4794 = vst.msk [vmem:[%s9 + $0x3a8] sm:$0xff] %vm195, %v4666
  %4795 = vst.msk [vmem:[%s9 + $0x3b0] sm:$0xff] %vm195, %v4667
  %4796 = vst.msk [vmem:[%s9 + $0x3b8] sm:$0xff] %vm195, %v4668
  %4797 = vst.msk [vmem:[%s9 + $0x3c0] sm:$0xff] %vm195, %v4669
  %4798 = vst.msk [vmem:[%s9 + $0x3c8] sm:$0xff] %vm195, %v4670
  %4799 = vst.msk [vmem:[%s9 + $0x3d0] sm:$0xff] %vm195, %v4671
  %4800 = vst.msk [vmem:[%s9 + $0x3d8] sm:$0xff] %vm195, %v4672
  %4801 = vst.msk [vmem:[%s9 + $0x3e0] sm:$0xff] %vm195, %v4673
  %4802 = vst.msk [vmem:[%s9 + $0x3e8] sm:$0xff] %vm195, %v4674
  %4803 = vst.msk [vmem:[%s9 + $0x3f0] sm:$0xff] %vm195, %v4675
  %4804 = vst.msk [vmem:[%s9 + $0x3f8] sm:$0xff] %vm195, %v4676
  %v4805 = vlaneseq
  %v4806 = vshrl.u32 %v4805, 7
  %v4807 = vsub.s32 0, %v4806
  %v4808 = vrot.slane %v4012, %v4807
  %4810 = vbcast.lane.b32.xlu0 %v4808, 256
  %v4811 = vpop.permute.xlu0 %4810
  %s4813 = sor.u32 256, 8
  %4814 = vbcast.lane.b32.xlu0 %v4808, %s4813
  %v4815 = vpop.permute.xlu0 %4814
  %s4817 = sor.u32 256, 16
  %4818 = vbcast.lane.b32.xlu0 %v4808, %s4817
  %v4819 = vpop.permute.xlu0 %4818
  %s4821 = sor.u32 256, 24
  %4822 = vbcast.lane.b32.xlu0 %v4808, %s4821
  %v4823 = vpop.permute.xlu0 %4822
  %s4825 = sor.u32 256, 32
  %4826 = vbcast.lane.b32.xlu0 %v4808, %s4825
  %v4827 = vpop.permute.xlu0 %4826
  %s4829 = sor.u32 256, 40
  %4830 = vbcast.lane.b32.xlu0 %v4808, %s4829
  %v4831 = vpop.permute.xlu0 %4830
  %s4833 = sor.u32 256, 48
  %4834 = vbcast.lane.b32.xlu0 %v4808, %s4833
  %v4835 = vpop.permute.xlu0 %4834
  %s4837 = sor.u32 256, 56
  %4838 = vbcast.lane.b32.xlu0 %v4808, %s4837
  %v4839 = vpop.permute.xlu0 %4838
  %s4841 = sor.u32 256, 64
  %4842 = vbcast.lane.b32.xlu0 %v4808, %s4841
  %v4843 = vpop.permute.xlu0 %4842
  %s4845 = sor.u32 256, 72
  %4846 = vbcast.lane.b32.xlu0 %v4808, %s4845
  %v4847 = vpop.permute.xlu0 %4846
  %s4849 = sor.u32 256, 80
  %4850 = vbcast.lane.b32.xlu0 %v4808, %s4849
  %v4851 = vpop.permute.xlu0 %4850
  %s4853 = sor.u32 256, 88
  %4854 = vbcast.lane.b32.xlu0 %v4808, %s4853
  %v4855 = vpop.permute.xlu0 %4854
  %s4857 = sor.u32 256, 96
  %4858 = vbcast.lane.b32.xlu0 %v4808, %s4857
  %v4859 = vpop.permute.xlu0 %4858
  %s4861 = sor.u32 256, 104
  %4862 = vbcast.lane.b32.xlu0 %v4808, %s4861
  %v4863 = vpop.permute.xlu0 %4862
  %s4865 = sor.u32 256, 112
  %4866 = vbcast.lane.b32.xlu0 %v4808, %s4865
  %v4867 = vpop.permute.xlu0 %4866
  %s4869 = sor.u32 256, 120
  %4870 = vbcast.lane.b32.xlu0 %v4808, %s4869
  %v4871 = vpop.permute.xlu0 %4870
  %v4872 = vlaneseq
  %v4873 = vshrl.u32 %v4872, 7
  %v4874 = vsub.s32 1, %v4873
  %v4875 = vrot.slane %v4012, %v4874
  %4877 = vbcast.lane.b32.xlu0 %v4875, 256
  %v4878 = vpop.permute.xlu0 %4877
  %s4880 = sor.u32 256, 8
  %4881 = vbcast.lane.b32.xlu0 %v4875, %s4880
  %v4882 = vpop.permute.xlu0 %4881
  %s4884 = sor.u32 256, 16
  %4885 = vbcast.lane.b32.xlu0 %v4875, %s4884
  %v4886 = vpop.permute.xlu0 %4885
  %s4888 = sor.u32 256, 24
  %4889 = vbcast.lane.b32.xlu0 %v4875, %s4888
  %v4890 = vpop.permute.xlu0 %4889
  %s4892 = sor.u32 256, 32
  %4893 = vbcast.lane.b32.xlu0 %v4875, %s4892
  %v4894 = vpop.permute.xlu0 %4893
  %s4896 = sor.u32 256, 40
  %4897 = vbcast.lane.b32.xlu0 %v4875, %s4896
  %v4898 = vpop.permute.xlu0 %4897
  %s4900 = sor.u32 256, 48
  %4901 = vbcast.lane.b32.xlu0 %v4875, %s4900
  %v4902 = vpop.permute.xlu0 %4901
  %s4904 = sor.u32 256, 56
  %4905 = vbcast.lane.b32.xlu0 %v4875, %s4904
  %v4906 = vpop.permute.xlu0 %4905
  %s4908 = sor.u32 256, 64
  %4909 = vbcast.lane.b32.xlu0 %v4875, %s4908
  %v4910 = vpop.permute.xlu0 %4909
  %s4912 = sor.u32 256, 72
  %4913 = vbcast.lane.b32.xlu0 %v4875, %s4912
  %v4914 = vpop.permute.xlu0 %4913
  %s4916 = sor.u32 256, 80
  %4917 = vbcast.lane.b32.xlu0 %v4875, %s4916
  %v4918 = vpop.permute.xlu0 %4917
  %s4920 = sor.u32 256, 88
  %4921 = vbcast.lane.b32.xlu0 %v4875, %s4920
  %v4922 = vpop.permute.xlu0 %4921
  %s4924 = sor.u32 256, 96
  %4925 = vbcast.lane.b32.xlu0 %v4875, %s4924
  %v4926 = vpop.permute.xlu0 %4925
  %s4928 = sor.u32 256, 104
  %4929 = vbcast.lane.b32.xlu0 %v4875, %s4928
  %v4930 = vpop.permute.xlu0 %4929
  %s4932 = sor.u32 256, 112
  %4933 = vbcast.lane.b32.xlu0 %v4875, %s4932
  %v4934 = vpop.permute.xlu0 %4933
  %s4936 = sor.u32 256, 120
  %4937 = vbcast.lane.b32.xlu0 %v4875, %s4936
  %v4938 = vpop.permute.xlu0 %4937
  %v4939 = vmul.f32 %v163, %v4811
  %v4940 = vmul.f32 %v164, %v4815
  %v4941 = vmul.f32 %v165, %v4819
  %v4942 = vmul.f32 %v166, %v4823
  %v4943 = vmul.f32 %v167, %v4827
  %v4944 = vmul.f32 %v168, %v4831
  %v4945 = vmul.f32 %v169, %v4835
  %v4946 = vmul.f32 %v170, %v4839
  %v4947 = vmul.f32 %v171, %v4843
  %v4948 = vmul.f32 %v172, %v4847
  %v4949 = vmul.f32 %v173, %v4851
  %v4950 = vmul.f32 %v174, %v4855
  %v4951 = vmul.f32 %v175, %v4859
  %v4952 = vmul.f32 %v176, %v4863
  %v4953 = vmul.f32 %v177, %v4867
  %v4954 = vmul.f32 %v178, %v4871
  %v4955 = vmul.f32 %v179, %v4878
  %v4956 = vmul.f32 %v180, %v4882
  %v4957 = vmul.f32 %v181, %v4886
  %v4958 = vmul.f32 %v182, %v4890
  %v4959 = vmul.f32 %v183, %v4894
  %v4960 = vmul.f32 %v184, %v4898
  %v4961 = vmul.f32 %v185, %v4902
  %v4962 = vmul.f32 %v186, %v4906
  %v4963 = vmul.f32 %v187, %v4910
  %v4964 = vmul.f32 %v188, %v4914
  %v4965 = vmul.f32 %v189, %v4918
  %v4966 = vmul.f32 %v190, %v4922
  %v4967 = vmul.f32 %v191, %v4926
  %v4968 = vmul.f32 %v192, %v4930
  %v4969 = vmul.f32 %v193, %v4934
  %v4970 = vmul.f32 %v194, %v4938
  %4971 = vst.msk [vmem:[%s10] sm:$0xff] %vm773, %v4939
  %4972 = vst.msk [vmem:[%s10 + $0x8] sm:$0xff] %vm773, %v4940
  %4973 = vst.msk [vmem:[%s10 + $0x10] sm:$0xff] %vm773, %v4941
  %4974 = vst.msk [vmem:[%s10 + $0x18] sm:$0xff] %vm773, %v4942
  %4975 = vst.msk [vmem:[%s10 + $0x20] sm:$0xff] %vm773, %v4943
  %4976 = vst.msk [vmem:[%s10 + $0x28] sm:$0xff] %vm773, %v4944
  %4977 = vst.msk [vmem:[%s10 + $0x30] sm:$0xff] %vm773, %v4945
  %4978 = vst.msk [vmem:[%s10 + $0x38] sm:$0xff] %vm773, %v4946
  %4979 = vst.msk [vmem:[%s10 + $0x40] sm:$0xff] %vm773, %v4947
  %4980 = vst.msk [vmem:[%s10 + $0x48] sm:$0xff] %vm773, %v4948
  %4981 = vst.msk [vmem:[%s10 + $0x50] sm:$0xff] %vm773, %v4949
  %4982 = vst.msk [vmem:[%s10 + $0x58] sm:$0xff] %vm773, %v4950
  %4983 = vst.msk [vmem:[%s10 + $0x60] sm:$0xff] %vm773, %v4951
  %4984 = vst.msk [vmem:[%s10 + $0x68] sm:$0xff] %vm773, %v4952
  %4985 = vst.msk [vmem:[%s10 + $0x70] sm:$0xff] %vm773, %v4953
  %4986 = vst.msk [vmem:[%s10 + $0x78] sm:$0xff] %vm773, %v4954
  %4987 = vst.msk [vmem:[%s10 + $0x80] sm:$0xff] %vm773, %v4955
  %4988 = vst.msk [vmem:[%s10 + $0x88] sm:$0xff] %vm773, %v4956
  %4989 = vst.msk [vmem:[%s10 + $0x90] sm:$0xff] %vm773, %v4957
  %4990 = vst.msk [vmem:[%s10 + $0x98] sm:$0xff] %vm773, %v4958
  %4991 = vst.msk [vmem:[%s10 + $0xa0] sm:$0xff] %vm773, %v4959
  %4992 = vst.msk [vmem:[%s10 + $0xa8] sm:$0xff] %vm773, %v4960
  %4993 = vst.msk [vmem:[%s10 + $0xb0] sm:$0xff] %vm773, %v4961
  %4994 = vst.msk [vmem:[%s10 + $0xb8] sm:$0xff] %vm773, %v4962
  %4995 = vst.msk [vmem:[%s10 + $0xc0] sm:$0xff] %vm773, %v4963
  %4996 = vst.msk [vmem:[%s10 + $0xc8] sm:$0xff] %vm773, %v4964
  %4997 = vst.msk [vmem:[%s10 + $0xd0] sm:$0xff] %vm773, %v4965
  %4998 = vst.msk [vmem:[%s10 + $0xd8] sm:$0xff] %vm773, %v4966
  %4999 = vst.msk [vmem:[%s10 + $0xe0] sm:$0xff] %vm773, %v4967
  %5000 = vst.msk [vmem:[%s10 + $0xe8] sm:$0xff] %vm773, %v4968
  %5001 = vst.msk [vmem:[%s10 + $0xf0] sm:$0xff] %vm773, %v4969
  %5002 = vst.msk [vmem:[%s10 + $0xf8] sm:$0xff] %vm773, %v4970
  // Predicated region
  $region38: #{tpu_custom_call.1} parent=0 // pred_check
    _
  $region39: #{tpu_custom_call.1} parent=0 // pred_check_branch
    %5004 = sbr.rel (0) target = $region41
  $region40: #{tpu_custom_call.1} parent=0 // pred_region
    _
  $region41: #{tpu_custom_call.1} parent=0 // pred_fallthru
    _
  // Predicated region
  $region42: #{tpu_custom_call.1} parent=0 // pred_check
    _
  $region43: #{tpu_custom_call.1} parent=0 // pred_check_branch
    %5006 = sbr.rel (0) target = $region45
  $region44: #{tpu_custom_call.1} parent=0 // pred_region
    _
  $region45: #{tpu_custom_call.1} parent=0 // pred_fallthru
    _
  // Predicated region
  $region46: #{tpu_custom_call.1} parent=0 // pred_check
    _
  $region47: #{tpu_custom_call.1} parent=0 // pred_check_branch
    %5008 = sbr.rel (0) target = $region49
  $region48: #{tpu_custom_call.1} parent=0 // pred_region
    _
  $region49: #{tpu_custom_call.1} parent=0 // pred_fallthru
    _
  // Predicated region
  $region50: #{tpu_custom_call.1} parent=0 // pred_check
    _
  $region51: #{tpu_custom_call.1} parent=0 // pred_check_branch
    %5010 = sbr.rel (0) target = $region53
  $region52: #{tpu_custom_call.1} parent=0 // pred_region
    _
  $region53: #{tpu_custom_call.1} parent=0 // pred_fallthru
    _

</llo_original>
